<compile_context>
chip_gen: v5e
topology: v5e:2x2
jax: 0.10.0
libtpu: 0.0.40
codegen_flags: <defaults>
</compile_context>

<pallas_src>
import jax
import jax.numpy as jnp
from jax.experimental import pallas as pl
from jax.experimental.pallas import tpu as pltpu

# ----------------------------- hyper-parameters -----------------------------
VOCAB = 10          # vocab_size
D = 32              # embed_dim / channels
L = 16              # maxlen / seq_len
B = 2               # batch
NH = 2              # tuning_params['num_heads']
HYP = 32            # hidden_dim_hyper_mixing * num_heads (hypernet_size)
DH = D // NH        # per-head channel dim (input & hidden of ParallelMLPs)
HH = HYP // NH      # per-head hypernet output dim
CH = 2 * D          # channel-mixing hidden (feature_mixing_mlp_factor = 2)
NUM_LAYERS = 2      # tuning_params['num_mixer_layers']
EPS = 1e-5          # nn.LayerNorm default eps
DM = max(D, HYP)    # lane width of the broadcast float mask

WKEYS = (
    "ln1_g", "ln1_b",
    "g1w1", "g1b1", "g1w2", "g1b2",     # fused hypernet W1 generator
    "g2w1", "g2b1", "g2w2", "g2b2",     # fused hypernet W2 generator
    "hln_g", "hln_b",                   # HyperMixing output LayerNorm
    "cln_g", "cln_b",                   # ChannelMixing LayerNorm
    "cf1w", "cf1b", "cf2w", "cf2b",     # ChannelMixing MLP
    "fln_g", "fln_b",                   # final LayerNorm
)


# ------------------------------ kernel helpers ------------------------------
def _ln(x, g, b):
    mu = jnp.mean(x, axis=-1, keepdims=True)
    var = jnp.mean((x - mu) ** 2, axis=-1, keepdims=True)
    return (x - mu) * jax.lax.rsqrt(var + EPS) * g + b


def _erf(x):
    # Abramowitz & Stegun 7.1.26 polynomial (|err| < 1.5e-7): matches the
    # exact-erf nn.GELU() of the PyTorch reference to ~1e-6 using only
    # abs/mul/add/div/exp/where (all with guaranteed Mosaic lowerings).
    p = 0.3275911
    a1, a2, a3, a4, a5 = (0.254829592, -0.284496736, 1.421413741,
                          -1.453152027, 1.061405429)
    ax = jnp.abs(x)
    t = 1.0 / (1.0 + p * ax)
    poly = ((((a5 * t + a4) * t + a3) * t + a2) * t + a1) * t
    y = 1.0 - poly * jnp.exp(-ax * ax)
    return jnp.where(x >= 0.0, y, -y)


def _gelu(x):
    # PyTorch nn.GELU() default: 0.5 * x * (1 + erf(x / sqrt(2)))
    return 0.5 * x * (1.0 + _erf(x * 0.7071067811865476))


# ------------------------------ fused forward kernel ------------------------
def fused_mixer_kernel(
    x_ref, fm_ref, pe_ref, hm_ref,
    ln1_g, ln1_b,
    g1w1, g1b1, g1w2, g1b2,
    g2w1, g2b1, g2w2, g2b2,
    hln_g, hln_b,
    cln_g, cln_b,
    cf1w, cf1b, cf2w, cf2b,
    fln_g, fln_b,
    o_ref,
):
    f32 = jnp.float32
    x = x_ref[0]                 # (L, D)   one sequence
    fm = fm_ref[0]               # (L, DM)  lane-dense float mask (1 = valid)
    pe = pe_ref[...]             # (L, D)   sinusoidal positional encoding
    hm = hm_ref[...]             # (HYP, D) block-diagonal head mask

    fm_d = fm[:, :D]             # static full-width slices (D == HYP == DM)
    fm_h = fm[:, :HYP]

    # Static unroll over layers: x stays resident, weights indexed statically.
    for l in range(NUM_LAYERS):
        # ---------------- token (hyper) mixing ----------------
        xn = _ln(x, ln1_g[l], ln1_b[l])
        kv = xn * fm_d                      # masked key/value (query unused)
        hyp_in = kv + pe                    # PE added before the hypernetwork

        # Hypernetwork (ParallelMLPs over NH heads) folded into block-diagonal
        # pre-transposed weights: one (L,D)@(D,D) and one (L,D)@(D,HYP) matmul
        # per generator instead of per-head slices + concat + .T.
        a1 = _gelu(jnp.dot(hyp_in, g1w1[l], preferred_element_type=f32)
                   + g1b1[l])
        w1 = (jnp.dot(a1, g1w2[l], preferred_element_type=f32)
              + g1b2[l]) * fm_h                                   # (L, HYP)
        a2 = _gelu(jnp.dot(hyp_in, g2w1[l], preferred_element_type=f32)
                   + g2b1[l])
        w2 = (jnp.dot(a2, g2w2[l], preferred_element_type=f32)
              + g2b2[l]) * fm_h                                   # (L, HYP)

        # Token-mixing MLP, all heads at once, no materialized transposes:
        #   t[k, d]  = sum_s w1[s, k] * kv[s, d]         (TN matmul)
        #   g[k, d]  = gelu(t)[k, d] * head_mask[k, d]   (kills cross-head terms)
        #   tm[s, d] = sum_k w2[s, k] * g[k, d]          (plain matmul)
        t = jax.lax.dot_general(w1, kv, (((0,), (0,)), ((), ())),
                                preferred_element_type=f32)       # (HYP, D)
        g = _gelu(t) * hm
        tm = jnp.dot(w2, g, preferred_element_type=f32)           # (L, D)
        x = x + _ln(tm, hln_g[l], hln_b[l])   # HyperMixing output LN + residual

        # ---------------- channel (feature) mixing ----------------
        xn2 = _ln(x, cln_g[l], cln_b[l])
        hcm = _gelu(jnp.dot(xn2, cf1w[l], preferred_element_type=f32)
                    + cf1b[l])
        x = x + jnp.dot(hcm, cf2w[l], preferred_element_type=f32) + cf2b[l]

    o_ref[0] = _ln(x, fln_g[...], fln_b[...])   # final LayerNorm


# ------------------------------ pallas wrapper -------------------------------
def _const_spec(shape):
    zeros = (0,) * len(shape)
    return pl.BlockSpec(shape, lambda b: zeros)


def mixer_forward_pallas(x, fm, pe, hmask, fused):
    """Single fused pallas_call: all mixer layers + final LayerNorm."""
    weights = [fused[k] for k in WKEYS]
    in_specs = [
        pl.BlockSpec((1, L, D), lambda b: (b, 0, 0)),    # x (one sequence/step)
        pl.BlockSpec((1, L, DM), lambda b: (b, 0, 0)),   # lane-dense float mask
        _const_spec(pe.shape),                           # positional encoding
        _const_spec(hmask.shape),                        # block-diag head mask
    ] + [_const_spec(w.shape) for w in weights]          # resident weights
    return pl.pallas_call(
        fused_mixer_kernel,
        out_shape=jax.ShapeDtypeStruct((B, L, D), jnp.float32),
        grid=(B,),
        in_specs=in_specs,
        out_specs=pl.BlockSpec((1, L, D), lambda b: (b, 0, 0)),
        compiler_params=pltpu.CompilerParams(
            dimension_semantics=("parallel",)),          # both TCs on v7x
    )(x, fm, pe, hmask, *weights)


# ------------------------------ host-side prep -------------------------------
def sinusoidal_pe(length, dim):
    pos = jnp.arange(length, dtype=jnp.float32)[:, None]
    i = jnp.arange(0, dim, 2, dtype=jnp.float32)[None, :]
    div = jnp.exp(-jnp.log(10000.0) * i / dim)
    pe = jnp.zeros((length, dim), jnp.float32)
    pe = pe.at[:, 0::2].set(jnp.sin(pos * div))
    pe = pe.at[:, 1::2].set(jnp.cos(pos * div))
    return pe


def head_block_mask():
    m = jnp.zeros((HYP, D), jnp.float32)
    for h in range(NH):
        m = m.at[h * HH:(h + 1) * HH, h * DH:(h + 1) * DH].set(1.0)
    return m


def init_params(key):
    # PyTorch-layout parameters (per-head hypernet weights, Linear-style).
    keys = iter(jax.random.split(key, 4 + 8 * NUM_LAYERS))

    def nrm(shape, scale=0.02):
        return (scale * jax.random.normal(next(keys), shape)).astype(jnp.float32)

    ones = lambda s: jnp.ones(s, jnp.float32)
    zeros = lambda s: jnp.zeros(s, jnp.float32)

    params = {"embed": nrm((VOCAB, D))}
    blocks = []
    for _ in range(NUM_LAYERS):
        blocks.append(dict(
            ln1_g=ones((1, D)), ln1_b=zeros((1, D)),
            h1f1w=nrm((NH, DH, DH)), h1f1b=zeros((NH, DH)),
            h1f2w=nrm((NH, HH, DH)), h1f2b=zeros((NH, HH)),
            h2f1w=nrm((NH, DH, DH)), h2f1b=zeros((NH, DH)),
            h2f2w=nrm((NH, HH, DH)), h2f2b=zeros((NH, HH)),
            hln_g=ones((1, D)), hln_b=zeros((1, D)),
            cln_g=ones((1, D)), cln_b=zeros((1, D)),
            cf1w=nrm((D, CH)), cf1b=zeros((1, CH)),
            cf2w=nrm((CH, D)), cf2b=zeros((1, D)),
        ))
    params["blocks"] = blocks
    params["final_ln_g"] = ones((1, D))
    params["final_ln_b"] = zeros((1, D))
    return params


def fuse_params(params):
    """One-time host-side weight prep: pre-transpose the hypernet weights,
    fold the per-head ParallelMLPs into block-diagonal matrices, and stack
    every per-layer tensor along a leading layer axis."""

    def bd_fc1(w):                       # (NH, DH_hidden, DH_in) -> (D, D)
        m = jnp.zeros((D, D), jnp.float32)
        for h in range(NH):
            m = m.at[h * DH:(h + 1) * DH, h * DH:(h + 1) * DH].set(w[h].T)
        return m

    def bd_fc2(w):                       # (NH, HH_out, DH_hidden) -> (D, HYP)
        m = jnp.zeros((D, HYP), jnp.float32)
        for h in range(NH):
            m = m.at[h * DH:(h + 1) * DH, h * HH:(h + 1) * HH].set(w[h].T)
        return m

    per_layer = {k: [] for k in WKEYS[:-2]}
    for blk in params["blocks"]:
        per_layer["ln1_g"].append(blk["ln1_g"])
        per_layer["ln1_b"].append(blk["ln1_b"])
        per_layer["g1w1"].append(bd_fc1(blk["h1f1w"]))
        per_layer["g1b1"].append(blk["h1f1b"].reshape(1, D))
        per_layer["g1w2"].append(bd_fc2(blk["h1f2w"]))
        per_layer["g1b2"].append(blk["h1f2b"].reshape(1, HYP))
        per_layer["g2w1"].append(bd_fc1(blk["h2f1w"]))
        per_layer["g2b1"].append(blk["h2f1b"].reshape(1, D))
        per_layer["g2w2"].append(bd_fc2(blk["h2f2w"]))
        per_layer["g2b2"].append(blk["h2f2b"].reshape(1, HYP))
        per_layer["hln_g"].append(blk["hln_g"])
        per_layer["hln_b"].append(blk["hln_b"])
        per_layer["cln_g"].append(blk["cln_g"])
        per_layer["cln_b"].append(blk["cln_b"])
        per_layer["cf1w"].append(blk["cf1w"])
        per_layer["cf1b"].append(blk["cf1b"])
        per_layer["cf2w"].append(blk["cf2w"])
        per_layer["cf2b"].append(blk["cf2b"])
    fused = {k: jnp.stack(v) for k, v in per_layer.items()}
    fused["fln_g"] = params["final_ln_g"]
    fused["fln_b"] = params["final_ln_b"]
    return fused


def mixer_each_chr_forward(tokens, pad_mask, embed, fused):
    # Plain-JAX glue: embedding gather + constant tables (PE, head mask, mask
    # broadcast). Everything else runs inside one fused Pallas kernel.
    # TODO(synk): custom embed_layer.Embedding internals unknown; plain
    # nn.Embedding-style lookup is used.
    x = embed[tokens]                                          # (B, L, D)
    valid = 1.0 - pad_mask.astype(jnp.float32)                 # (B, L) 1=valid
    fm = jnp.broadcast_to(valid[..., None], (B, L, DM))        # lane-dense
    pe = sinusoidal_pe(L, D)
    hmask = head_block_mask()
    return mixer_forward_pallas(x, fm, pe, hmask, fused)


if __name__ == "__main__":
    key = jax.random.PRNGKey(0)
    pkey, tkey = jax.random.split(key)
    params = init_params(pkey)
    fused = fuse_params(params)          # one-time host-side weight prep

    tokens = jax.random.randint(tkey, (B, L), 0, VOCAB)        # (B, L) ints
    lengths = jnp.array([L, L - 4])
    pad_mask = jnp.arange(L)[None, :] >= lengths[:, None]      # True = padding

    fwd = jax.jit(mixer_each_chr_forward)
    out = fwd(tokens, pad_mask, params["embed"], fused)
    out = jax.block_until_ready(out)

    assert out.shape == (B, L, D), out.shape
    assert bool(jnp.all(jnp.isfinite(out)))
    print("KERNEL_OK")
</pallas_src>

<mosaic_0001>
module attributes {stable_mosaic.version = 11 : i64} {
  func.func @fused_mixer_kernel(%arg0: i32, %arg1: memref<1x16x32xf32, #tpu.memory_space<vmem>>, %arg2: memref<1x16x32xf32, #tpu.memory_space<vmem>>, %arg3: memref<16x32xf32, #tpu.memory_space<vmem>>, %arg4: memref<32x32xf32, #tpu.memory_space<vmem>>, %arg5: memref<2x1x32xf32, #tpu.memory_space<vmem>>, %arg6: memref<2x1x32xf32, #tpu.memory_space<vmem>>, %arg7: memref<2x32x32xf32, #tpu.memory_space<vmem>>, %arg8: memref<2x1x32xf32, #tpu.memory_space<vmem>>, %arg9: memref<2x32x32xf32, #tpu.memory_space<vmem>>, %arg10: memref<2x1x32xf32, #tpu.memory_space<vmem>>, %arg11: memref<2x32x32xf32, #tpu.memory_space<vmem>>, %arg12: memref<2x1x32xf32, #tpu.memory_space<vmem>>, %arg13: memref<2x32x32xf32, #tpu.memory_space<vmem>>, %arg14: memref<2x1x32xf32, #tpu.memory_space<vmem>>, %arg15: memref<2x1x32xf32, #tpu.memory_space<vmem>>, %arg16: memref<2x1x32xf32, #tpu.memory_space<vmem>>, %arg17: memref<2x1x32xf32, #tpu.memory_space<vmem>>, %arg18: memref<2x1x32xf32, #tpu.memory_space<vmem>>, %arg19: memref<2x32x64xf32, #tpu.memory_space<vmem>>, %arg20: memref<2x1x64xf32, #tpu.memory_space<vmem>>, %arg21: memref<2x64x32xf32, #tpu.memory_space<vmem>>, %arg22: memref<2x1x32xf32, #tpu.memory_space<vmem>>, %arg23: memref<1x32xf32, #tpu.memory_space<vmem>>, %arg24: memref<1x32xf32, #tpu.memory_space<vmem>>, %arg25: memref<1x16x32xf32, #tpu.memory_space<vmem>>) attributes {dimension_semantics = [#tpu.dimension_semantics<parallel>], iteration_bounds = array<i64: 2>, scalar_prefetch = 0 : i64, scratch_operands = 0 : i64, tpu.core_type = #tpu.core_type<tc>, window_params = [{transform_indices = @transform_0, window_bounds = array<i64: 1, 16, 32>}, {transform_indices = @transform_1, window_bounds = array<i64: 1, 16, 32>}, {pipeline_mode = #tpu.pipeline_mode<synchronous>, transform_indices = @transform_2, window_bounds = array<i64: 16, 32>}, {pipeline_mode = #tpu.pipeline_mode<synchronous>, transform_indices = @transform_3, window_bounds = array<i64: 32, 32>}, {pipeline_mode = #tpu.pipeline_mode<synchronous>, transform_indices = @transform_4, window_bounds = array<i64: 2, 1, 32>}, {pipeline_mode = #tpu.pipeline_mode<synchronous>, transform_indices = @transform_5, window_bounds = array<i64: 2, 1, 32>}, {pipeline_mode = #tpu.pipeline_mode<synchronous>, transform_indices = @transform_6, window_bounds = array<i64: 2, 32, 32>}, {pipeline_mode = #tpu.pipeline_mode<synchronous>, transform_indices = @transform_7, window_bounds = array<i64: 2, 1, 32>}, {pipeline_mode = #tpu.pipeline_mode<synchronous>, transform_indices = @transform_8, window_bounds = array<i64: 2, 32, 32>}, {pipeline_mode = #tpu.pipeline_mode<synchronous>, transform_indices = @transform_9, window_bounds = array<i64: 2, 1, 32>}, {pipeline_mode = #tpu.pipeline_mode<synchronous>, transform_indices = @transform_10, window_bounds = array<i64: 2, 32, 32>}, {pipeline_mode = #tpu.pipeline_mode<synchronous>, transform_indices = @transform_11, window_bounds = array<i64: 2, 1, 32>}, {pipeline_mode = #tpu.pipeline_mode<synchronous>, transform_indices = @transform_12, window_bounds = array<i64: 2, 32, 32>}, {pipeline_mode = #tpu.pipeline_mode<synchronous>, transform_indices = @transform_13, window_bounds = array<i64: 2, 1, 32>}, {pipeline_mode = #tpu.pipeline_mode<synchronous>, transform_indices = @transform_14, window_bounds = array<i64: 2, 1, 32>}, {pipeline_mode = #tpu.pipeline_mode<synchronous>, transform_indices = @transform_15, window_bounds = array<i64: 2, 1, 32>}, {pipeline_mode = #tpu.pipeline_mode<synchronous>, transform_indices = @transform_16, window_bounds = array<i64: 2, 1, 32>}, {pipeline_mode = #tpu.pipeline_mode<synchronous>, transform_indices = @transform_17, window_bounds = array<i64: 2, 1, 32>}, {pipeline_mode = #tpu.pipeline_mode<synchronous>, transform_indices = @transform_18, window_bounds = array<i64: 2, 32, 64>}, {pipeline_mode = #tpu.pipeline_mode<synchronous>, transform_indices = @transform_19, window_bounds = array<i64: 2, 1, 64>}, {pipeline_mode = #tpu.pipeline_mode<synchronous>, transform_indices = @transform_20, window_bounds = array<i64: 2, 64, 32>}, {pipeline_mode = #tpu.pipeline_mode<synchronous>, transform_indices = @transform_21, window_bounds = array<i64: 2, 1, 32>}, {pipeline_mode = #tpu.pipeline_mode<synchronous>, transform_indices = @transform_22, window_bounds = array<i64: 1, 32>}, {pipeline_mode = #tpu.pipeline_mode<synchronous>, transform_indices = @transform_23, window_bounds = array<i64: 1, 32>}, {transform_indices = @transform_24, window_bounds = array<i64: 1, 16, 32>}]} {
    %c0 = arith.constant 0 : index
    %c0_0 = arith.constant 0 : index
    %c0_1 = arith.constant 0 : index
    %0 = vector.load %arg1[%c0, %c0_0, %c0_1] : memref<1x16x32xf32, #tpu.memory_space<vmem>>, vector<1x16x32xf32>
    %1 = vector.shape_cast %0 : vector<1x16x32xf32> to vector<16x32xf32>
    %c0_2 = arith.constant 0 : index
    %c0_3 = arith.constant 0 : index
    %c0_4 = arith.constant 0 : index
    %2 = vector.load %arg2[%c0_2, %c0_3, %c0_4] : memref<1x16x32xf32, #tpu.memory_space<vmem>>, vector<1x16x32xf32>
    %3 = vector.shape_cast %2 : vector<1x16x32xf32> to vector<16x32xf32>
    %c0_5 = arith.constant 0 : index
    %c0_6 = arith.constant 0 : index
    %4 = vector.load %arg3[%c0_5, %c0_6] : memref<16x32xf32, #tpu.memory_space<vmem>>, vector<16x32xf32>
    %c0_7 = arith.constant 0 : index
    %c0_8 = arith.constant 0 : index
    %5 = vector.load %arg4[%c0_7, %c0_8] : memref<32x32xf32, #tpu.memory_space<vmem>>, vector<32x32xf32>
    %c0_9 = arith.constant 0 : index
    %c0_10 = arith.constant 0 : index
    %c0_11 = arith.constant 0 : index
    %6 = vector.load %arg5[%c0_9, %c0_10, %c0_11] : memref<2x1x32xf32, #tpu.memory_space<vmem>>, vector<1x1x32xf32>
    %7 = vector.shape_cast %6 : vector<1x1x32xf32> to vector<1x32xf32>
    %c0_12 = arith.constant 0 : index
    %c0_13 = arith.constant 0 : index
    %c0_14 = arith.constant 0 : index
    %8 = vector.load %arg6[%c0_12, %c0_13, %c0_14] : memref<2x1x32xf32, #tpu.memory_space<vmem>>, vector<1x1x32xf32>
    %9 = vector.shape_cast %8 : vector<1x1x32xf32> to vector<1x32xf32>
    %cst = arith.constant dense<0.000000e+00> : vector<16xf32>
    %10 = vector.multi_reduction <add>, %1, %cst [1] : vector<16x32xf32> to vector<16xf32>
    %11 = vector.shape_cast %10 : vector<16xf32> to vector<16x1xf32>
    %cst_15 = arith.constant 3.200000e+01 : f32
    %12 = vector.broadcast %cst_15 : f32 to vector<16x1xf32>
    %13 = arith.divf %11, %12 : vector<16x1xf32>
    %14 = vector.broadcast %13 : vector<16x1xf32> to vector<16x32xf32>
    %15 = arith.subf %1, %14 : vector<16x32xf32>
    %16 = arith.mulf %15, %15 : vector<16x32xf32>
    %cst_16 = arith.constant dense<0.000000e+00> : vector<16xf32>
    %17 = vector.multi_reduction <add>, %16, %cst_16 [1] : vector<16x32xf32> to vector<16xf32>
    %18 = vector.shape_cast %17 : vector<16xf32> to vector<16x1xf32>
    %cst_17 = arith.constant 3.200000e+01 : f32
    %19 = vector.broadcast %cst_17 : f32 to vector<16x1xf32>
    %20 = arith.divf %18, %19 : vector<16x1xf32>
    %21 = vector.broadcast %13 : vector<16x1xf32> to vector<16x32xf32>
    %22 = arith.subf %1, %21 : vector<16x32xf32>
    %cst_18 = arith.constant 9.99999974E-6 : f32
    %23 = vector.broadcast %cst_18 : f32 to vector<16x1xf32>
    %24 = arith.addf %20, %23 : vector<16x1xf32>
    %25 = math.rsqrt %24 : vector<16x1xf32>
    %26 = vector.broadcast %25 : vector<16x1xf32> to vector<16x32xf32>
    %27 = arith.mulf %22, %26 : vector<16x32xf32>
    %28 = vector.broadcast %7 : vector<1x32xf32> to vector<16x32xf32>
    %29 = arith.mulf %27, %28 : vector<16x32xf32>
    %30 = vector.broadcast %9 : vector<1x32xf32> to vector<16x32xf32>
    %31 = arith.addf %29, %30 : vector<16x32xf32>
    %32 = arith.mulf %31, %3 : vector<16x32xf32>
    %33 = arith.addf %32, %4 : vector<16x32xf32>
    %c0_19 = arith.constant 0 : index
    %c0_20 = arith.constant 0 : index
    %c0_21 = arith.constant 0 : index
    %34 = vector.load %arg7[%c0_19, %c0_20, %c0_21] : memref<2x32x32xf32, #tpu.memory_space<vmem>>, vector<1x32x32xf32>
    %35 = vector.shape_cast %34 : vector<1x32x32xf32> to vector<32x32xf32>
    %cst_22 = arith.constant dense<0.000000e+00> : vector<16x32xf32>
    %36 = tpu.matmul %33, %35, %cst_22 {dimension_numbers = #tpu.dot_dimension_numbers<[1], [0], [0], [1], [0, 0, 1, 1], [], []>} : vector<16x32xf32>, vector<32x32xf32>, vector<16x32xf32> -> vector<16x32xf32>
    %c0_23 = arith.constant 0 : index
    %c0_24 = arith.constant 0 : index
    %c0_25 = arith.constant 0 : index
    %37 = vector.load %arg8[%c0_23, %c0_24, %c0_25] : memref<2x1x32xf32, #tpu.memory_space<vmem>>, vector<1x1x32xf32>
    %38 = vector.shape_cast %37 : vector<1x1x32xf32> to vector<1x32xf32>
    %39 = vector.broadcast %38 : vector<1x32xf32> to vector<16x32xf32>
    %40 = arith.addf %36, %39 : vector<16x32xf32>
    %cst_26 = arith.constant 5.000000e-01 : f32
    %41 = vector.broadcast %cst_26 : f32 to vector<16x32xf32>
    %42 = arith.mulf %41, %40 : vector<16x32xf32>
    %cst_27 = arith.constant 0.707106769 : f32
    %43 = vector.broadcast %cst_27 : f32 to vector<16x32xf32>
    %44 = arith.mulf %40, %43 : vector<16x32xf32>
    %45 = math.absf %44 : vector<16x32xf32>
    %cst_28 = arith.constant 0.327591091 : f32
    %46 = vector.broadcast %cst_28 : f32 to vector<16x32xf32>
    %47 = arith.mulf %46, %45 : vector<16x32xf32>
    %cst_29 = arith.constant 1.000000e+00 : f32
    %48 = vector.broadcast %cst_29 : f32 to vector<16x32xf32>
    %49 = arith.addf %48, %47 : vector<16x32xf32>
    %cst_30 = arith.constant 1.000000e+00 : f32
    %50 = vector.broadcast %cst_30 : f32 to vector<16x32xf32>
    %51 = arith.divf %50, %49 : vector<16x32xf32>
    %cst_31 = arith.constant 1.06140542 : f32
    %52 = vector.broadcast %cst_31 : f32 to vector<16x32xf32>
    %53 = arith.mulf %52, %51 : vector<16x32xf32>
    %cst_32 = arith.constant -1.45315206 : f32
    %54 = vector.broadcast %cst_32 : f32 to vector<16x32xf32>
    %55 = arith.addf %53, %54 : vector<16x32xf32>
    %56 = arith.mulf %55, %51 : vector<16x32xf32>
    %cst_33 = arith.constant 1.42141378 : f32
    %57 = vector.broadcast %cst_33 : f32 to vector<16x32xf32>
    %58 = arith.addf %56, %57 : vector<16x32xf32>
    %59 = arith.mulf %58, %51 : vector<16x32xf32>
    %cst_34 = arith.constant -0.284496725 : f32
    %60 = vector.broadcast %cst_34 : f32 to vector<16x32xf32>
    %61 = arith.addf %59, %60 : vector<16x32xf32>
    %62 = arith.mulf %61, %51 : vector<16x32xf32>
    %cst_35 = arith.constant 0.254829586 : f32
    %63 = vector.broadcast %cst_35 : f32 to vector<16x32xf32>
    %64 = arith.addf %62, %63 : vector<16x32xf32>
    %65 = arith.mulf %64, %51 : vector<16x32xf32>
    %cst_36 = arith.constant 0.000000e+00 : f32
    %66 = vector.broadcast %cst_36 : f32 to vector<16x32xf32>
    %67 = arith.subf %66, %45 : vector<16x32xf32>
    %68 = arith.mulf %67, %45 : vector<16x32xf32>
    %69 = math.exp %68 : vector<16x32xf32>
    %70 = arith.mulf %65, %69 : vector<16x32xf32>
    %cst_37 = arith.constant 1.000000e+00 : f32
    %71 = vector.broadcast %cst_37 : f32 to vector<16x32xf32>
    %72 = arith.subf %71, %70 : vector<16x32xf32>
    %cst_38 = arith.constant 0.000000e+00 : f32
    %73 = vector.broadcast %cst_38 : f32 to vector<16x32xf32>
    %74 = arith.cmpf oge, %44, %73 : vector<16x32xf32>
    %cst_39 = arith.constant 0.000000e+00 : f32
    %75 = vector.broadcast %cst_39 : f32 to vector<16x32xf32>
    %76 = arith.subf %75, %72 : vector<16x32xf32>
    %77 = arith.select %74, %72, %76 : vector<16x32xi1>, vector<16x32xf32>
    %cst_40 = arith.constant 1.000000e+00 : f32
    %78 = vector.broadcast %cst_40 : f32 to vector<16x32xf32>
    %79 = arith.addf %78, %77 : vector<16x32xf32>
    %80 = arith.mulf %42, %79 : vector<16x32xf32>
    %c0_41 = arith.constant 0 : index
    %c0_42 = arith.constant 0 : index
    %c0_43 = arith.constant 0 : index
    %81 = vector.load %arg9[%c0_41, %c0_42, %c0_43] : memref<2x32x32xf32, #tpu.memory_space<vmem>>, vector<1x32x32xf32>
    %82 = vector.shape_cast %81 : vector<1x32x32xf32> to vector<32x32xf32>
    %cst_44 = arith.constant dense<0.000000e+00> : vector<16x32xf32>
    %83 = tpu.matmul %80, %82, %cst_44 {dimension_numbers = #tpu.dot_dimension_numbers<[1], [0], [0], [1], [0, 0, 1, 1], [], []>} : vector<16x32xf32>, vector<32x32xf32>, vector<16x32xf32> -> vector<16x32xf32>
    %c0_45 = arith.constant 0 : index
    %c0_46 = arith.constant 0 : index
    %c0_47 = arith.constant 0 : index
    %84 = vector.load %arg10[%c0_45, %c0_46, %c0_47] : memref<2x1x32xf32, #tpu.memory_space<vmem>>, vector<1x1x32xf32>
    %85 = vector.shape_cast %84 : vector<1x1x32xf32> to vector<1x32xf32>
    %86 = vector.broadcast %85 : vector<1x32xf32> to vector<16x32xf32>
    %87 = arith.addf %83, %86 : vector<16x32xf32>
    %88 = arith.mulf %87, %3 : vector<16x32xf32>
    %c0_48 = arith.constant 0 : index
    %c0_49 = arith.constant 0 : index
    %c0_50 = arith.constant 0 : index
    %89 = vector.load %arg11[%c0_48, %c0_49, %c0_50] : memref<2x32x32xf32, #tpu.memory_space<vmem>>, vector<1x32x32xf32>
    %90 = vector.shape_cast %89 : vector<1x32x32xf32> to vector<32x32xf32>
    %cst_51 = arith.constant dense<0.000000e+00> : vector<16x32xf32>
    %91 = tpu.matmul %33, %90, %cst_51 {dimension_numbers = #tpu.dot_dimension_numbers<[1], [0], [0], [1], [0, 0, 1, 1], [], []>} : vector<16x32xf32>, vector<32x32xf32>, vector<16x32xf32> -> vector<16x32xf32>
    %c0_52 = arith.constant 0 : index
    %c0_53 = arith.constant 0 : index
    %c0_54 = arith.constant 0 : index
    %92 = vector.load %arg12[%c0_52, %c0_53, %c0_54] : memref<2x1x32xf32, #tpu.memory_space<vmem>>, vector<1x1x32xf32>
    %93 = vector.shape_cast %92 : vector<1x1x32xf32> to vector<1x32xf32>
    %94 = vector.broadcast %93 : vector<1x32xf32> to vector<16x32xf32>
    %95 = arith.addf %91, %94 : vector<16x32xf32>
    %cst_55 = arith.constant 5.000000e-01 : f32
    %96 = vector.broadcast %cst_55 : f32 to vector<16x32xf32>
    %97 = arith.mulf %96, %95 : vector<16x32xf32>
    %cst_56 = arith.constant 0.707106769 : f32
    %98 = vector.broadcast %cst_56 : f32 to vector<16x32xf32>
    %99 = arith.mulf %95, %98 : vector<16x32xf32>
    %100 = math.absf %99 : vector<16x32xf32>
    %cst_57 = arith.constant 0.327591091 : f32
    %101 = vector.broadcast %cst_57 : f32 to vector<16x32xf32>
    %102 = arith.mulf %101, %100 : vector<16x32xf32>
    %cst_58 = arith.constant 1.000000e+00 : f32
    %103 = vector.broadcast %cst_58 : f32 to vector<16x32xf32>
    %104 = arith.addf %103, %102 : vector<16x32xf32>
    %cst_59 = arith.constant 1.000000e+00 : f32
    %105 = vector.broadcast %cst_59 : f32 to vector<16x32xf32>
    %106 = arith.divf %105, %104 : vector<16x32xf32>
    %cst_60 = arith.constant 1.06140542 : f32
    %107 = vector.broadcast %cst_60 : f32 to vector<16x32xf32>
    %108 = arith.mulf %107, %106 : vector<16x32xf32>
    %cst_61 = arith.constant -1.45315206 : f32
    %109 = vector.broadcast %cst_61 : f32 to vector<16x32xf32>
    %110 = arith.addf %108, %109 : vector<16x32xf32>
    %111 = arith.mulf %110, %106 : vector<16x32xf32>
    %cst_62 = arith.constant 1.42141378 : f32
    %112 = vector.broadcast %cst_62 : f32 to vector<16x32xf32>
    %113 = arith.addf %111, %112 : vector<16x32xf32>
    %114 = arith.mulf %113, %106 : vector<16x32xf32>
    %cst_63 = arith.constant -0.284496725 : f32
    %115 = vector.broadcast %cst_63 : f32 to vector<16x32xf32>
    %116 = arith.addf %114, %115 : vector<16x32xf32>
    %117 = arith.mulf %116, %106 : vector<16x32xf32>
    %cst_64 = arith.constant 0.254829586 : f32
    %118 = vector.broadcast %cst_64 : f32 to vector<16x32xf32>
    %119 = arith.addf %117, %118 : vector<16x32xf32>
    %120 = arith.mulf %119, %106 : vector<16x32xf32>
    %cst_65 = arith.constant 0.000000e+00 : f32
    %121 = vector.broadcast %cst_65 : f32 to vector<16x32xf32>
    %122 = arith.subf %121, %100 : vector<16x32xf32>
    %123 = arith.mulf %122, %100 : vector<16x32xf32>
    %124 = math.exp %123 : vector<16x32xf32>
    %125 = arith.mulf %120, %124 : vector<16x32xf32>
    %cst_66 = arith.constant 1.000000e+00 : f32
    %126 = vector.broadcast %cst_66 : f32 to vector<16x32xf32>
    %127 = arith.subf %126, %125 : vector<16x32xf32>
    %cst_67 = arith.constant 0.000000e+00 : f32
    %128 = vector.broadcast %cst_67 : f32 to vector<16x32xf32>
    %129 = arith.cmpf oge, %99, %128 : vector<16x32xf32>
    %cst_68 = arith.constant 0.000000e+00 : f32
    %130 = vector.broadcast %cst_68 : f32 to vector<16x32xf32>
    %131 = arith.subf %130, %127 : vector<16x32xf32>
    %132 = arith.select %129, %127, %131 : vector<16x32xi1>, vector<16x32xf32>
    %cst_69 = arith.constant 1.000000e+00 : f32
    %133 = vector.broadcast %cst_69 : f32 to vector<16x32xf32>
    %134 = arith.addf %133, %132 : vector<16x32xf32>
    %135 = arith.mulf %97, %134 : vector<16x32xf32>
    %c0_70 = arith.constant 0 : index
    %c0_71 = arith.constant 0 : index
    %c0_72 = arith.constant 0 : index
    %136 = vector.load %arg13[%c0_70, %c0_71, %c0_72] : memref<2x32x32xf32, #tpu.memory_space<vmem>>, vector<1x32x32xf32>
    %137 = vector.shape_cast %136 : vector<1x32x32xf32> to vector<32x32xf32>
    %cst_73 = arith.constant dense<0.000000e+00> : vector<16x32xf32>
    %138 = tpu.matmul %135, %137, %cst_73 {dimension_numbers = #tpu.dot_dimension_numbers<[1], [0], [0], [1], [0, 0, 1, 1], [], []>} : vector<16x32xf32>, vector<32x32xf32>, vector<16x32xf32> -> vector<16x32xf32>
    %c0_74 = arith.constant 0 : index
    %c0_75 = arith.constant 0 : index
    %c0_76 = arith.constant 0 : index
    %139 = vector.load %arg14[%c0_74, %c0_75, %c0_76] : memref<2x1x32xf32, #tpu.memory_space<vmem>>, vector<1x1x32xf32>
    %140 = vector.shape_cast %139 : vector<1x1x32xf32> to vector<1x32xf32>
    %141 = vector.broadcast %140 : vector<1x32xf32> to vector<16x32xf32>
    %142 = arith.addf %138, %141 : vector<16x32xf32>
    %143 = arith.mulf %142, %3 : vector<16x32xf32>
    %cst_77 = arith.constant dense<0.000000e+00> : vector<32x32xf32>
    %144 = tpu.matmul %88, %32, %cst_77 {dimension_numbers = #tpu.dot_dimension_numbers<[0], [0], [1], [1], [0, 1, 1, 1], [], []>} : vector<16x32xf32>, vector<16x32xf32>, vector<32x32xf32> -> vector<32x32xf32>
    %cst_78 = arith.constant 5.000000e-01 : f32
    %145 = vector.broadcast %cst_78 : f32 to vector<32x32xf32>
    %146 = arith.mulf %145, %144 : vector<32x32xf32>
    %cst_79 = arith.constant 0.707106769 : f32
    %147 = vector.broadcast %cst_79 : f32 to vector<32x32xf32>
    %148 = arith.mulf %144, %147 : vector<32x32xf32>
    %149 = math.absf %148 : vector<32x32xf32>
    %cst_80 = arith.constant 0.327591091 : f32
    %150 = vector.broadcast %cst_80 : f32 to vector<32x32xf32>
    %151 = arith.mulf %150, %149 : vector<32x32xf32>
    %cst_81 = arith.constant 1.000000e+00 : f32
    %152 = vector.broadcast %cst_81 : f32 to vector<32x32xf32>
    %153 = arith.addf %152, %151 : vector<32x32xf32>
    %cst_82 = arith.constant 1.000000e+00 : f32
    %154 = vector.broadcast %cst_82 : f32 to vector<32x32xf32>
    %155 = arith.divf %154, %153 : vector<32x32xf32>
    %cst_83 = arith.constant 1.06140542 : f32
    %156 = vector.broadcast %cst_83 : f32 to vector<32x32xf32>
    %157 = arith.mulf %156, %155 : vector<32x32xf32>
    %cst_84 = arith.constant -1.45315206 : f32
    %158 = vector.broadcast %cst_84 : f32 to vector<32x32xf32>
    %159 = arith.addf %157, %158 : vector<32x32xf32>
    %160 = arith.mulf %159, %155 : vector<32x32xf32>
    %cst_85 = arith.constant 1.42141378 : f32
    %161 = vector.broadcast %cst_85 : f32 to vector<32x32xf32>
    %162 = arith.addf %160, %161 : vector<32x32xf32>
    %163 = arith.mulf %162, %155 : vector<32x32xf32>
    %cst_86 = arith.constant -0.284496725 : f32
    %164 = vector.broadcast %cst_86 : f32 to vector<32x32xf32>
    %165 = arith.addf %163, %164 : vector<32x32xf32>
    %166 = arith.mulf %165, %155 : vector<32x32xf32>
    %cst_87 = arith.constant 0.254829586 : f32
    %167 = vector.broadcast %cst_87 : f32 to vector<32x32xf32>
    %168 = arith.addf %166, %167 : vector<32x32xf32>
    %169 = arith.mulf %168, %155 : vector<32x32xf32>
    %cst_88 = arith.constant 0.000000e+00 : f32
    %170 = vector.broadcast %cst_88 : f32 to vector<32x32xf32>
    %171 = arith.subf %170, %149 : vector<32x32xf32>
    %172 = arith.mulf %171, %149 : vector<32x32xf32>
    %173 = math.exp %172 : vector<32x32xf32>
    %174 = arith.mulf %169, %173 : vector<32x32xf32>
    %cst_89 = arith.constant 1.000000e+00 : f32
    %175 = vector.broadcast %cst_89 : f32 to vector<32x32xf32>
    %176 = arith.subf %175, %174 : vector<32x32xf32>
    %cst_90 = arith.constant 0.000000e+00 : f32
    %177 = vector.broadcast %cst_90 : f32 to vector<32x32xf32>
    %178 = arith.cmpf oge, %148, %177 : vector<32x32xf32>
    %cst_91 = arith.constant 0.000000e+00 : f32
    %179 = vector.broadcast %cst_91 : f32 to vector<32x32xf32>
    %180 = arith.subf %179, %176 : vector<32x32xf32>
    %181 = arith.select %178, %176, %180 : vector<32x32xi1>, vector<32x32xf32>
    %cst_92 = arith.constant 1.000000e+00 : f32
    %182 = vector.broadcast %cst_92 : f32 to vector<32x32xf32>
    %183 = arith.addf %182, %181 : vector<32x32xf32>
    %184 = arith.mulf %146, %183 : vector<32x32xf32>
    %185 = arith.mulf %184, %5 : vector<32x32xf32>
    %cst_93 = arith.constant dense<0.000000e+00> : vector<16x32xf32>
    %186 = tpu.matmul %143, %185, %cst_93 {dimension_numbers = #tpu.dot_dimension_numbers<[1], [0], [0], [1], [0, 0, 1, 1], [], []>} : vector<16x32xf32>, vector<32x32xf32>, vector<16x32xf32> -> vector<16x32xf32>
    %c0_94 = arith.constant 0 : index
    %c0_95 = arith.constant 0 : index
    %c0_96 = arith.constant 0 : index
    %187 = vector.load %arg15[%c0_94, %c0_95, %c0_96] : memref<2x1x32xf32, #tpu.memory_space<vmem>>, vector<1x1x32xf32>
    %188 = vector.shape_cast %187 : vector<1x1x32xf32> to vector<1x32xf32>
    %c0_97 = arith.constant 0 : index
    %c0_98 = arith.constant 0 : index
    %c0_99 = arith.constant 0 : index
    %189 = vector.load %arg16[%c0_97, %c0_98, %c0_99] : memref<2x1x32xf32, #tpu.memory_space<vmem>>, vector<1x1x32xf32>
    %190 = vector.shape_cast %189 : vector<1x1x32xf32> to vector<1x32xf32>
    %cst_100 = arith.constant dense<0.000000e+00> : vector<16xf32>
    %191 = vector.multi_reduction <add>, %186, %cst_100 [1] : vector<16x32xf32> to vector<16xf32>
    %192 = vector.shape_cast %191 : vector<16xf32> to vector<16x1xf32>
    %cst_101 = arith.constant 3.200000e+01 : f32
    %193 = vector.broadcast %cst_101 : f32 to vector<16x1xf32>
    %194 = arith.divf %192, %193 : vector<16x1xf32>
    %195 = vector.broadcast %194 : vector<16x1xf32> to vector<16x32xf32>
    %196 = arith.subf %186, %195 : vector<16x32xf32>
    %197 = arith.mulf %196, %196 : vector<16x32xf32>
    %cst_102 = arith.constant dense<0.000000e+00> : vector<16xf32>
    %198 = vector.multi_reduction <add>, %197, %cst_102 [1] : vector<16x32xf32> to vector<16xf32>
    %199 = vector.shape_cast %198 : vector<16xf32> to vector<16x1xf32>
    %cst_103 = arith.constant 3.200000e+01 : f32
    %200 = vector.broadcast %cst_103 : f32 to vector<16x1xf32>
    %201 = arith.divf %199, %200 : vector<16x1xf32>
    %202 = vector.broadcast %194 : vector<16x1xf32> to vector<16x32xf32>
    %203 = arith.subf %186, %202 : vector<16x32xf32>
    %cst_104 = arith.constant 9.99999974E-6 : f32
    %204 = vector.broadcast %cst_104 : f32 to vector<16x1xf32>
    %205 = arith.addf %201, %204 : vector<16x1xf32>
    %206 = math.rsqrt %205 : vector<16x1xf32>
    %207 = vector.broadcast %206 : vector<16x1xf32> to vector<16x32xf32>
    %208 = arith.mulf %203, %207 : vector<16x32xf32>
    %209 = vector.broadcast %188 : vector<1x32xf32> to vector<16x32xf32>
    %210 = arith.mulf %208, %209 : vector<16x32xf32>
    %211 = vector.broadcast %190 : vector<1x32xf32> to vector<16x32xf32>
    %212 = arith.addf %210, %211 : vector<16x32xf32>
    %213 = arith.addf %1, %212 : vector<16x32xf32>
    %c0_105 = arith.constant 0 : index
    %c0_106 = arith.constant 0 : index
    %c0_107 = arith.constant 0 : index
    %214 = vector.load %arg17[%c0_105, %c0_106, %c0_107] : memref<2x1x32xf32, #tpu.memory_space<vmem>>, vector<1x1x32xf32>
    %215 = vector.shape_cast %214 : vector<1x1x32xf32> to vector<1x32xf32>
    %c0_108 = arith.constant 0 : index
    %c0_109 = arith.constant 0 : index
    %c0_110 = arith.constant 0 : index
    %216 = vector.load %arg18[%c0_108, %c0_109, %c0_110] : memref<2x1x32xf32, #tpu.memory_space<vmem>>, vector<1x1x32xf32>
    %217 = vector.shape_cast %216 : vector<1x1x32xf32> to vector<1x32xf32>
    %cst_111 = arith.constant dense<0.000000e+00> : vector<16xf32>
    %218 = vector.multi_reduction <add>, %213, %cst_111 [1] : vector<16x32xf32> to vector<16xf32>
    %219 = vector.shape_cast %218 : vector<16xf32> to vector<16x1xf32>
    %cst_112 = arith.constant 3.200000e+01 : f32
    %220 = vector.broadcast %cst_112 : f32 to vector<16x1xf32>
    %221 = arith.divf %219, %220 : vector<16x1xf32>
    %222 = vector.broadcast %221 : vector<16x1xf32> to vector<16x32xf32>
    %223 = arith.subf %213, %222 : vector<16x32xf32>
    %224 = arith.mulf %223, %223 : vector<16x32xf32>
    %cst_113 = arith.constant dense<0.000000e+00> : vector<16xf32>
    %225 = vector.multi_reduction <add>, %224, %cst_113 [1] : vector<16x32xf32> to vector<16xf32>
    %226 = vector.shape_cast %225 : vector<16xf32> to vector<16x1xf32>
    %cst_114 = arith.constant 3.200000e+01 : f32
    %227 = vector.broadcast %cst_114 : f32 to vector<16x1xf32>
    %228 = arith.divf %226, %227 : vector<16x1xf32>
    %229 = vector.broadcast %221 : vector<16x1xf32> to vector<16x32xf32>
    %230 = arith.subf %213, %229 : vector<16x32xf32>
    %cst_115 = arith.constant 9.99999974E-6 : f32
    %231 = vector.broadcast %cst_115 : f32 to vector<16x1xf32>
    %232 = arith.addf %228, %231 : vector<16x1xf32>
    %233 = math.rsqrt %232 : vector<16x1xf32>
    %234 = vector.broadcast %233 : vector<16x1xf32> to vector<16x32xf32>
    %235 = arith.mulf %230, %234 : vector<16x32xf32>
    %236 = vector.broadcast %215 : vector<1x32xf32> to vector<16x32xf32>
    %237 = arith.mulf %235, %236 : vector<16x32xf32>
    %238 = vector.broadcast %217 : vector<1x32xf32> to vector<16x32xf32>
    %239 = arith.addf %237, %238 : vector<16x32xf32>
    %c0_116 = arith.constant 0 : index
    %c0_117 = arith.constant 0 : index
    %c0_118 = arith.constant 0 : index
    %240 = vector.load %arg19[%c0_116, %c0_117, %c0_118] : memref<2x32x64xf32, #tpu.memory_space<vmem>>, vector<1x32x64xf32>
    %241 = vector.shape_cast %240 : vector<1x32x64xf32> to vector<32x64xf32>
    %cst_119 = arith.constant dense<0.000000e+00> : vector<16x64xf32>
    %242 = tpu.matmul %239, %241, %cst_119 {dimension_numbers = #tpu.dot_dimension_numbers<[1], [0], [0], [1], [0, 0, 1, 1], [], []>} : vector<16x32xf32>, vector<32x64xf32>, vector<16x64xf32> -> vector<16x64xf32>
    %c0_120 = arith.constant 0 : index
    %c0_121 = arith.constant 0 : index
    %c0_122 = arith.constant 0 : index
    %243 = vector.load %arg20[%c0_120, %c0_121, %c0_122] : memref<2x1x64xf32, #tpu.memory_space<vmem>>, vector<1x1x64xf32>
    %244 = vector.shape_cast %243 : vector<1x1x64xf32> to vector<1x64xf32>
    %245 = vector.broadcast %244 : vector<1x64xf32> to vector<16x64xf32>
    %246 = arith.addf %242, %245 : vector<16x64xf32>
    %cst_123 = arith.constant 5.000000e-01 : f32
    %247 = vector.broadcast %cst_123 : f32 to vector<16x64xf32>
    %248 = arith.mulf %247, %246 : vector<16x64xf32>
    %cst_124 = arith.constant 0.707106769 : f32
    %249 = vector.broadcast %cst_124 : f32 to vector<16x64xf32>
    %250 = arith.mulf %246, %249 : vector<16x64xf32>
    %251 = math.absf %250 : vector<16x64xf32>
    %cst_125 = arith.constant 0.327591091 : f32
    %252 = vector.broadcast %cst_125 : f32 to vector<16x64xf32>
    %253 = arith.mulf %252, %251 : vector<16x64xf32>
    %cst_126 = arith.constant 1.000000e+00 : f32
    %254 = vector.broadcast %cst_126 : f32 to vector<16x64xf32>
    %255 = arith.addf %254, %253 : vector<16x64xf32>
    %cst_127 = arith.constant 1.000000e+00 : f32
    %256 = vector.broadcast %cst_127 : f32 to vector<16x64xf32>
    %257 = arith.divf %256, %255 : vector<16x64xf32>
    %cst_128 = arith.constant 1.06140542 : f32
    %258 = vector.broadcast %cst_128 : f32 to vector<16x64xf32>
    %259 = arith.mulf %258, %257 : vector<16x64xf32>
    %cst_129 = arith.constant -1.45315206 : f32
    %260 = vector.broadcast %cst_129 : f32 to vector<16x64xf32>
    %261 = arith.addf %259, %260 : vector<16x64xf32>
    %262 = arith.mulf %261, %257 : vector<16x64xf32>
    %cst_130 = arith.constant 1.42141378 : f32
    %263 = vector.broadcast %cst_130 : f32 to vector<16x64xf32>
    %264 = arith.addf %262, %263 : vector<16x64xf32>
    %265 = arith.mulf %264, %257 : vector<16x64xf32>
    %cst_131 = arith.constant -0.284496725 : f32
    %266 = vector.broadcast %cst_131 : f32 to vector<16x64xf32>
    %267 = arith.addf %265, %266 : vector<16x64xf32>
    %268 = arith.mulf %267, %257 : vector<16x64xf32>
    %cst_132 = arith.constant 0.254829586 : f32
    %269 = vector.broadcast %cst_132 : f32 to vector<16x64xf32>
    %270 = arith.addf %268, %269 : vector<16x64xf32>
    %271 = arith.mulf %270, %257 : vector<16x64xf32>
    %cst_133 = arith.constant 0.000000e+00 : f32
    %272 = vector.broadcast %cst_133 : f32 to vector<16x64xf32>
    %273 = arith.subf %272, %251 : vector<16x64xf32>
    %274 = arith.mulf %273, %251 : vector<16x64xf32>
    %275 = math.exp %274 : vector<16x64xf32>
    %276 = arith.mulf %271, %275 : vector<16x64xf32>
    %cst_134 = arith.constant 1.000000e+00 : f32
    %277 = vector.broadcast %cst_134 : f32 to vector<16x64xf32>
    %278 = arith.subf %277, %276 : vector<16x64xf32>
    %cst_135 = arith.constant 0.000000e+00 : f32
    %279 = vector.broadcast %cst_135 : f32 to vector<16x64xf32>
    %280 = arith.cmpf oge, %250, %279 : vector<16x64xf32>
    %cst_136 = arith.constant 0.000000e+00 : f32
    %281 = vector.broadcast %cst_136 : f32 to vector<16x64xf32>
    %282 = arith.subf %281, %278 : vector<16x64xf32>
    %283 = arith.select %280, %278, %282 : vector<16x64xi1>, vector<16x64xf32>
    %cst_137 = arith.constant 1.000000e+00 : f32
    %284 = vector.broadcast %cst_137 : f32 to vector<16x64xf32>
    %285 = arith.addf %284, %283 : vector<16x64xf32>
    %286 = arith.mulf %248, %285 : vector<16x64xf32>
    %c0_138 = arith.constant 0 : index
    %c0_139 = arith.constant 0 : index
    %c0_140 = arith.constant 0 : index
    %287 = vector.load %arg21[%c0_138, %c0_139, %c0_140] : memref<2x64x32xf32, #tpu.memory_space<vmem>>, vector<1x64x32xf32>
    %288 = vector.shape_cast %287 : vector<1x64x32xf32> to vector<64x32xf32>
    %cst_141 = arith.constant dense<0.000000e+00> : vector<16x32xf32>
    %289 = tpu.matmul %286, %288, %cst_141 {dimension_numbers = #tpu.dot_dimension_numbers<[1], [0], [0], [1], [0, 0, 1, 1], [], []>} : vector<16x64xf32>, vector<64x32xf32>, vector<16x32xf32> -> vector<16x32xf32>
    %290 = arith.addf %213, %289 : vector<16x32xf32>
    %c0_142 = arith.constant 0 : index
    %c0_143 = arith.constant 0 : index
    %c0_144 = arith.constant 0 : index
    %291 = vector.load %arg22[%c0_142, %c0_143, %c0_144] : memref<2x1x32xf32, #tpu.memory_space<vmem>>, vector<1x1x32xf32>
    %292 = vector.shape_cast %291 : vector<1x1x32xf32> to vector<1x32xf32>
    %293 = vector.broadcast %292 : vector<1x32xf32> to vector<16x32xf32>
    %294 = arith.addf %290, %293 : vector<16x32xf32>
    %c1 = arith.constant 1 : index
    %c0_145 = arith.constant 0 : index
    %c0_146 = arith.constant 0 : index
    %295 = vector.load %arg5[%c1, %c0_145, %c0_146] : memref<2x1x32xf32, #tpu.memory_space<vmem>>, vector<1x1x32xf32>
    %296 = vector.shape_cast %295 : vector<1x1x32xf32> to vector<1x32xf32>
    %c1_147 = arith.constant 1 : index
    %c0_148 = arith.constant 0 : index
    %c0_149 = arith.constant 0 : index
    %297 = vector.load %arg6[%c1_147, %c0_148, %c0_149] : memref<2x1x32xf32, #tpu.memory_space<vmem>>, vector<1x1x32xf32>
    %298 = vector.shape_cast %297 : vector<1x1x32xf32> to vector<1x32xf32>
    %cst_150 = arith.constant dense<0.000000e+00> : vector<16xf32>
    %299 = vector.multi_reduction <add>, %294, %cst_150 [1] : vector<16x32xf32> to vector<16xf32>
    %300 = vector.shape_cast %299 : vector<16xf32> to vector<16x1xf32>
    %cst_151 = arith.constant 3.200000e+01 : f32
    %301 = vector.broadcast %cst_151 : f32 to vector<16x1xf32>
    %302 = arith.divf %300, %301 : vector<16x1xf32>
    %303 = vector.broadcast %302 : vector<16x1xf32> to vector<16x32xf32>
    %304 = arith.subf %294, %303 : vector<16x32xf32>
    %305 = arith.mulf %304, %304 : vector<16x32xf32>
    %cst_152 = arith.constant dense<0.000000e+00> : vector<16xf32>
    %306 = vector.multi_reduction <add>, %305, %cst_152 [1] : vector<16x32xf32> to vector<16xf32>
    %307 = vector.shape_cast %306 : vector<16xf32> to vector<16x1xf32>
    %cst_153 = arith.constant 3.200000e+01 : f32
    %308 = vector.broadcast %cst_153 : f32 to vector<16x1xf32>
    %309 = arith.divf %307, %308 : vector<16x1xf32>
    %310 = vector.broadcast %302 : vector<16x1xf32> to vector<16x32xf32>
    %311 = arith.subf %294, %310 : vector<16x32xf32>
    %cst_154 = arith.constant 9.99999974E-6 : f32
    %312 = vector.broadcast %cst_154 : f32 to vector<16x1xf32>
    %313 = arith.addf %309, %312 : vector<16x1xf32>
    %314 = math.rsqrt %313 : vector<16x1xf32>
    %315 = vector.broadcast %314 : vector<16x1xf32> to vector<16x32xf32>
    %316 = arith.mulf %311, %315 : vector<16x32xf32>
    %317 = vector.broadcast %296 : vector<1x32xf32> to vector<16x32xf32>
    %318 = arith.mulf %316, %317 : vector<16x32xf32>
    %319 = vector.broadcast %298 : vector<1x32xf32> to vector<16x32xf32>
    %320 = arith.addf %318, %319 : vector<16x32xf32>
    %321 = arith.mulf %320, %3 : vector<16x32xf32>
    %322 = arith.addf %321, %4 : vector<16x32xf32>
    %c1_155 = arith.constant 1 : index
    %c0_156 = arith.constant 0 : index
    %c0_157 = arith.constant 0 : index
    %323 = vector.load %arg7[%c1_155, %c0_156, %c0_157] : memref<2x32x32xf32, #tpu.memory_space<vmem>>, vector<1x32x32xf32>
    %324 = vector.shape_cast %323 : vector<1x32x32xf32> to vector<32x32xf32>
    %cst_158 = arith.constant dense<0.000000e+00> : vector<16x32xf32>
    %325 = tpu.matmul %322, %324, %cst_158 {dimension_numbers = #tpu.dot_dimension_numbers<[1], [0], [0], [1], [0, 0, 1, 1], [], []>} : vector<16x32xf32>, vector<32x32xf32>, vector<16x32xf32> -> vector<16x32xf32>
    %c1_159 = arith.constant 1 : index
    %c0_160 = arith.constant 0 : index
    %c0_161 = arith.constant 0 : index
    %326 = vector.load %arg8[%c1_159, %c0_160, %c0_161] : memref<2x1x32xf32, #tpu.memory_space<vmem>>, vector<1x1x32xf32>
    %327 = vector.shape_cast %326 : vector<1x1x32xf32> to vector<1x32xf32>
    %328 = vector.broadcast %327 : vector<1x32xf32> to vector<16x32xf32>
    %329 = arith.addf %325, %328 : vector<16x32xf32>
    %cst_162 = arith.constant 5.000000e-01 : f32
    %330 = vector.broadcast %cst_162 : f32 to vector<16x32xf32>
    %331 = arith.mulf %330, %329 : vector<16x32xf32>
    %cst_163 = arith.constant 0.707106769 : f32
    %332 = vector.broadcast %cst_163 : f32 to vector<16x32xf32>
    %333 = arith.mulf %329, %332 : vector<16x32xf32>
    %334 = math.absf %333 : vector<16x32xf32>
    %cst_164 = arith.constant 0.327591091 : f32
    %335 = vector.broadcast %cst_164 : f32 to vector<16x32xf32>
    %336 = arith.mulf %335, %334 : vector<16x32xf32>
    %cst_165 = arith.constant 1.000000e+00 : f32
    %337 = vector.broadcast %cst_165 : f32 to vector<16x32xf32>
    %338 = arith.addf %337, %336 : vector<16x32xf32>
    %cst_166 = arith.constant 1.000000e+00 : f32
    %339 = vector.broadcast %cst_166 : f32 to vector<16x32xf32>
    %340 = arith.divf %339, %338 : vector<16x32xf32>
    %cst_167 = arith.constant 1.06140542 : f32
    %341 = vector.broadcast %cst_167 : f32 to vector<16x32xf32>
    %342 = arith.mulf %341, %340 : vector<16x32xf32>
    %cst_168 = arith.constant -1.45315206 : f32
    %343 = vector.broadcast %cst_168 : f32 to vector<16x32xf32>
    %344 = arith.addf %342, %343 : vector<16x32xf32>
    %345 = arith.mulf %344, %340 : vector<16x32xf32>
    %cst_169 = arith.constant 1.42141378 : f32
    %346 = vector.broadcast %cst_169 : f32 to vector<16x32xf32>
    %347 = arith.addf %345, %346 : vector<16x32xf32>
    %348 = arith.mulf %347, %340 : vector<16x32xf32>
    %cst_170 = arith.constant -0.284496725 : f32
    %349 = vector.broadcast %cst_170 : f32 to vector<16x32xf32>
    %350 = arith.addf %348, %349 : vector<16x32xf32>
    %351 = arith.mulf %350, %340 : vector<16x32xf32>
    %cst_171 = arith.constant 0.254829586 : f32
    %352 = vector.broadcast %cst_171 : f32 to vector<16x32xf32>
    %353 = arith.addf %351, %352 : vector<16x32xf32>
    %354 = arith.mulf %353, %340 : vector<16x32xf32>
    %cst_172 = arith.constant 0.000000e+00 : f32
    %355 = vector.broadcast %cst_172 : f32 to vector<16x32xf32>
    %356 = arith.subf %355, %334 : vector<16x32xf32>
    %357 = arith.mulf %356, %334 : vector<16x32xf32>
    %358 = math.exp %357 : vector<16x32xf32>
    %359 = arith.mulf %354, %358 : vector<16x32xf32>
    %cst_173 = arith.constant 1.000000e+00 : f32
    %360 = vector.broadcast %cst_173 : f32 to vector<16x32xf32>
    %361 = arith.subf %360, %359 : vector<16x32xf32>
    %cst_174 = arith.constant 0.000000e+00 : f32
    %362 = vector.broadcast %cst_174 : f32 to vector<16x32xf32>
    %363 = arith.cmpf oge, %333, %362 : vector<16x32xf32>
    %cst_175 = arith.constant 0.000000e+00 : f32
    %364 = vector.broadcast %cst_175 : f32 to vector<16x32xf32>
    %365 = arith.subf %364, %361 : vector<16x32xf32>
    %366 = arith.select %363, %361, %365 : vector<16x32xi1>, vector<16x32xf32>
    %cst_176 = arith.constant 1.000000e+00 : f32
    %367 = vector.broadcast %cst_176 : f32 to vector<16x32xf32>
    %368 = arith.addf %367, %366 : vector<16x32xf32>
    %369 = arith.mulf %331, %368 : vector<16x32xf32>
    %c1_177 = arith.constant 1 : index
    %c0_178 = arith.constant 0 : index
    %c0_179 = arith.constant 0 : index
    %370 = vector.load %arg9[%c1_177, %c0_178, %c0_179] : memref<2x32x32xf32, #tpu.memory_space<vmem>>, vector<1x32x32xf32>
    %371 = vector.shape_cast %370 : vector<1x32x32xf32> to vector<32x32xf32>
    %cst_180 = arith.constant dense<0.000000e+00> : vector<16x32xf32>
    %372 = tpu.matmul %369, %371, %cst_180 {dimension_numbers = #tpu.dot_dimension_numbers<[1], [0], [0], [1], [0, 0, 1, 1], [], []>} : vector<16x32xf32>, vector<32x32xf32>, vector<16x32xf32> -> vector<16x32xf32>
    %c1_181 = arith.constant 1 : index
    %c0_182 = arith.constant 0 : index
    %c0_183 = arith.constant 0 : index
    %373 = vector.load %arg10[%c1_181, %c0_182, %c0_183] : memref<2x1x32xf32, #tpu.memory_space<vmem>>, vector<1x1x32xf32>
    %374 = vector.shape_cast %373 : vector<1x1x32xf32> to vector<1x32xf32>
    %375 = vector.broadcast %374 : vector<1x32xf32> to vector<16x32xf32>
    %376 = arith.addf %372, %375 : vector<16x32xf32>
    %377 = arith.mulf %376, %3 : vector<16x32xf32>
    %c1_184 = arith.constant 1 : index
    %c0_185 = arith.constant 0 : index
    %c0_186 = arith.constant 0 : index
    %378 = vector.load %arg11[%c1_184, %c0_185, %c0_186] : memref<2x32x32xf32, #tpu.memory_space<vmem>>, vector<1x32x32xf32>
    %379 = vector.shape_cast %378 : vector<1x32x32xf32> to vector<32x32xf32>
    %cst_187 = arith.constant dense<0.000000e+00> : vector<16x32xf32>
    %380 = tpu.matmul %322, %379, %cst_187 {dimension_numbers = #tpu.dot_dimension_numbers<[1], [0], [0], [1], [0, 0, 1, 1], [], []>} : vector<16x32xf32>, vector<32x32xf32>, vector<16x32xf32> -> vector<16x32xf32>
    %c1_188 = arith.constant 1 : index
    %c0_189 = arith.constant 0 : index
    %c0_190 = arith.constant 0 : index
    %381 = vector.load %arg12[%c1_188, %c0_189, %c0_190] : memref<2x1x32xf32, #tpu.memory_space<vmem>>, vector<1x1x32xf32>
    %382 = vector.shape_cast %381 : vector<1x1x32xf32> to vector<1x32xf32>
    %383 = vector.broadcast %382 : vector<1x32xf32> to vector<16x32xf32>
    %384 = arith.addf %380, %383 : vector<16x32xf32>
    %cst_191 = arith.constant 5.000000e-01 : f32
    %385 = vector.broadcast %cst_191 : f32 to vector<16x32xf32>
    %386 = arith.mulf %385, %384 : vector<16x32xf32>
    %cst_192 = arith.constant 0.707106769 : f32
    %387 = vector.broadcast %cst_192 : f32 to vector<16x32xf32>
    %388 = arith.mulf %384, %387 : vector<16x32xf32>
    %389 = math.absf %388 : vector<16x32xf32>
    %cst_193 = arith.constant 0.327591091 : f32
    %390 = vector.broadcast %cst_193 : f32 to vector<16x32xf32>
    %391 = arith.mulf %390, %389 : vector<16x32xf32>
    %cst_194 = arith.constant 1.000000e+00 : f32
    %392 = vector.broadcast %cst_194 : f32 to vector<16x32xf32>
    %393 = arith.addf %392, %391 : vector<16x32xf32>
    %cst_195 = arith.constant 1.000000e+00 : f32
    %394 = vector.broadcast %cst_195 : f32 to vector<16x32xf32>
    %395 = arith.divf %394, %393 : vector<16x32xf32>
    %cst_196 = arith.constant 1.06140542 : f32
    %396 = vector.broadcast %cst_196 : f32 to vector<16x32xf32>
    %397 = arith.mulf %396, %395 : vector<16x32xf32>
    %cst_197 = arith.constant -1.45315206 : f32
    %398 = vector.broadcast %cst_197 : f32 to vector<16x32xf32>
    %399 = arith.addf %397, %398 : vector<16x32xf32>
    %400 = arith.mulf %399, %395 : vector<16x32xf32>
    %cst_198 = arith.constant 1.42141378 : f32
    %401 = vector.broadcast %cst_198 : f32 to vector<16x32xf32>
    %402 = arith.addf %400, %401 : vector<16x32xf32>
    %403 = arith.mulf %402, %395 : vector<16x32xf32>
    %cst_199 = arith.constant -0.284496725 : f32
    %404 = vector.broadcast %cst_199 : f32 to vector<16x32xf32>
    %405 = arith.addf %403, %404 : vector<16x32xf32>
    %406 = arith.mulf %405, %395 : vector<16x32xf32>
    %cst_200 = arith.constant 0.254829586 : f32
    %407 = vector.broadcast %cst_200 : f32 to vector<16x32xf32>
    %408 = arith.addf %406, %407 : vector<16x32xf32>
    %409 = arith.mulf %408, %395 : vector<16x32xf32>
    %cst_201 = arith.constant 0.000000e+00 : f32
    %410 = vector.broadcast %cst_201 : f32 to vector<16x32xf32>
    %411 = arith.subf %410, %389 : vector<16x32xf32>
    %412 = arith.mulf %411, %389 : vector<16x32xf32>
    %413 = math.exp %412 : vector<16x32xf32>
    %414 = arith.mulf %409, %413 : vector<16x32xf32>
    %cst_202 = arith.constant 1.000000e+00 : f32
    %415 = vector.broadcast %cst_202 : f32 to vector<16x32xf32>
    %416 = arith.subf %415, %414 : vector<16x32xf32>
    %cst_203 = arith.constant 0.000000e+00 : f32
    %417 = vector.broadcast %cst_203 : f32 to vector<16x32xf32>
    %418 = arith.cmpf oge, %388, %417 : vector<16x32xf32>
    %cst_204 = arith.constant 0.000000e+00 : f32
    %419 = vector.broadcast %cst_204 : f32 to vector<16x32xf32>
    %420 = arith.subf %419, %416 : vector<16x32xf32>
    %421 = arith.select %418, %416, %420 : vector<16x32xi1>, vector<16x32xf32>
    %cst_205 = arith.constant 1.000000e+00 : f32
    %422 = vector.broadcast %cst_205 : f32 to vector<16x32xf32>
    %423 = arith.addf %422, %421 : vector<16x32xf32>
    %424 = arith.mulf %386, %423 : vector<16x32xf32>
    %c1_206 = arith.constant 1 : index
    %c0_207 = arith.constant 0 : index
    %c0_208 = arith.constant 0 : index
    %425 = vector.load %arg13[%c1_206, %c0_207, %c0_208] : memref<2x32x32xf32, #tpu.memory_space<vmem>>, vector<1x32x32xf32>
    %426 = vector.shape_cast %425 : vector<1x32x32xf32> to vector<32x32xf32>
    %cst_209 = arith.constant dense<0.000000e+00> : vector<16x32xf32>
    %427 = tpu.matmul %424, %426, %cst_209 {dimension_numbers = #tpu.dot_dimension_numbers<[1], [0], [0], [1], [0, 0, 1, 1], [], []>} : vector<16x32xf32>, vector<32x32xf32>, vector<16x32xf32> -> vector<16x32xf32>
    %c1_210 = arith.constant 1 : index
    %c0_211 = arith.constant 0 : index
    %c0_212 = arith.constant 0 : index
    %428 = vector.load %arg14[%c1_210, %c0_211, %c0_212] : memref<2x1x32xf32, #tpu.memory_space<vmem>>, vector<1x1x32xf32>
    %429 = vector.shape_cast %428 : vector<1x1x32xf32> to vector<1x32xf32>
    %430 = vector.broadcast %429 : vector<1x32xf32> to vector<16x32xf32>
    %431 = arith.addf %427, %430 : vector<16x32xf32>
    %432 = arith.mulf %431, %3 : vector<16x32xf32>
    %cst_213 = arith.constant dense<0.000000e+00> : vector<32x32xf32>
    %433 = tpu.matmul %377, %321, %cst_213 {dimension_numbers = #tpu.dot_dimension_numbers<[0], [0], [1], [1], [0, 1, 1, 1], [], []>} : vector<16x32xf32>, vector<16x32xf32>, vector<32x32xf32> -> vector<32x32xf32>
    %cst_214 = arith.constant 5.000000e-01 : f32
    %434 = vector.broadcast %cst_214 : f32 to vector<32x32xf32>
    %435 = arith.mulf %434, %433 : vector<32x32xf32>
    %cst_215 = arith.constant 0.707106769 : f32
    %436 = vector.broadcast %cst_215 : f32 to vector<32x32xf32>
    %437 = arith.mulf %433, %436 : vector<32x32xf32>
    %438 = math.absf %437 : vector<32x32xf32>
    %cst_216 = arith.constant 0.327591091 : f32
    %439 = vector.broadcast %cst_216 : f32 to vector<32x32xf32>
    %440 = arith.mulf %439, %438 : vector<32x32xf32>
    %cst_217 = arith.constant 1.000000e+00 : f32
    %441 = vector.broadcast %cst_217 : f32 to vector<32x32xf32>
    %442 = arith.addf %441, %440 : vector<32x32xf32>
    %cst_218 = arith.constant 1.000000e+00 : f32
    %443 = vector.broadcast %cst_218 : f32 to vector<32x32xf32>
    %444 = arith.divf %443, %442 : vector<32x32xf32>
    %cst_219 = arith.constant 1.06140542 : f32
    %445 = vector.broadcast %cst_219 : f32 to vector<32x32xf32>
    %446 = arith.mulf %445, %444 : vector<32x32xf32>
    %cst_220 = arith.constant -1.45315206 : f32
    %447 = vector.broadcast %cst_220 : f32 to vector<32x32xf32>
    %448 = arith.addf %446, %447 : vector<32x32xf32>
    %449 = arith.mulf %448, %444 : vector<32x32xf32>
    %cst_221 = arith.constant 1.42141378 : f32
    %450 = vector.broadcast %cst_221 : f32 to vector<32x32xf32>
    %451 = arith.addf %449, %450 : vector<32x32xf32>
    %452 = arith.mulf %451, %444 : vector<32x32xf32>
    %cst_222 = arith.constant -0.284496725 : f32
    %453 = vector.broadcast %cst_222 : f32 to vector<32x32xf32>
    %454 = arith.addf %452, %453 : vector<32x32xf32>
    %455 = arith.mulf %454, %444 : vector<32x32xf32>
    %cst_223 = arith.constant 0.254829586 : f32
    %456 = vector.broadcast %cst_223 : f32 to vector<32x32xf32>
    %457 = arith.addf %455, %456 : vector<32x32xf32>
    %458 = arith.mulf %457, %444 : vector<32x32xf32>
    %cst_224 = arith.constant 0.000000e+00 : f32
    %459 = vector.broadcast %cst_224 : f32 to vector<32x32xf32>
    %460 = arith.subf %459, %438 : vector<32x32xf32>
    %461 = arith.mulf %460, %438 : vector<32x32xf32>
    %462 = math.exp %461 : vector<32x32xf32>
    %463 = arith.mulf %458, %462 : vector<32x32xf32>
    %cst_225 = arith.constant 1.000000e+00 : f32
    %464 = vector.broadcast %cst_225 : f32 to vector<32x32xf32>
    %465 = arith.subf %464, %463 : vector<32x32xf32>
    %cst_226 = arith.constant 0.000000e+00 : f32
    %466 = vector.broadcast %cst_226 : f32 to vector<32x32xf32>
    %467 = arith.cmpf oge, %437, %466 : vector<32x32xf32>
    %cst_227 = arith.constant 0.000000e+00 : f32
    %468 = vector.broadcast %cst_227 : f32 to vector<32x32xf32>
    %469 = arith.subf %468, %465 : vector<32x32xf32>
    %470 = arith.select %467, %465, %469 : vector<32x32xi1>, vector<32x32xf32>
    %cst_228 = arith.constant 1.000000e+00 : f32
    %471 = vector.broadcast %cst_228 : f32 to vector<32x32xf32>
    %472 = arith.addf %471, %470 : vector<32x32xf32>
    %473 = arith.mulf %435, %472 : vector<32x32xf32>
    %474 = arith.mulf %473, %5 : vector<32x32xf32>
    %cst_229 = arith.constant dense<0.000000e+00> : vector<16x32xf32>
    %475 = tpu.matmul %432, %474, %cst_229 {dimension_numbers = #tpu.dot_dimension_numbers<[1], [0], [0], [1], [0, 0, 1, 1], [], []>} : vector<16x32xf32>, vector<32x32xf32>, vector<16x32xf32> -> vector<16x32xf32>
    %c1_230 = arith.constant 1 : index
    %c0_231 = arith.constant 0 : index
    %c0_232 = arith.constant 0 : index
    %476 = vector.load %arg15[%c1_230, %c0_231, %c0_232] : memref<2x1x32xf32, #tpu.memory_space<vmem>>, vector<1x1x32xf32>
    %477 = vector.shape_cast %476 : vector<1x1x32xf32> to vector<1x32xf32>
    %c1_233 = arith.constant 1 : index
    %c0_234 = arith.constant 0 : index
    %c0_235 = arith.constant 0 : index
    %478 = vector.load %arg16[%c1_233, %c0_234, %c0_235] : memref<2x1x32xf32, #tpu.memory_space<vmem>>, vector<1x1x32xf32>
    %479 = vector.shape_cast %478 : vector<1x1x32xf32> to vector<1x32xf32>
    %cst_236 = arith.constant dense<0.000000e+00> : vector<16xf32>
    %480 = vector.multi_reduction <add>, %475, %cst_236 [1] : vector<16x32xf32> to vector<16xf32>
    %481 = vector.shape_cast %480 : vector<16xf32> to vector<16x1xf32>
    %cst_237 = arith.constant 3.200000e+01 : f32
    %482 = vector.broadcast %cst_237 : f32 to vector<16x1xf32>
    %483 = arith.divf %481, %482 : vector<16x1xf32>
    %484 = vector.broadcast %483 : vector<16x1xf32> to vector<16x32xf32>
    %485 = arith.subf %475, %484 : vector<16x32xf32>
    %486 = arith.mulf %485, %485 : vector<16x32xf32>
    %cst_238 = arith.constant dense<0.000000e+00> : vector<16xf32>
    %487 = vector.multi_reduction <add>, %486, %cst_238 [1] : vector<16x32xf32> to vector<16xf32>
    %488 = vector.shape_cast %487 : vector<16xf32> to vector<16x1xf32>
    %cst_239 = arith.constant 3.200000e+01 : f32
    %489 = vector.broadcast %cst_239 : f32 to vector<16x1xf32>
    %490 = arith.divf %488, %489 : vector<16x1xf32>
    %491 = vector.broadcast %483 : vector<16x1xf32> to vector<16x32xf32>
    %492 = arith.subf %475, %491 : vector<16x32xf32>
    %cst_240 = arith.constant 9.99999974E-6 : f32
    %493 = vector.broadcast %cst_240 : f32 to vector<16x1xf32>
    %494 = arith.addf %490, %493 : vector<16x1xf32>
    %495 = math.rsqrt %494 : vector<16x1xf32>
    %496 = vector.broadcast %495 : vector<16x1xf32> to vector<16x32xf32>
    %497 = arith.mulf %492, %496 : vector<16x32xf32>
    %498 = vector.broadcast %477 : vector<1x32xf32> to vector<16x32xf32>
    %499 = arith.mulf %497, %498 : vector<16x32xf32>
    %500 = vector.broadcast %479 : vector<1x32xf32> to vector<16x32xf32>
    %501 = arith.addf %499, %500 : vector<16x32xf32>
    %502 = arith.addf %294, %501 : vector<16x32xf32>
    %c1_241 = arith.constant 1 : index
    %c0_242 = arith.constant 0 : index
    %c0_243 = arith.constant 0 : index
    %503 = vector.load %arg17[%c1_241, %c0_242, %c0_243] : memref<2x1x32xf32, #tpu.memory_space<vmem>>, vector<1x1x32xf32>
    %504 = vector.shape_cast %503 : vector<1x1x32xf32> to vector<1x32xf32>
    %c1_244 = arith.constant 1 : index
    %c0_245 = arith.constant 0 : index
    %c0_246 = arith.constant 0 : index
    %505 = vector.load %arg18[%c1_244, %c0_245, %c0_246] : memref<2x1x32xf32, #tpu.memory_space<vmem>>, vector<1x1x32xf32>
    %506 = vector.shape_cast %505 : vector<1x1x32xf32> to vector<1x32xf32>
    %cst_247 = arith.constant dense<0.000000e+00> : vector<16xf32>
    %507 = vector.multi_reduction <add>, %502, %cst_247 [1] : vector<16x32xf32> to vector<16xf32>
    %508 = vector.shape_cast %507 : vector<16xf32> to vector<16x1xf32>
    %cst_248 = arith.constant 3.200000e+01 : f32
    %509 = vector.broadcast %cst_248 : f32 to vector<16x1xf32>
    %510 = arith.divf %508, %509 : vector<16x1xf32>
    %511 = vector.broadcast %510 : vector<16x1xf32> to vector<16x32xf32>
    %512 = arith.subf %502, %511 : vector<16x32xf32>
    %513 = arith.mulf %512, %512 : vector<16x32xf32>
    %cst_249 = arith.constant dense<0.000000e+00> : vector<16xf32>
    %514 = vector.multi_reduction <add>, %513, %cst_249 [1] : vector<16x32xf32> to vector<16xf32>
    %515 = vector.shape_cast %514 : vector<16xf32> to vector<16x1xf32>
    %cst_250 = arith.constant 3.200000e+01 : f32
    %516 = vector.broadcast %cst_250 : f32 to vector<16x1xf32>
    %517 = arith.divf %515, %516 : vector<16x1xf32>
    %518 = vector.broadcast %510 : vector<16x1xf32> to vector<16x32xf32>
    %519 = arith.subf %502, %518 : vector<16x32xf32>
    %cst_251 = arith.constant 9.99999974E-6 : f32
    %520 = vector.broadcast %cst_251 : f32 to vector<16x1xf32>
    %521 = arith.addf %517, %520 : vector<16x1xf32>
    %522 = math.rsqrt %521 : vector<16x1xf32>
    %523 = vector.broadcast %522 : vector<16x1xf32> to vector<16x32xf32>
    %524 = arith.mulf %519, %523 : vector<16x32xf32>
    %525 = vector.broadcast %504 : vector<1x32xf32> to vector<16x32xf32>
    %526 = arith.mulf %524, %525 : vector<16x32xf32>
    %527 = vector.broadcast %506 : vector<1x32xf32> to vector<16x32xf32>
    %528 = arith.addf %526, %527 : vector<16x32xf32>
    %c1_252 = arith.constant 1 : index
    %c0_253 = arith.constant 0 : index
    %c0_254 = arith.constant 0 : index
    %529 = vector.load %arg19[%c1_252, %c0_253, %c0_254] : memref<2x32x64xf32, #tpu.memory_space<vmem>>, vector<1x32x64xf32>
    %530 = vector.shape_cast %529 : vector<1x32x64xf32> to vector<32x64xf32>
    %cst_255 = arith.constant dense<0.000000e+00> : vector<16x64xf32>
    %531 = tpu.matmul %528, %530, %cst_255 {dimension_numbers = #tpu.dot_dimension_numbers<[1], [0], [0], [1], [0, 0, 1, 1], [], []>} : vector<16x32xf32>, vector<32x64xf32>, vector<16x64xf32> -> vector<16x64xf32>
    %c1_256 = arith.constant 1 : index
    %c0_257 = arith.constant 0 : index
    %c0_258 = arith.constant 0 : index
    %532 = vector.load %arg20[%c1_256, %c0_257, %c0_258] : memref<2x1x64xf32, #tpu.memory_space<vmem>>, vector<1x1x64xf32>
    %533 = vector.shape_cast %532 : vector<1x1x64xf32> to vector<1x64xf32>
    %534 = vector.broadcast %533 : vector<1x64xf32> to vector<16x64xf32>
    %535 = arith.addf %531, %534 : vector<16x64xf32>
    %cst_259 = arith.constant 5.000000e-01 : f32
    %536 = vector.broadcast %cst_259 : f32 to vector<16x64xf32>
    %537 = arith.mulf %536, %535 : vector<16x64xf32>
    %cst_260 = arith.constant 0.707106769 : f32
    %538 = vector.broadcast %cst_260 : f32 to vector<16x64xf32>
    %539 = arith.mulf %535, %538 : vector<16x64xf32>
    %540 = math.absf %539 : vector<16x64xf32>
    %cst_261 = arith.constant 0.327591091 : f32
    %541 = vector.broadcast %cst_261 : f32 to vector<16x64xf32>
    %542 = arith.mulf %541, %540 : vector<16x64xf32>
    %cst_262 = arith.constant 1.000000e+00 : f32
    %543 = vector.broadcast %cst_262 : f32 to vector<16x64xf32>
    %544 = arith.addf %543, %542 : vector<16x64xf32>
    %cst_263 = arith.constant 1.000000e+00 : f32
    %545 = vector.broadcast %cst_263 : f32 to vector<16x64xf32>
    %546 = arith.divf %545, %544 : vector<16x64xf32>
    %cst_264 = arith.constant 1.06140542 : f32
    %547 = vector.broadcast %cst_264 : f32 to vector<16x64xf32>
    %548 = arith.mulf %547, %546 : vector<16x64xf32>
    %cst_265 = arith.constant -1.45315206 : f32
    %549 = vector.broadcast %cst_265 : f32 to vector<16x64xf32>
    %550 = arith.addf %548, %549 : vector<16x64xf32>
    %551 = arith.mulf %550, %546 : vector<16x64xf32>
    %cst_266 = arith.constant 1.42141378 : f32
    %552 = vector.broadcast %cst_266 : f32 to vector<16x64xf32>
    %553 = arith.addf %551, %552 : vector<16x64xf32>
    %554 = arith.mulf %553, %546 : vector<16x64xf32>
    %cst_267 = arith.constant -0.284496725 : f32
    %555 = vector.broadcast %cst_267 : f32 to vector<16x64xf32>
    %556 = arith.addf %554, %555 : vector<16x64xf32>
    %557 = arith.mulf %556, %546 : vector<16x64xf32>
    %cst_268 = arith.constant 0.254829586 : f32
    %558 = vector.broadcast %cst_268 : f32 to vector<16x64xf32>
    %559 = arith.addf %557, %558 : vector<16x64xf32>
    %560 = arith.mulf %559, %546 : vector<16x64xf32>
    %cst_269 = arith.constant 0.000000e+00 : f32
    %561 = vector.broadcast %cst_269 : f32 to vector<16x64xf32>
    %562 = arith.subf %561, %540 : vector<16x64xf32>
    %563 = arith.mulf %562, %540 : vector<16x64xf32>
    %564 = math.exp %563 : vector<16x64xf32>
    %565 = arith.mulf %560, %564 : vector<16x64xf32>
    %cst_270 = arith.constant 1.000000e+00 : f32
    %566 = vector.broadcast %cst_270 : f32 to vector<16x64xf32>
    %567 = arith.subf %566, %565 : vector<16x64xf32>
    %cst_271 = arith.constant 0.000000e+00 : f32
    %568 = vector.broadcast %cst_271 : f32 to vector<16x64xf32>
    %569 = arith.cmpf oge, %539, %568 : vector<16x64xf32>
    %cst_272 = arith.constant 0.000000e+00 : f32
    %570 = vector.broadcast %cst_272 : f32 to vector<16x64xf32>
    %571 = arith.subf %570, %567 : vector<16x64xf32>
    %572 = arith.select %569, %567, %571 : vector<16x64xi1>, vector<16x64xf32>
    %cst_273 = arith.constant 1.000000e+00 : f32
    %573 = vector.broadcast %cst_273 : f32 to vector<16x64xf32>
    %574 = arith.addf %573, %572 : vector<16x64xf32>
    %575 = arith.mulf %537, %574 : vector<16x64xf32>
    %c1_274 = arith.constant 1 : index
    %c0_275 = arith.constant 0 : index
    %c0_276 = arith.constant 0 : index
    %576 = vector.load %arg21[%c1_274, %c0_275, %c0_276] : memref<2x64x32xf32, #tpu.memory_space<vmem>>, vector<1x64x32xf32>
    %577 = vector.shape_cast %576 : vector<1x64x32xf32> to vector<64x32xf32>
    %cst_277 = arith.constant dense<0.000000e+00> : vector<16x32xf32>
    %578 = tpu.matmul %575, %577, %cst_277 {dimension_numbers = #tpu.dot_dimension_numbers<[1], [0], [0], [1], [0, 0, 1, 1], [], []>} : vector<16x64xf32>, vector<64x32xf32>, vector<16x32xf32> -> vector<16x32xf32>
    %579 = arith.addf %502, %578 : vector<16x32xf32>
    %c1_278 = arith.constant 1 : index
    %c0_279 = arith.constant 0 : index
    %c0_280 = arith.constant 0 : index
    %580 = vector.load %arg22[%c1_278, %c0_279, %c0_280] : memref<2x1x32xf32, #tpu.memory_space<vmem>>, vector<1x1x32xf32>
    %581 = vector.shape_cast %580 : vector<1x1x32xf32> to vector<1x32xf32>
    %582 = vector.broadcast %581 : vector<1x32xf32> to vector<16x32xf32>
    %583 = arith.addf %579, %582 : vector<16x32xf32>
    %c0_281 = arith.constant 0 : index
    %c0_282 = arith.constant 0 : index
    %584 = vector.load %arg23[%c0_281, %c0_282] : memref<1x32xf32, #tpu.memory_space<vmem>>, vector<1x32xf32>
    %c0_283 = arith.constant 0 : index
    %c0_284 = arith.constant 0 : index
    %585 = vector.load %arg24[%c0_283, %c0_284] : memref<1x32xf32, #tpu.memory_space<vmem>>, vector<1x32xf32>
    %cst_285 = arith.constant dense<0.000000e+00> : vector<16xf32>
    %586 = vector.multi_reduction <add>, %583, %cst_285 [1] : vector<16x32xf32> to vector<16xf32>
    %587 = vector.shape_cast %586 : vector<16xf32> to vector<16x1xf32>
    %cst_286 = arith.constant 3.200000e+01 : f32
    %588 = vector.broadcast %cst_286 : f32 to vector<16x1xf32>
    %589 = arith.divf %587, %588 : vector<16x1xf32>
    %590 = vector.broadcast %589 : vector<16x1xf32> to vector<16x32xf32>
    %591 = arith.subf %583, %590 : vector<16x32xf32>
    %592 = arith.mulf %591, %591 : vector<16x32xf32>
    %cst_287 = arith.constant dense<0.000000e+00> : vector<16xf32>
    %593 = vector.multi_reduction <add>, %592, %cst_287 [1] : vector<16x32xf32> to vector<16xf32>
    %594 = vector.shape_cast %593 : vector<16xf32> to vector<16x1xf32>
    %cst_288 = arith.constant 3.200000e+01 : f32
    %595 = vector.broadcast %cst_288 : f32 to vector<16x1xf32>
    %596 = arith.divf %594, %595 : vector<16x1xf32>
    %597 = vector.broadcast %589 : vector<16x1xf32> to vector<16x32xf32>
    %598 = arith.subf %583, %597 : vector<16x32xf32>
    %cst_289 = arith.constant 9.99999974E-6 : f32
    %599 = vector.broadcast %cst_289 : f32 to vector<16x1xf32>
    %600 = arith.addf %596, %599 : vector<16x1xf32>
    %601 = math.rsqrt %600 : vector<16x1xf32>
    %602 = vector.broadcast %601 : vector<16x1xf32> to vector<16x32xf32>
    %603 = arith.mulf %598, %602 : vector<16x32xf32>
    %604 = vector.broadcast %584 : vector<1x32xf32> to vector<16x32xf32>
    %605 = arith.mulf %603, %604 : vector<16x32xf32>
    %606 = vector.broadcast %585 : vector<1x32xf32> to vector<16x32xf32>
    %607 = arith.addf %605, %606 : vector<16x32xf32>
    %c0_290 = arith.constant 0 : index
    %c0_291 = arith.constant 0 : index
    %c0_292 = arith.constant 0 : index
    %608 = vector.load %arg25[%c0_290, %c0_291, %c0_292] : memref<1x16x32xf32, #tpu.memory_space<vmem>>, vector<1x16x32xf32>
    %609 = vector.shape_cast %608 : vector<1x16x32xf32> to vector<16x32xf32>
    %610 = vector.shape_cast %607 : vector<16x32xf32> to vector<1x16x32xf32>
    tpu.vector_store %arg25[%c0_290, %c0_291, %c0_292], %610 {strides = array<i32>} : memref<1x16x32xf32, #tpu.memory_space<vmem>>, vector<1x16x32xf32>,
    return
  }
  func.func @transform_0(%arg0: i32) -> (i32, i32, i32) {
    %c0_i32 = arith.constant 0 : i32
    %c0_i32_0 = arith.constant 0 : i32
    %c0_i32_1 = arith.constant 0 : i32
    return %arg0, %c0_i32, %c0_i32_0 : i32, i32, i32
  }
  func.func @transform_1(%arg0: i32) -> (i32, i32, i32) {
    %c0_i32 = arith.constant 0 : i32
    %c0_i32_0 = arith.constant 0 : i32
    %c0_i32_1 = arith.constant 0 : i32
    return %arg0, %c0_i32, %c0_i32_0 : i32, i32, i32
  }
  func.func @transform_2(%arg0: i32) -> (i32, i32) {
    %c0_i32 = arith.constant 0 : i32
    %c0_i32_0 = arith.constant 0 : i32
    %c0_i32_1 = arith.constant 0 : i32
    return %c0_i32, %c0_i32_0 : i32, i32
  }
  func.func @transform_3(%arg0: i32) -> (i32, i32) {
    %c0_i32 = arith.constant 0 : i32
    %c0_i32_0 = arith.constant 0 : i32
    %c0_i32_1 = arith.constant 0 : i32
    return %c0_i32, %c0_i32_0 : i32, i32
  }
  func.func @transform_4(%arg0: i32) -> (i32, i32, i32) {
    %c0_i32 = arith.constant 0 : i32
    %c0_i32_0 = arith.constant 0 : i32
    %c0_i32_1 = arith.constant 0 : i32
    %c0_i32_2 = arith.constant 0 : i32
    return %c0_i32, %c0_i32_0, %c0_i32_1 : i32, i32, i32
  }
  func.func @transform_5(%arg0: i32) -> (i32, i32, i32) {
    %c0_i32 = arith.constant 0 : i32
    %c0_i32_0 = arith.constant 0 : i32
    %c0_i32_1 = arith.constant 0 : i32
    %c0_i32_2 = arith.constant 0 : i32
    return %c0_i32, %c0_i32_0, %c0_i32_1 : i32, i32, i32
  }
  func.func @transform_6(%arg0: i32) -> (i32, i32, i32) {
    %c0_i32 = arith.constant 0 : i32
    %c0_i32_0 = arith.constant 0 : i32
    %c0_i32_1 = arith.constant 0 : i32
    %c0_i32_2 = arith.constant 0 : i32
    return %c0_i32, %c0_i32_0, %c0_i32_1 : i32, i32, i32
  }
  func.func @transform_7(%arg0: i32) -> (i32, i32, i32) {
    %c0_i32 = arith.constant 0 : i32
    %c0_i32_0 = arith.constant 0 : i32
    %c0_i32_1 = arith.constant 0 : i32
    %c0_i32_2 = arith.constant 0 : i32
    return %c0_i32, %c0_i32_0, %c0_i32_1 : i32, i32, i32
  }
  func.func @transform_8(%arg0: i32) -> (i32, i32, i32) {
    %c0_i32 = arith.constant 0 : i32
    %c0_i32_0 = arith.constant 0 : i32
    %c0_i32_1 = arith.constant 0 : i32
    %c0_i32_2 = arith.constant 0 : i32
    return %c0_i32, %c0_i32_0, %c0_i32_1 : i32, i32, i32
  }
  func.func @transform_9(%arg0: i32) -> (i32, i32, i32) {
    %c0_i32 = arith.constant 0 : i32
    %c0_i32_0 = arith.constant 0 : i32
    %c0_i32_1 = arith.constant 0 : i32
    %c0_i32_2 = arith.constant 0 : i32
    return %c0_i32, %c0_i32_0, %c0_i32_1 : i32, i32, i32
  }
  func.func @transform_10(%arg0: i32) -> (i32, i32, i32) {
    %c0_i32 = arith.constant 0 : i32
    %c0_i32_0 = arith.constant 0 : i32
    %c0_i32_1 = arith.constant 0 : i32
    %c0_i32_2 = arith.constant 0 : i32
    return %c0_i32, %c0_i32_0, %c0_i32_1 : i32, i32, i32
  }
  func.func @transform_11(%arg0: i32) -> (i32, i32, i32) {
    %c0_i32 = arith.constant 0 : i32
    %c0_i32_0 = arith.constant 0 : i32
    %c0_i32_1 = arith.constant 0 : i32
    %c0_i32_2 = arith.constant 0 : i32
    return %c0_i32, %c0_i32_0, %c0_i32_1 : i32, i32, i32
  }
  func.func @transform_12(%arg0: i32) -> (i32, i32, i32) {
    %c0_i32 = arith.constant 0 : i32
    %c0_i32_0 = arith.constant 0 : i32
    %c0_i32_1 = arith.constant 0 : i32
    %c0_i32_2 = arith.constant 0 : i32
    return %c0_i32, %c0_i32_0, %c0_i32_1 : i32, i32, i32
  }
  func.func @transform_13(%arg0: i32) -> (i32, i32, i32) {
    %c0_i32 = arith.constant 0 : i32
    %c0_i32_0 = arith.constant 0 : i32
    %c0_i32_1 = arith.constant 0 : i32
    %c0_i32_2 = arith.constant 0 : i32
    return %c0_i32, %c0_i32_0, %c0_i32_1 : i32, i32, i32
  }
  func.func @transform_14(%arg0: i32) -> (i32, i32, i32) {
    %c0_i32 = arith.constant 0 : i32
    %c0_i32_0 = arith.constant 0 : i32
    %c0_i32_1 = arith.constant 0 : i32
    %c0_i32_2 = arith.constant 0 : i32
    return %c0_i32, %c0_i32_0, %c0_i32_1 : i32, i32, i32
  }
  func.func @transform_15(%arg0: i32) -> (i32, i32, i32) {
    %c0_i32 = arith.constant 0 : i32
    %c0_i32_0 = arith.constant 0 : i32
    %c0_i32_1 = arith.constant 0 : i32
    %c0_i32_2 = arith.constant 0 : i32
    return %c0_i32, %c0_i32_0, %c0_i32_1 : i32, i32, i32
  }
  func.func @transform_16(%arg0: i32) -> (i32, i32, i32) {
    %c0_i32 = arith.constant 0 : i32
    %c0_i32_0 = arith.constant 0 : i32
    %c0_i32_1 = arith.constant 0 : i32
    %c0_i32_2 = arith.constant 0 : i32
    return %c0_i32, %c0_i32_0, %c0_i32_1 : i32, i32, i32
  }
  func.func @transform_17(%arg0: i32) -> (i32, i32, i32) {
    %c0_i32 = arith.constant 0 : i32
    %c0_i32_0 = arith.constant 0 : i32
    %c0_i32_1 = arith.constant 0 : i32
    %c0_i32_2 = arith.constant 0 : i32
    return %c0_i32, %c0_i32_0, %c0_i32_1 : i32, i32, i32
  }
  func.func @transform_18(%arg0: i32) -> (i32, i32, i32) {
    %c0_i32 = arith.constant 0 : i32
    %c0_i32_0 = arith.constant 0 : i32
    %c0_i32_1 = arith.constant 0 : i32
    %c0_i32_2 = arith.constant 0 : i32
    return %c0_i32, %c0_i32_0, %c0_i32_1 : i32, i32, i32
  }
  func.func @transform_19(%arg0: i32) -> (i32, i32, i32) {
    %c0_i32 = arith.constant 0 : i32
    %c0_i32_0 = arith.constant 0 : i32
    %c0_i32_1 = arith.constant 0 : i32
    %c0_i32_2 = arith.constant 0 : i32
    return %c0_i32, %c0_i32_0, %c0_i32_1 : i32, i32, i32
  }
  func.func @transform_20(%arg0: i32) -> (i32, i32, i32) {
    %c0_i32 = arith.constant 0 : i32
    %c0_i32_0 = arith.constant 0 : i32
    %c0_i32_1 = arith.constant 0 : i32
    %c0_i32_2 = arith.constant 0 : i32
    return %c0_i32, %c0_i32_0, %c0_i32_1 : i32, i32, i32
  }
  func.func @transform_21(%arg0: i32) -> (i32, i32, i32) {
    %c0_i32 = arith.constant 0 : i32
    %c0_i32_0 = arith.constant 0 : i32
    %c0_i32_1 = arith.constant 0 : i32
    %c0_i32_2 = arith.constant 0 : i32
    return %c0_i32, %c0_i32_0, %c0_i32_1 : i32, i32, i32
  }
  func.func @transform_22(%arg0: i32) -> (i32, i32) {
    %c0_i32 = arith.constant 0 : i32
    %c0_i32_0 = arith.constant 0 : i32
    %c0_i32_1 = arith.constant 0 : i32
    return %c0_i32, %c0_i32_0 : i32, i32
  }
  func.func @transform_23(%arg0: i32) -> (i32, i32) {
    %c0_i32 = arith.constant 0 : i32
    %c0_i32_0 = arith.constant 0 : i32
    %c0_i32_1 = arith.constant 0 : i32
    return %c0_i32, %c0_i32_0 : i32, i32
  }
  func.func @transform_24(%arg0: i32) -> (i32, i32, i32) {
    %c0_i32 = arith.constant 0 : i32
    %c0_i32_0 = arith.constant 0 : i32
    %c0_i32_1 = arith.constant 0 : i32
    return %arg0, %c0_i32, %c0_i32_0 : i32, i32, i32
  }
}

</mosaic_0001>

<llo_original>
// kernel: mixer_each_chr_forward.1
$region0: #{mixer_each_chr_forward.1}
  #allocation0 [shape = 'u32[]', space=smem, size = 0x4, offset = 0x4, fixed_abs, tag = 'smem constant byte address 0x4 - core index']
  #allocation1 [shape = 'u32[72,128]{1,0:T(1,128)}', space=vmem, size = 0x9000, scoped, tag = 'internal scratch']
  %s0 = inlined_call_operand.vmem [shape: f32[2,16,32], index: 0, kind: input, shape index: {}]
  %s1 = inlined_call_operand.vmem [shape: f32[2,16,32], index: 1, kind: input, shape index: {}]
  %s2 = inlined_call_operand.vmem [shape: f32[16,32], index: 2, kind: input, shape index: {}]
  %s3 = inlined_call_operand.vmem [shape: f32[32,32], index: 3, kind: input, shape index: {}]
  %s4 = inlined_call_operand.vmem [shape: f32[2,1,32], index: 4, kind: input, shape index: {}]
  %s5 = inlined_call_operand.vmem [shape: f32[2,1,32], index: 5, kind: input, shape index: {}]
  %s6 = inlined_call_operand.vmem [shape: f32[2,32,32], index: 6, kind: input, shape index: {}]
  %s7 = inlined_call_operand.vmem [shape: f32[2,1,32], index: 7, kind: input, shape index: {}]
  %s8 = inlined_call_operand.vmem [shape: f32[2,32,32], index: 8, kind: input, shape index: {}]
  %s9 = inlined_call_operand.vmem [shape: f32[2,1,32], index: 9, kind: input, shape index: {}]
  %s10 = inlined_call_operand.vmem [shape: f32[2,32,32], index: 10, kind: input, shape index: {}]
  %s11 = inlined_call_operand.vmem [shape: f32[2,1,32], index: 11, kind: input, shape index: {}]
  %s12 = inlined_call_operand.vmem [shape: f32[2,32,32], index: 12, kind: input, shape index: {}]
  %s13 = inlined_call_operand.vmem [shape: f32[2,1,32], index: 13, kind: input, shape index: {}]
  %s14 = inlined_call_operand.vmem [shape: f32[2,1,32], index: 14, kind: input, shape index: {}]
  %s15 = inlined_call_operand.vmem [shape: f32[2,1,32], index: 15, kind: input, shape index: {}]
  %s16 = inlined_call_operand.vmem [shape: f32[2,1,32], index: 16, kind: input, shape index: {}]
  %s17 = inlined_call_operand.vmem [shape: f32[2,1,32], index: 17, kind: input, shape index: {}]
  %s18 = inlined_call_operand.vmem [shape: f32[2,32,64], index: 18, kind: input, shape index: {}]
  %s19 = inlined_call_operand.vmem [shape: f32[2,1,64], index: 19, kind: input, shape index: {}]
  %s20 = inlined_call_operand.vmem [shape: f32[2,64,32], index: 20, kind: input, shape index: {}]
  %s21 = inlined_call_operand.vmem [shape: f32[2,1,32], index: 21, kind: input, shape index: {}]
  %s22 = inlined_call_operand.vmem [shape: f32[1,32], index: 22, kind: input, shape index: {}]
  %s23 = inlined_call_operand.vmem [shape: f32[1,32], index: 23, kind: input, shape index: {}]
  %s24 = inlined_call_operand.hbm [shape: f32[2,16,32], index: 24, kind: output, shape index: {}]
  %s25 = sld [smem:[#allocation0]]
  $region129: #{mixer_each_chr_forward.1} parent=0
    _
  %s27 = ssub.s32 1, %s25
  %s28 = scalar_select 0, %s27, %s25
  $region1: #{mixer_each_chr_forward.1} parent=0
    #allocation2 [shape = 'u8[16384]{0}', space=vmem, size = 0x4000, scoped, tag = 'output window, operand 0']
    #allocation3 [shape = 's32[2]{0}', space=sflag, size = 0x8, scoped, tag = 'scoped memory for mixer_each_chr_forward.1']
    %29 = vsyncpa [#allocation3], 0
    %s30 = scalar_lea.sflag [#allocation3], 1
    %31 = vsyncpa %s30, 0
    loop: start=0, step=1, limit=4
    $region2: #{mixer_each_chr_forward.1} parent=1 // loop_pre_header
      _
    $region3: #{mixer_each_chr_forward.1} parent=1 // loop_header
      %s33 = sphi 0, %s37
      %p34 = scmp.ge.s32.totalorder %s33, 4
      %s43 = sphi 0, %s45
      %s46 = sphi 0, %s43
      %s47 = sphi 0, %s46
      %s63 = sphi 0, %s47
      %s69 = sphi 0, %s71
      %s72 = sphi 0, %s69
      %s73 = sphi 0, %s72
      %s89 = sphi 0, %s73
      %s93 = sphi 0, %s93
      %s95 = sphi 0, %s93
      %s96 = sphi 0, %s95
      %s110 = sphi 0, %s96
      %s114 = sphi 0, %s114
      %s116 = sphi 0, %s114
      %s117 = sphi 0, %s116
      %s131 = sphi 0, %s117
      %s135 = sphi 0, %s135
      %s137 = sphi 0, %s135
      %s138 = sphi 0, %s137
      %s152 = sphi 0, %s138
      %s156 = sphi 0, %s156
      %s158 = sphi 0, %s156
      %s159 = sphi 0, %s158
      %s173 = sphi 0, %s159
      %s177 = sphi 0, %s177
      %s179 = sphi 0, %s177
      %s180 = sphi 0, %s179
      %s194 = sphi 0, %s180
      %s198 = sphi 0, %s198
      %s200 = sphi 0, %s198
      %s201 = sphi 0, %s200
      %s215 = sphi 0, %s201
      %s219 = sphi 0, %s219
      %s221 = sphi 0, %s219
      %s222 = sphi 0, %s221
      %s236 = sphi 0, %s222
      %s240 = sphi 0, %s240
      %s242 = sphi 0, %s240
      %s243 = sphi 0, %s242
      %s257 = sphi 0, %s243
      %s261 = sphi 0, %s261
      %s263 = sphi 0, %s261
      %s264 = sphi 0, %s263
      %s278 = sphi 0, %s264
      %s282 = sphi 0, %s282
      %s284 = sphi 0, %s282
      %s285 = sphi 0, %s284
      %s299 = sphi 0, %s285
      %s303 = sphi 0, %s303
      %s305 = sphi 0, %s303
      %s306 = sphi 0, %s305
      %s320 = sphi 0, %s306
      %s324 = sphi 0, %s324
      %s326 = sphi 0, %s324
      %s327 = sphi 0, %s326
      %s341 = sphi 0, %s327
      %s345 = sphi 0, %s345
      %s347 = sphi 0, %s345
      %s348 = sphi 0, %s347
      %s362 = sphi 0, %s348
      %s366 = sphi 0, %s366
      %s368 = sphi 0, %s366
      %s369 = sphi 0, %s368
      %s383 = sphi 0, %s369
      %s387 = sphi 0, %s387
      %s389 = sphi 0, %s387
      %s390 = sphi 0, %s389
      %s404 = sphi 0, %s390
      %s408 = sphi 0, %s408
      %s410 = sphi 0, %s408
      %s411 = sphi 0, %s410
      %s425 = sphi 0, %s411
      %s429 = sphi 0, %s429
      %s431 = sphi 0, %s429
      %s432 = sphi 0, %s431
      %s446 = sphi 0, %s432
      %s450 = sphi 0, %s450
      %s452 = sphi 0, %s450
      %s453 = sphi 0, %s452
      %s467 = sphi 0, %s453
      %s471 = sphi 0, %s471
      %s473 = sphi 0, %s471
      %s474 = sphi 0, %s473
      %s488 = sphi 0, %s474
      %s492 = sphi 0, %s492
      %s494 = sphi 0, %s492
      %s495 = sphi 0, %s494
      %s509 = sphi 0, %s495
      %s513 = sphi 0, %s513
      %s515 = sphi 0, %s513
      %s516 = sphi 0, %s515
      %s530 = sphi 0, %s516
      %s534 = sphi 0, %s534
      %s536 = sphi 0, %s534
      %s537 = sphi 0, %s536
      %s551 = sphi 0, %s537
      %s557 = sphi 0, %s559
      %s560 = sphi 0, %s557
      %s561 = sphi 0, %s560
      %s577 = sphi 0, %s561
    $region4: #{mixer_each_chr_forward.1} parent=1 // loop_header_branch
      %36 = sbr.rel (%p34) target = $region8
    $region5: #{mixer_each_chr_forward.1} parent=1 // loop_body
      %s38 = ssub.s32 %s33, 1
      %s39 = ssub.s32 %s33, 2
      %s40 = sadd.s32 %s33, 1
      %s41 = ssub.s32 %s33, %s40
      %p42 = scmp.eq.s32.totalorder %s41, 0
      %s44 = sadd.s32 %s43, 1
      %s45 = scalar_select %p42, %s43, %s44
      %p48 = pneg %p42
      %p49 = scmp.eq.s32.totalorder %s33, 1
      %p50 = por %p48, %p49
      %p51 = scmp.ne.s32.totalorder %s43, %s46
      %p52 = scmp.eq.s32.totalorder %s33, 0
      %p53 = por %p51, %p52
      %p54 = scmp.ne.s32.totalorder %s43, %s46
      %p55 = scmp.eq.s32.totalorder %s38, 1
      %p56 = por %p54, %p55
      %p57 = scmp.ne.s32.totalorder %s46, %s47
      %p58 = scmp.eq.s32.totalorder %s38, 0
      %p59 = por %p57, %p58
      %p60 = scmp.ne.s32.totalorder %s46, %s47
      %p61 = scmp.eq.s32.totalorder %s39, 1
      %p62 = por %p60, %p61
      %p64 = scmp.ne.s32.totalorder %s47, %s63
      %p65 = scmp.eq.s32.totalorder %s39, 0
      %p66 = por %p64, %p65
      %s67 = ssub.s32 %s33, %s40
      %p68 = scmp.eq.s32.totalorder %s67, 0
      %s70 = sadd.s32 %s69, 1
      %s71 = scalar_select %p68, %s69, %s70
      %p74 = pneg %p68
      %p75 = scmp.eq.s32.totalorder %s33, 1
      %p76 = por %p74, %p75
      %p77 = scmp.ne.s32.totalorder %s69, %s72
      %p78 = scmp.eq.s32.totalorder %s33, 0
      %p79 = por %p77, %p78
      %p80 = scmp.ne.s32.totalorder %s69, %s72
      %p81 = scmp.eq.s32.totalorder %s38, 1
      %p82 = por %p80, %p81
      %p83 = scmp.ne.s32.totalorder %s72, %s73
      %p84 = scmp.eq.s32.totalorder %s38, 0
      %p85 = por %p83, %p84
      %p86 = scmp.ne.s32.totalorder %s72, %s73
      %p87 = scmp.eq.s32.totalorder %s39, 1
      %p88 = por %p86, %p87
      %p90 = scmp.ne.s32.totalorder %s73, %s89
      %p91 = scmp.eq.s32.totalorder %s39, 0
      %p92 = por %p90, %p91
      %s94 = sadd.s32 %s93, 1
      %p97 = scmp.eq.s32.totalorder %s33, 1
      %p98 = scmp.ne.s32.totalorder %s93, %s95
      %p99 = scmp.eq.s32.totalorder %s33, 0
      %p100 = por %p98, %p99
      %p101 = scmp.ne.s32.totalorder %s93, %s95
      %p102 = scmp.eq.s32.totalorder %s38, 1
      %p103 = por %p101, %p102
      %p104 = scmp.ne.s32.totalorder %s95, %s96
      %p105 = scmp.eq.s32.totalorder %s38, 0
      %p106 = por %p104, %p105
      %p107 = scmp.ne.s32.totalorder %s95, %s96
      %p108 = scmp.eq.s32.totalorder %s39, 1
      %p109 = por %p107, %p108
      %p111 = scmp.ne.s32.totalorder %s96, %s110
      %p112 = scmp.eq.s32.totalorder %s39, 0
      %p113 = por %p111, %p112
      %s115 = sadd.s32 %s114, 1
      %p118 = scmp.eq.s32.totalorder %s33, 1
      %p119 = scmp.ne.s32.totalorder %s114, %s116
      %p120 = scmp.eq.s32.totalorder %s33, 0
      %p121 = por %p119, %p120
      %p122 = scmp.ne.s32.totalorder %s114, %s116
      %p123 = scmp.eq.s32.totalorder %s38, 1
      %p124 = por %p122, %p123
      %p125 = scmp.ne.s32.totalorder %s116, %s117
      %p126 = scmp.eq.s32.totalorder %s38, 0
      %p127 = por %p125, %p126
      %p128 = scmp.ne.s32.totalorder %s116, %s117
      %p129 = scmp.eq.s32.totalorder %s39, 1
      %p130 = por %p128, %p129
      %p132 = scmp.ne.s32.totalorder %s117, %s131
      %p133 = scmp.eq.s32.totalorder %s39, 0
      %p134 = por %p132, %p133
      %s136 = sadd.s32 %s135, 1
      %p139 = scmp.eq.s32.totalorder %s33, 1
      %p140 = scmp.ne.s32.totalorder %s135, %s137
      %p141 = scmp.eq.s32.totalorder %s33, 0
      %p142 = por %p140, %p141
      %p143 = scmp.ne.s32.totalorder %s135, %s137
      %p144 = scmp.eq.s32.totalorder %s38, 1
      %p145 = por %p143, %p144
      %p146 = scmp.ne.s32.totalorder %s137, %s138
      %p147 = scmp.eq.s32.totalorder %s38, 0
      %p148 = por %p146, %p147
      %p149 = scmp.ne.s32.totalorder %s137, %s138
      %p150 = scmp.eq.s32.totalorder %s39, 1
      %p151 = por %p149, %p150
      %p153 = scmp.ne.s32.totalorder %s138, %s152
      %p154 = scmp.eq.s32.totalorder %s39, 0
      %p155 = por %p153, %p154
      %s157 = sadd.s32 %s156, 1
      %p160 = scmp.eq.s32.totalorder %s33, 1
      %p161 = scmp.ne.s32.totalorder %s156, %s158
      %p162 = scmp.eq.s32.totalorder %s33, 0
      %p163 = por %p161, %p162
      %p164 = scmp.ne.s32.totalorder %s156, %s158
      %p165 = scmp.eq.s32.totalorder %s38, 1
      %p166 = por %p164, %p165
      %p167 = scmp.ne.s32.totalorder %s158, %s159
      %p168 = scmp.eq.s32.totalorder %s38, 0
      %p169 = por %p167, %p168
      %p170 = scmp.ne.s32.totalorder %s158, %s159
      %p171 = scmp.eq.s32.totalorder %s39, 1
      %p172 = por %p170, %p171
      %p174 = scmp.ne.s32.totalorder %s159, %s173
      %p175 = scmp.eq.s32.totalorder %s39, 0
      %p176 = por %p174, %p175
      %s178 = sadd.s32 %s177, 1
      %p181 = scmp.eq.s32.totalorder %s33, 1
      %p182 = scmp.ne.s32.totalorder %s177, %s179
      %p183 = scmp.eq.s32.totalorder %s33, 0
      %p184 = por %p182, %p183
      %p185 = scmp.ne.s32.totalorder %s177, %s179
      %p186 = scmp.eq.s32.totalorder %s38, 1
      %p187 = por %p185, %p186
      %p188 = scmp.ne.s32.totalorder %s179, %s180
      %p189 = scmp.eq.s32.totalorder %s38, 0
      %p190 = por %p188, %p189
      %p191 = scmp.ne.s32.totalorder %s179, %s180
      %p192 = scmp.eq.s32.totalorder %s39, 1
      %p193 = por %p191, %p192
      %p195 = scmp.ne.s32.totalorder %s180, %s194
      %p196 = scmp.eq.s32.totalorder %s39, 0
      %p197 = por %p195, %p196
      %s199 = sadd.s32 %s198, 1
      %p202 = scmp.eq.s32.totalorder %s33, 1
      %p203 = scmp.ne.s32.totalorder %s198, %s200
      %p204 = scmp.eq.s32.totalorder %s33, 0
      %p205 = por %p203, %p204
      %p206 = scmp.ne.s32.totalorder %s198, %s200
      %p207 = scmp.eq.s32.totalorder %s38, 1
      %p208 = por %p206, %p207
      %p209 = scmp.ne.s32.totalorder %s200, %s201
      %p210 = scmp.eq.s32.totalorder %s38, 0
      %p211 = por %p209, %p210
      %p212 = scmp.ne.s32.totalorder %s200, %s201
      %p213 = scmp.eq.s32.totalorder %s39, 1
      %p214 = por %p212, %p213
      %p216 = scmp.ne.s32.totalorder %s201, %s215
      %p217 = scmp.eq.s32.totalorder %s39, 0
      %p218 = por %p216, %p217
      %s220 = sadd.s32 %s219, 1
      %p223 = scmp.eq.s32.totalorder %s33, 1
      %p224 = scmp.ne.s32.totalorder %s219, %s221
      %p225 = scmp.eq.s32.totalorder %s33, 0
      %p226 = por %p224, %p225
      %p227 = scmp.ne.s32.totalorder %s219, %s221
      %p228 = scmp.eq.s32.totalorder %s38, 1
      %p229 = por %p227, %p228
      %p230 = scmp.ne.s32.totalorder %s221, %s222
      %p231 = scmp.eq.s32.totalorder %s38, 0
      %p232 = por %p230, %p231
      %p233 = scmp.ne.s32.totalorder %s221, %s222
      %p234 = scmp.eq.s32.totalorder %s39, 1
      %p235 = por %p233, %p234
      %p237 = scmp.ne.s32.totalorder %s222, %s236
      %p238 = scmp.eq.s32.totalorder %s39, 0
      %p239 = por %p237, %p238
      %s241 = sadd.s32 %s240, 1
      %p244 = scmp.eq.s32.totalorder %s33, 1
      %p245 = scmp.ne.s32.totalorder %s240, %s242
      %p246 = scmp.eq.s32.totalorder %s33, 0
      %p247 = por %p245, %p246
      %p248 = scmp.ne.s32.totalorder %s240, %s242
      %p249 = scmp.eq.s32.totalorder %s38, 1
      %p250 = por %p248, %p249
      %p251 = scmp.ne.s32.totalorder %s242, %s243
      %p252 = scmp.eq.s32.totalorder %s38, 0
      %p253 = por %p251, %p252
      %p254 = scmp.ne.s32.totalorder %s242, %s243
      %p255 = scmp.eq.s32.totalorder %s39, 1
      %p256 = por %p254, %p255
      %p258 = scmp.ne.s32.totalorder %s243, %s257
      %p259 = scmp.eq.s32.totalorder %s39, 0
      %p260 = por %p258, %p259
      %s262 = sadd.s32 %s261, 1
      %p265 = scmp.eq.s32.totalorder %s33, 1
      %p266 = scmp.ne.s32.totalorder %s261, %s263
      %p267 = scmp.eq.s32.totalorder %s33, 0
      %p268 = por %p266, %p267
      %p269 = scmp.ne.s32.totalorder %s261, %s263
      %p270 = scmp.eq.s32.totalorder %s38, 1
      %p271 = por %p269, %p270
      %p272 = scmp.ne.s32.totalorder %s263, %s264
      %p273 = scmp.eq.s32.totalorder %s38, 0
      %p274 = por %p272, %p273
      %p275 = scmp.ne.s32.totalorder %s263, %s264
      %p276 = scmp.eq.s32.totalorder %s39, 1
      %p277 = por %p275, %p276
      %p279 = scmp.ne.s32.totalorder %s264, %s278
      %p280 = scmp.eq.s32.totalorder %s39, 0
      %p281 = por %p279, %p280
      %s283 = sadd.s32 %s282, 1
      %p286 = scmp.eq.s32.totalorder %s33, 1
      %p287 = scmp.ne.s32.totalorder %s282, %s284
      %p288 = scmp.eq.s32.totalorder %s33, 0
      %p289 = por %p287, %p288
      %p290 = scmp.ne.s32.totalorder %s282, %s284
      %p291 = scmp.eq.s32.totalorder %s38, 1
      %p292 = por %p290, %p291
      %p293 = scmp.ne.s32.totalorder %s284, %s285
      %p294 = scmp.eq.s32.totalorder %s38, 0
      %p295 = por %p293, %p294
      %p296 = scmp.ne.s32.totalorder %s284, %s285
      %p297 = scmp.eq.s32.totalorder %s39, 1
      %p298 = por %p296, %p297
      %p300 = scmp.ne.s32.totalorder %s285, %s299
      %p301 = scmp.eq.s32.totalorder %s39, 0
      %p302 = por %p300, %p301
      %s304 = sadd.s32 %s303, 1
      %p307 = scmp.eq.s32.totalorder %s33, 1
      %p308 = scmp.ne.s32.totalorder %s303, %s305
      %p309 = scmp.eq.s32.totalorder %s33, 0
      %p310 = por %p308, %p309
      %p311 = scmp.ne.s32.totalorder %s303, %s305
      %p312 = scmp.eq.s32.totalorder %s38, 1
      %p313 = por %p311, %p312
      %p314 = scmp.ne.s32.totalorder %s305, %s306
      %p315 = scmp.eq.s32.totalorder %s38, 0
      %p316 = por %p314, %p315
      %p317 = scmp.ne.s32.totalorder %s305, %s306
      %p318 = scmp.eq.s32.totalorder %s39, 1
      %p319 = por %p317, %p318
      %p321 = scmp.ne.s32.totalorder %s306, %s320
      %p322 = scmp.eq.s32.totalorder %s39, 0
      %p323 = por %p321, %p322
      %s325 = sadd.s32 %s324, 1
      %p328 = scmp.eq.s32.totalorder %s33, 1
      %p329 = scmp.ne.s32.totalorder %s324, %s326
      %p330 = scmp.eq.s32.totalorder %s33, 0
      %p331 = por %p329, %p330
      %p332 = scmp.ne.s32.totalorder %s324, %s326
      %p333 = scmp.eq.s32.totalorder %s38, 1
      %p334 = por %p332, %p333
      %p335 = scmp.ne.s32.totalorder %s326, %s327
      %p336 = scmp.eq.s32.totalorder %s38, 0
      %p337 = por %p335, %p336
      %p338 = scmp.ne.s32.totalorder %s326, %s327
      %p339 = scmp.eq.s32.totalorder %s39, 1
      %p340 = por %p338, %p339
      %p342 = scmp.ne.s32.totalorder %s327, %s341
      %p343 = scmp.eq.s32.totalorder %s39, 0
      %p344 = por %p342, %p343
      %s346 = sadd.s32 %s345, 1
      %p349 = scmp.eq.s32.totalorder %s33, 1
      %p350 = scmp.ne.s32.totalorder %s345, %s347
      %p351 = scmp.eq.s32.totalorder %s33, 0
      %p352 = por %p350, %p351
      %p353 = scmp.ne.s32.totalorder %s345, %s347
      %p354 = scmp.eq.s32.totalorder %s38, 1
      %p355 = por %p353, %p354
      %p356 = scmp.ne.s32.totalorder %s347, %s348
      %p357 = scmp.eq.s32.totalorder %s38, 0
      %p358 = por %p356, %p357
      %p359 = scmp.ne.s32.totalorder %s347, %s348
      %p360 = scmp.eq.s32.totalorder %s39, 1
      %p361 = por %p359, %p360
      %p363 = scmp.ne.s32.totalorder %s348, %s362
      %p364 = scmp.eq.s32.totalorder %s39, 0
      %p365 = por %p363, %p364
      %s367 = sadd.s32 %s366, 1
      %p370 = scmp.eq.s32.totalorder %s33, 1
      %p371 = scmp.ne.s32.totalorder %s366, %s368
      %p372 = scmp.eq.s32.totalorder %s33, 0
      %p373 = por %p371, %p372
      %p374 = scmp.ne.s32.totalorder %s366, %s368
      %p375 = scmp.eq.s32.totalorder %s38, 1
      %p376 = por %p374, %p375
      %p377 = scmp.ne.s32.totalorder %s368, %s369
      %p378 = scmp.eq.s32.totalorder %s38, 0
      %p379 = por %p377, %p378
      %p380 = scmp.ne.s32.totalorder %s368, %s369
      %p381 = scmp.eq.s32.totalorder %s39, 1
      %p382 = por %p380, %p381
      %p384 = scmp.ne.s32.totalorder %s369, %s383
      %p385 = scmp.eq.s32.totalorder %s39, 0
      %p386 = por %p384, %p385
      %s388 = sadd.s32 %s387, 1
      %p391 = scmp.eq.s32.totalorder %s33, 1
      %p392 = scmp.ne.s32.totalorder %s387, %s389
      %p393 = scmp.eq.s32.totalorder %s33, 0
      %p394 = por %p392, %p393
      %p395 = scmp.ne.s32.totalorder %s387, %s389
      %p396 = scmp.eq.s32.totalorder %s38, 1
      %p397 = por %p395, %p396
      %p398 = scmp.ne.s32.totalorder %s389, %s390
      %p399 = scmp.eq.s32.totalorder %s38, 0
      %p400 = por %p398, %p399
      %p401 = scmp.ne.s32.totalorder %s389, %s390
      %p402 = scmp.eq.s32.totalorder %s39, 1
      %p403 = por %p401, %p402
      %p405 = scmp.ne.s32.totalorder %s390, %s404
      %p406 = scmp.eq.s32.totalorder %s39, 0
      %p407 = por %p405, %p406
      %s409 = sadd.s32 %s408, 1
      %p412 = scmp.eq.s32.totalorder %s33, 1
      %p413 = scmp.ne.s32.totalorder %s408, %s410
      %p414 = scmp.eq.s32.totalorder %s33, 0
      %p415 = por %p413, %p414
      %p416 = scmp.ne.s32.totalorder %s408, %s410
      %p417 = scmp.eq.s32.totalorder %s38, 1
      %p418 = por %p416, %p417
      %p419 = scmp.ne.s32.totalorder %s410, %s411
      %p420 = scmp.eq.s32.totalorder %s38, 0
      %p421 = por %p419, %p420
      %p422 = scmp.ne.s32.totalorder %s410, %s411
      %p423 = scmp.eq.s32.totalorder %s39, 1
      %p424 = por %p422, %p423
      %p426 = scmp.ne.s32.totalorder %s411, %s425
      %p427 = scmp.eq.s32.totalorder %s39, 0
      %p428 = por %p426, %p427
      %s430 = sadd.s32 %s429, 1
      %p433 = scmp.eq.s32.totalorder %s33, 1
      %p434 = scmp.ne.s32.totalorder %s429, %s431
      %p435 = scmp.eq.s32.totalorder %s33, 0
      %p436 = por %p434, %p435
      %p437 = scmp.ne.s32.totalorder %s429, %s431
      %p438 = scmp.eq.s32.totalorder %s38, 1
      %p439 = por %p437, %p438
      %p440 = scmp.ne.s32.totalorder %s431, %s432
      %p441 = scmp.eq.s32.totalorder %s38, 0
      %p442 = por %p440, %p441
      %p443 = scmp.ne.s32.totalorder %s431, %s432
      %p444 = scmp.eq.s32.totalorder %s39, 1
      %p445 = por %p443, %p444
      %p447 = scmp.ne.s32.totalorder %s432, %s446
      %p448 = scmp.eq.s32.totalorder %s39, 0
      %p449 = por %p447, %p448
      %s451 = sadd.s32 %s450, 1
      %p454 = scmp.eq.s32.totalorder %s33, 1
      %p455 = scmp.ne.s32.totalorder %s450, %s452
      %p456 = scmp.eq.s32.totalorder %s33, 0
      %p457 = por %p455, %p456
      %p458 = scmp.ne.s32.totalorder %s450, %s452
      %p459 = scmp.eq.s32.totalorder %s38, 1
      %p460 = por %p458, %p459
      %p461 = scmp.ne.s32.totalorder %s452, %s453
      %p462 = scmp.eq.s32.totalorder %s38, 0
      %p463 = por %p461, %p462
      %p464 = scmp.ne.s32.totalorder %s452, %s453
      %p465 = scmp.eq.s32.totalorder %s39, 1
      %p466 = por %p464, %p465
      %p468 = scmp.ne.s32.totalorder %s453, %s467
      %p469 = scmp.eq.s32.totalorder %s39, 0
      %p470 = por %p468, %p469
      %s472 = sadd.s32 %s471, 1
      %p475 = scmp.eq.s32.totalorder %s33, 1
      %p476 = scmp.ne.s32.totalorder %s471, %s473
      %p477 = scmp.eq.s32.totalorder %s33, 0
      %p478 = por %p476, %p477
      %p479 = scmp.ne.s32.totalorder %s471, %s473
      %p480 = scmp.eq.s32.totalorder %s38, 1
      %p481 = por %p479, %p480
      %p482 = scmp.ne.s32.totalorder %s473, %s474
      %p483 = scmp.eq.s32.totalorder %s38, 0
      %p484 = por %p482, %p483
      %p485 = scmp.ne.s32.totalorder %s473, %s474
      %p486 = scmp.eq.s32.totalorder %s39, 1
      %p487 = por %p485, %p486
      %p489 = scmp.ne.s32.totalorder %s474, %s488
      %p490 = scmp.eq.s32.totalorder %s39, 0
      %p491 = por %p489, %p490
      %s493 = sadd.s32 %s492, 1
      %p496 = scmp.eq.s32.totalorder %s33, 1
      %p497 = scmp.ne.s32.totalorder %s492, %s494
      %p498 = scmp.eq.s32.totalorder %s33, 0
      %p499 = por %p497, %p498
      %p500 = scmp.ne.s32.totalorder %s492, %s494
      %p501 = scmp.eq.s32.totalorder %s38, 1
      %p502 = por %p500, %p501
      %p503 = scmp.ne.s32.totalorder %s494, %s495
      %p504 = scmp.eq.s32.totalorder %s38, 0
      %p505 = por %p503, %p504
      %p506 = scmp.ne.s32.totalorder %s494, %s495
      %p507 = scmp.eq.s32.totalorder %s39, 1
      %p508 = por %p506, %p507
      %p510 = scmp.ne.s32.totalorder %s495, %s509
      %p511 = scmp.eq.s32.totalorder %s39, 0
      %p512 = por %p510, %p511
      %s514 = sadd.s32 %s513, 1
      %p517 = scmp.eq.s32.totalorder %s33, 1
      %p518 = scmp.ne.s32.totalorder %s513, %s515
      %p519 = scmp.eq.s32.totalorder %s33, 0
      %p520 = por %p518, %p519
      %p521 = scmp.ne.s32.totalorder %s513, %s515
      %p522 = scmp.eq.s32.totalorder %s38, 1
      %p523 = por %p521, %p522
      %p524 = scmp.ne.s32.totalorder %s515, %s516
      %p525 = scmp.eq.s32.totalorder %s38, 0
      %p526 = por %p524, %p525
      %p527 = scmp.ne.s32.totalorder %s515, %s516
      %p528 = scmp.eq.s32.totalorder %s39, 1
      %p529 = por %p527, %p528
      %p531 = scmp.ne.s32.totalorder %s516, %s530
      %p532 = scmp.eq.s32.totalorder %s39, 0
      %p533 = por %p531, %p532
      %s535 = sadd.s32 %s534, 1
      %p538 = scmp.eq.s32.totalorder %s33, 1
      %p539 = scmp.ne.s32.totalorder %s534, %s536
      %p540 = scmp.eq.s32.totalorder %s33, 0
      %p541 = por %p539, %p540
      %p542 = scmp.ne.s32.totalorder %s534, %s536
      %p543 = scmp.eq.s32.totalorder %s38, 1
      %p544 = por %p542, %p543
      %p545 = scmp.ne.s32.totalorder %s536, %s537
      %p546 = scmp.eq.s32.totalorder %s38, 0
      %p547 = por %p545, %p546
      %p548 = scmp.ne.s32.totalorder %s536, %s537
      %p549 = scmp.eq.s32.totalorder %s39, 1
      %p550 = por %p548, %p549
      %p552 = scmp.ne.s32.totalorder %s537, %s551
      %p553 = scmp.eq.s32.totalorder %s39, 0
      %p554 = por %p552, %p553
      %s555 = ssub.s32 %s33, %s40
      %p556 = scmp.eq.s32.totalorder %s555, 0
      %s558 = sadd.s32 %s557, 1
      %s559 = scalar_select %p556, %s557, %s558
      %p562 = pneg %p556
      %p563 = scmp.eq.s32.totalorder %s33, 1
      %p564 = por %p562, %p563
      %p565 = scmp.ne.s32.totalorder %s557, %s560
      %p566 = scmp.eq.s32.totalorder %s33, 0
      %p567 = por %p565, %p566
      %p568 = scmp.ne.s32.totalorder %s557, %s560
      %p569 = scmp.eq.s32.totalorder %s38, 1
      %p570 = por %p568, %p569
      %p571 = scmp.ne.s32.totalorder %s560, %s561
      %p572 = scmp.eq.s32.totalorder %s38, 0
      %p573 = por %p571, %p572
      %p574 = scmp.ne.s32.totalorder %s560, %s561
      %p575 = scmp.eq.s32.totalorder %s39, 1
      %p576 = por %p574, %p575
      %p578 = scmp.ne.s32.totalorder %s561, %s577
      %p579 = scmp.eq.s32.totalorder %s39, 0
      %p580 = por %p578, %p579
      %p581 = scmp.le.s32.totalorder 1, %s33
      %p582 = scmp.lt.s32.totalorder %s33, 3
      %p583 = pnand %p581, %p582
      %p584 = pneg %p583
      // Predicated region
      $region9: #{mixer_each_chr_forward.1} parent=5 // pred_check
        _
      $region10: #{mixer_each_chr_forward.1} parent=5 // pred_check_branch
        %586 = sbr.rel (%p583) target = $region12
      $region11: #{mixer_each_chr_forward.1} parent=5 // pred_region
        %s587 = ssub.s32 %s33, 1
        // Predicated region
        $region13: #{mixer_each_chr_forward.1} parent=11 // pred_check
          %p588 = pneg %p106
        $region14: #{mixer_each_chr_forward.1} parent=11 // pred_check_branch
          %590 = sbr.rel (%p588) target = $region16
        $region15: #{mixer_each_chr_forward.1} parent=11 // pred_region
          _
        $region16: #{mixer_each_chr_forward.1} parent=11 // pred_fallthru
          _
        // Predicated region
        $region17: #{mixer_each_chr_forward.1} parent=11 // pred_check
          %p591 = pneg %p127
        $region18: #{mixer_each_chr_forward.1} parent=11 // pred_check_branch
          %593 = sbr.rel (%p591) target = $region20
        $region19: #{mixer_each_chr_forward.1} parent=11 // pred_region
          _
        $region20: #{mixer_each_chr_forward.1} parent=11 // pred_fallthru
          _
        // Predicated region
        $region21: #{mixer_each_chr_forward.1} parent=11 // pred_check
          %p594 = pneg %p148
        $region22: #{mixer_each_chr_forward.1} parent=11 // pred_check_branch
          %596 = sbr.rel (%p594) target = $region24
        $region23: #{mixer_each_chr_forward.1} parent=11 // pred_region
          _
        $region24: #{mixer_each_chr_forward.1} parent=11 // pred_fallthru
          _
        // Predicated region
        $region25: #{mixer_each_chr_forward.1} parent=11 // pred_check
          %p597 = pneg %p169
        $region26: #{mixer_each_chr_forward.1} parent=11 // pred_check_branch
          %599 = sbr.rel (%p597) target = $region28
        $region27: #{mixer_each_chr_forward.1} parent=11 // pred_region
          _
        $region28: #{mixer_each_chr_forward.1} parent=11 // pred_fallthru
          _
        // Predicated region
        $region29: #{mixer_each_chr_forward.1} parent=11 // pred_check
          %p600 = pneg %p190
        $region30: #{mixer_each_chr_forward.1} parent=11 // pred_check_branch
          %602 = sbr.rel (%p600) target = $region32
        $region31: #{mixer_each_chr_forward.1} parent=11 // pred_region
          _
        $region32: #{mixer_each_chr_forward.1} parent=11 // pred_fallthru
          _
        // Predicated region
        $region33: #{mixer_each_chr_forward.1} parent=11 // pred_check
          %p603 = pneg %p211
        $region34: #{mixer_each_chr_forward.1} parent=11 // pred_check_branch
          %605 = sbr.rel (%p603) target = $region36
        $region35: #{mixer_each_chr_forward.1} parent=11 // pred_region
          _
        $region36: #{mixer_each_chr_forward.1} parent=11 // pred_fallthru
          _
        // Predicated region
        $region37: #{mixer_each_chr_forward.1} parent=11 // pred_check
          %p606 = pneg %p232
        $region38: #{mixer_each_chr_forward.1} parent=11 // pred_check_branch
          %608 = sbr.rel (%p606) target = $region40
        $region39: #{mixer_each_chr_forward.1} parent=11 // pred_region
          _
        $region40: #{mixer_each_chr_forward.1} parent=11 // pred_fallthru
          _
        // Predicated region
        $region41: #{mixer_each_chr_forward.1} parent=11 // pred_check
          %p609 = pneg %p253
        $region42: #{mixer_each_chr_forward.1} parent=11 // pred_check_branch
          %611 = sbr.rel (%p609) target = $region44
        $region43: #{mixer_each_chr_forward.1} parent=11 // pred_region
          _
        $region44: #{mixer_each_chr_forward.1} parent=11 // pred_fallthru
          _
        // Predicated region
        $region45: #{mixer_each_chr_forward.1} parent=11 // pred_check
          %p612 = pneg %p274
        $region46: #{mixer_each_chr_forward.1} parent=11 // pred_check_branch
          %614 = sbr.rel (%p612) target = $region48
        $region47: #{mixer_each_chr_forward.1} parent=11 // pred_region
          _
        $region48: #{mixer_each_chr_forward.1} parent=11 // pred_fallthru
          _
        // Predicated region
        $region49: #{mixer_each_chr_forward.1} parent=11 // pred_check
          %p615 = pneg %p295
        $region50: #{mixer_each_chr_forward.1} parent=11 // pred_check_branch
          %617 = sbr.rel (%p615) target = $region52
        $region51: #{mixer_each_chr_forward.1} parent=11 // pred_region
          _
        $region52: #{mixer_each_chr_forward.1} parent=11 // pred_fallthru
          _
        // Predicated region
        $region53: #{mixer_each_chr_forward.1} parent=11 // pred_check
          %p618 = pneg %p316
        $region54: #{mixer_each_chr_forward.1} parent=11 // pred_check_branch
          %620 = sbr.rel (%p618) target = $region56
        $region55: #{mixer_each_chr_forward.1} parent=11 // pred_region
          _
        $region56: #{mixer_each_chr_forward.1} parent=11 // pred_fallthru
          _
        // Predicated region
        $region57: #{mixer_each_chr_forward.1} parent=11 // pred_check
          %p621 = pneg %p337
        $region58: #{mixer_each_chr_forward.1} parent=11 // pred_check_branch
          %623 = sbr.rel (%p621) target = $region60
        $region59: #{mixer_each_chr_forward.1} parent=11 // pred_region
          _
        $region60: #{mixer_each_chr_forward.1} parent=11 // pred_fallthru
          _
        // Predicated region
        $region61: #{mixer_each_chr_forward.1} parent=11 // pred_check
          %p624 = pneg %p358
        $region62: #{mixer_each_chr_forward.1} parent=11 // pred_check_branch
          %626 = sbr.rel (%p624) target = $region64
        $region63: #{mixer_each_chr_forward.1} parent=11 // pred_region
          _
        $region64: #{mixer_each_chr_forward.1} parent=11 // pred_fallthru
          _
        // Predicated region
        $region65: #{mixer_each_chr_forward.1} parent=11 // pred_check
          %p627 = pneg %p379
        $region66: #{mixer_each_chr_forward.1} parent=11 // pred_check_branch
          %629 = sbr.rel (%p627) target = $region68
        $region67: #{mixer_each_chr_forward.1} parent=11 // pred_region
          _
        $region68: #{mixer_each_chr_forward.1} parent=11 // pred_fallthru
          _
        // Predicated region
        $region69: #{mixer_each_chr_forward.1} parent=11 // pred_check
          %p630 = pneg %p400
        $region70: #{mixer_each_chr_forward.1} parent=11 // pred_check_branch
          %632 = sbr.rel (%p630) target = $region72
        $region71: #{mixer_each_chr_forward.1} parent=11 // pred_region
          _
        $region72: #{mixer_each_chr_forward.1} parent=11 // pred_fallthru
          _
        // Predicated region
        $region73: #{mixer_each_chr_forward.1} parent=11 // pred_check
          %p633 = pneg %p421
        $region74: #{mixer_each_chr_forward.1} parent=11 // pred_check_branch
          %635 = sbr.rel (%p633) target = $region76
        $region75: #{mixer_each_chr_forward.1} parent=11 // pred_region
          _
        $region76: #{mixer_each_chr_forward.1} parent=11 // pred_fallthru
          _
        // Predicated region
        $region77: #{mixer_each_chr_forward.1} parent=11 // pred_check
          %p636 = pneg %p442
        $region78: #{mixer_each_chr_forward.1} parent=11 // pred_check_branch
          %638 = sbr.rel (%p636) target = $region80
        $region79: #{mixer_each_chr_forward.1} parent=11 // pred_region
          _
        $region80: #{mixer_each_chr_forward.1} parent=11 // pred_fallthru
          _
        // Predicated region
        $region81: #{mixer_each_chr_forward.1} parent=11 // pred_check
          %p639 = pneg %p463
        $region82: #{mixer_each_chr_forward.1} parent=11 // pred_check_branch
          %641 = sbr.rel (%p639) target = $region84
        $region83: #{mixer_each_chr_forward.1} parent=11 // pred_region
          _
        $region84: #{mixer_each_chr_forward.1} parent=11 // pred_fallthru
          _
        // Predicated region
        $region85: #{mixer_each_chr_forward.1} parent=11 // pred_check
          %p642 = pneg %p484
        $region86: #{mixer_each_chr_forward.1} parent=11 // pred_check_branch
          %644 = sbr.rel (%p642) target = $region88
        $region87: #{mixer_each_chr_forward.1} parent=11 // pred_region
          _
        $region88: #{mixer_each_chr_forward.1} parent=11 // pred_fallthru
          _
        // Predicated region
        $region89: #{mixer_each_chr_forward.1} parent=11 // pred_check
          %p645 = pneg %p505
        $region90: #{mixer_each_chr_forward.1} parent=11 // pred_check_branch
          %647 = sbr.rel (%p645) target = $region92
        $region91: #{mixer_each_chr_forward.1} parent=11 // pred_region
          _
        $region92: #{mixer_each_chr_forward.1} parent=11 // pred_fallthru
          _
        // Predicated region
        $region93: #{mixer_each_chr_forward.1} parent=11 // pred_check
          %p648 = pneg %p526
        $region94: #{mixer_each_chr_forward.1} parent=11 // pred_check_branch
          %650 = sbr.rel (%p648) target = $region96
        $region95: #{mixer_each_chr_forward.1} parent=11 // pred_region
          _
        $region96: #{mixer_each_chr_forward.1} parent=11 // pred_fallthru
          _
        // Predicated region
        $region97: #{mixer_each_chr_forward.1} parent=11 // pred_check
          %p651 = pneg %p547
        $region98: #{mixer_each_chr_forward.1} parent=11 // pred_check_branch
          %653 = sbr.rel (%p651) target = $region100
        $region99: #{mixer_each_chr_forward.1} parent=11 // pred_region
          _
        $region100: #{mixer_each_chr_forward.1} parent=11 // pred_fallthru
          _
      $region12: #{mixer_each_chr_forward.1} parent=5 // pred_fallthru
        _
      %p654 = scmp.lt.s32.totalorder %s33, 2
      // Predicated region
      $region101: #{mixer_each_chr_forward.1} parent=5 // pred_check
        %p655 = pneg %p654
      $region102: #{mixer_each_chr_forward.1} parent=5 // pred_check_branch
        %657 = sbr.rel (%p655) target = $region104
      $region103: #{mixer_each_chr_forward.1} parent=5 // pred_region
        // Predicated region
        $region105: #{mixer_each_chr_forward.1} parent=103 // pred_check
          %p658 = pneg %p53
        $region106: #{mixer_each_chr_forward.1} parent=103 // pred_check_branch
          %660 = sbr.rel (%p658) target = $region108
        $region107: #{mixer_each_chr_forward.1} parent=103 // pred_region
          %p661 = scmp.lt.s32.totalorder %s33, 1
          %s662 = scalar_select %p661, %s33, 1
          %s663 = smul.addr %s662, 2
          %s664 = smul.addr %s663, 8
          %s665 = scalar_lea.vmem %s0, %s664
        $region108: #{mixer_each_chr_forward.1} parent=103 // pred_fallthru
          _
        // Predicated region
        $region109: #{mixer_each_chr_forward.1} parent=103 // pred_check
          %p666 = pneg %p79
        $region110: #{mixer_each_chr_forward.1} parent=103 // pred_check_branch
          %668 = sbr.rel (%p666) target = $region112
        $region111: #{mixer_each_chr_forward.1} parent=103 // pred_region
          %p669 = scmp.lt.s32.totalorder %s33, 1
          %s670 = scalar_select %p669, %s33, 1
          %s671 = smul.addr %s670, 2
          %s672 = smul.addr %s671, 8
          %s673 = scalar_lea.vmem %s1, %s672
        $region112: #{mixer_each_chr_forward.1} parent=103 // pred_fallthru
          _
      $region104: #{mixer_each_chr_forward.1} parent=5 // pred_fallthru
        _
      %p674 = scmp.le.s32.totalorder 1, %s33
      %p675 = scmp.lt.s32.totalorder %s33, 3
      %p676 = pnand %p674, %p675
      %p677 = pneg %p676
      // Predicated region
      $region113: #{mixer_each_chr_forward.1} parent=5 // pred_check
        _
      $region114: #{mixer_each_chr_forward.1} parent=5 // pred_check_branch
        %679 = sbr.rel (%p676) target = $region116
      $region115: #{mixer_each_chr_forward.1} parent=5 // pred_region
        %s680 = ssub.s32 %s33, 1
        %p681 = scmp.lt.s32.totalorder %s38, 1
        %s682 = scalar_select %p681, %s38, 1
        %s683 = smul.addr %s682, 2
        %s684 = smul.addr %s683, 8
        %s685 = scalar_lea.vmem %s0, %s684
        %p686 = pneg %p59
        %p687 = pneg %p56
        %p688 = scmp.lt.s32.totalorder %s38, 1
        %s689 = scalar_select %p688, %s38, 1
        %s690 = smul.addr %s689, 2
        %s691 = smul.addr %s690, 8
        %s692 = scalar_lea.vmem %s1, %s691
        %p693 = pneg %p85
        %p694 = pneg %p82
        %p695 = pneg %p106
        %p696 = pneg %p103
        %p697 = pneg %p127
        %p698 = pneg %p124
        %p699 = pneg %p148
        %p700 = pneg %p145
        %p701 = pneg %p169
        %p702 = pneg %p166
        %p703 = pneg %p190
        %p704 = pneg %p187
        %p705 = pneg %p211
        %p706 = pneg %p208
        %p707 = pneg %p232
        %p708 = pneg %p229
        %p709 = pneg %p253
        %p710 = pneg %p250
        %p711 = pneg %p274
        %p712 = pneg %p271
        %p713 = pneg %p295
        %p714 = pneg %p292
        %p715 = pneg %p316
        %p716 = pneg %p313
        %p717 = pneg %p337
        %p718 = pneg %p334
        %p719 = pneg %p358
        %p720 = pneg %p355
        %p721 = pneg %p379
        %p722 = pneg %p376
        %p723 = pneg %p400
        %p724 = pneg %p397
        %p725 = pneg %p421
        %p726 = pneg %p418
        %p727 = pneg %p442
        %p728 = pneg %p439
        %p729 = pneg %p463
        %p730 = pneg %p460
        %p731 = pneg %p484
        %p732 = pneg %p481
        %p733 = pneg %p505
        %p734 = pneg %p502
        %p735 = pneg %p526
        %p736 = pneg %p523
        %p737 = pneg %p547
        %p738 = pneg %p544
        %p739 = pneg %p573
        %p740 = pneg %p570
        %s741 = sand.u32 %s560, 1
        %s742 = scalar_lea.sflag [#allocation3], %s741
        %s743 = sand.u32 %s560, 1
        %s744 = smul.addr %s743, 16
        %s745 = scalar_lea.vmem [#allocation2], %s744
        %p746 = scmp.lt.s32.totalorder %s38, 1
        %s747 = scalar_select %p746, %s38, 1
        %s748 = smul.addr %s747, 2
        %s749 = smul.addr %s748, 8
        %s750 = scalar_lea.vmem %s0, %s749
        %p751 = scmp.lt.s32.totalorder %s38, 1
        %s752 = scalar_select %p751, %s38, 1
        %s753 = smul.addr %s752, 2
        %s754 = smul.addr %s753, 8
        %s755 = scalar_lea.vmem %s1, %s754
        %v756 = vld [vmem:[%s750] sm:$0xff]
        %v757 = vld [vmem:[%s750 + $0x8] sm:$0xff]
        %v758 = vld [vmem:[%s755] sm:$0xff]
        %v759 = vld [vmem:[%s755 + $0x8] sm:$0xff]
        %v760 = vld [vmem:[%s2] sm:$0xff]
        %v761 = vld [vmem:[%s2 + $0x8] sm:$0xff]
        %v762 = vld [vmem:[%s3] sm:$0xff]
        %v763 = vld [vmem:[%s3 + $0x8] sm:$0xff]
        %v764 = vld [vmem:[%s3 + $0x10] sm:$0xff]
        %v765 = vld [vmem:[%s3 + $0x18] sm:$0xff]
        %v766 = vld [vmem:[%s4] sm:$0x1]
        %v767 = vld [vmem:[%s5] sm:$0x1]
        %vm768 = vcmask 261120
        %v769 = vsel %vm768, %v756, 0.0
        %770 = vadd.xlane.f32.xlu0 %v769
        %v771 = vpop.xlane.xlu0 %770
        %v772 = vsel %vm768, %v757, 0.0
        %773 = vadd.xlane.f32.xlu0 %v772
        %v774 = vpop.xlane.xlu0 %773
        %v775 = vrcp.pop 32.0
        %v776 = vmul.f32 32.0, %v775
        %v777 = vsub.f32 1.0, %v776
        %v778 = vmul.f32 %v775, %v777
        %v779 = vadd.f32 %v775, %v778
        %vm780 = vweird.f32 %v775
        %v781 = vsel %vm780, %v775, %v779
        %v782 = vmul.f32 %v771, %v781
        %v783 = vmul.f32 %v774, %v781
        %v784 = vsub.f32 %v756, %v782
        %v785 = vsub.f32 %v757, %v783
        %v786 = vmul.f32 %v784, %v784
        %v787 = vmul.f32 %v785, %v785
        %v788 = vsel %vm768, %v786, 0.0
        %789 = vadd.xlane.f32.xlu0 %v788
        %v790 = vpop.xlane.xlu0 %789
        %v791 = vsel %vm768, %v787, 0.0
        %792 = vadd.xlane.f32.xlu0 %v791
        %v793 = vpop.xlane.xlu0 %792
        %v794 = vmul.f32 %v790, %v781
        %v795 = vmul.f32 %v793, %v781
        %v796 = vadd.f32 %v794, 1e-05
        %v797 = vadd.f32 %v795, 1e-05
        %v798 = vrsqrt.pop %v796
        %v799 = vmul.f32 %v798, %v796
        %v800 = vmul.f32 %v799, %v798
        %v801 = vmul.f32 0.5, %v800
        %v802 = vsub.f32 1.5, %v801
        %v803 = vmul.f32 %v798, %v802
        %vm804 = vweird.f32 %v796
        %vm805 = vweird.f32 %v798
        %vm806 = vmor %vm804, %vm805
        %v807 = vsel %vm806, %v798, %v803
        %v808 = vrsqrt.pop %v797
        %v809 = vmul.f32 %v808, %v797
        %v810 = vmul.f32 %v809, %v808
        %v811 = vmul.f32 0.5, %v810
        %v812 = vsub.f32 1.5, %v811
        %v813 = vmul.f32 %v808, %v812
        %vm814 = vweird.f32 %v797
        %vm815 = vweird.f32 %v808
        %vm816 = vmor %vm814, %vm815
        %v817 = vsel %vm816, %v808, %v813
        %v818 = vmul.f32 %v784, %v807
        %v819 = vmul.f32 %v785, %v817
        %v821 = vperm.slane %v766, 0
        %v823 = vmul.f32 %v818, %v821
        %v824 = vmul.f32 %v819, %v821
        %v826 = vperm.slane %v767, 0
        %v828 = vadd.f32 %v823, %v826
        %v829 = vadd.f32 %v824, %v826
        %v830 = vmul.f32 %v828, %v758
        %v831 = vmul.f32 %v829, %v759
        %v832 = vadd.f32 %v830, %v760
        %v833 = vadd.f32 %v831, %v761
        %v834 = vld [vmem:[%s6] sm:$0xff]
        %v835 = vld [vmem:[%s6 + $0x8] sm:$0xff]
        %v836 = vld [vmem:[%s6 + $0x10] sm:$0xff]
        %v837 = vld [vmem:[%s6 + $0x18] sm:$0xff]
        %v838 = vld [vmem:[%s7] sm:$0x1]
        %v840 = vperm.slane %v838, 0
        %v843 = vsel %vm768, %v832, 0
        %v846 = vsel %vm768, %v833, 0
        %848 = vmatpush.msra.mxu0 0.0
        %849 = vmatpush.msra.mxu0 0.0
        %850 = vmatpush.msra.mxu0 0.0
        %851 = vmatpush.msra.mxu0 0.0
        %852 = vmatpush.msra.mxu0 0.0
        %853 = vmatpush.msra.mxu0 0.0
        %854 = vmatpush.msra.mxu0 0.0
        %855 = vmatpush.msra.mxu0 0.0
        %856 = vmatpush.msra.mxu0 0.0
        %857 = vmatpush.msra.mxu0 0.0
        %858 = vmatpush.msra.mxu0 0.0
        %859 = vmatpush.msra.mxu0 0.0
        %860 = vmatpush.msra.mxu0 %v837
        %861 = vmatpush.msra.mxu0 %v836
        %862 = vmatpush.msra.mxu0 %v835
        %863 = vmatpush.msra.mxu0 %v834
        %864 = vmatmul.f32.gmra.mxu0 %v843
        %v865 = vpop.f32.mrf.mxu0
        %v866 = vadd.f32 %v840, %v865
        %867 = vmatmul.f32.gmra.mxu0 %v846
        %v868 = vpop.f32.mrf.mxu0
        %v869 = vadd.f32 %v840, %v868
        %870 = vdwg.mxu0
        %v871 = vmul.f32 %v866, 0.5
        %v872 = vmul.f32 %v869, 0.5
        %v873 = vmul.f32 %v866, 0.70710677
        %v874 = vmul.f32 %v869, 0.70710677
        %v875 = vand.u32 2147483647, %v873
        %v876 = vand.u32 2147483647, %v874
        %v877 = vmul.f32 %v875, 0.3275911
        %v878 = vmul.f32 %v876, 0.3275911
        %v879 = vadd.f32 %v877, 1.0
        %v880 = vadd.f32 %v878, 1.0
        %v881 = vrcp.pop %v879
        %v882 = vmul.f32 %v879, %v881
        %v883 = vsub.f32 1.0, %v882
        %v884 = vmul.f32 %v881, %v883
        %v885 = vadd.f32 %v881, %v884
        %vm886 = vweird.f32 %v879
        %vm887 = vweird.f32 %v881
        %vm888 = vmor %vm886, %vm887
        %v889 = vsel %vm888, %v881, %v885
        %v890 = vand.u32 2147483647, %v879
        %vm891 = vcmp.eq.f32.partialorder %v890, 8.507059e+37
        %v892 = vand.u32 %v879, 2147483648
        %v893 = vor.u32 1.1754944e-38, %v892
        %v894 = vsel %vm891, %v893, %v889
        %v895 = vmul.f32 1.0, %v894
        %v896 = vrcp.pop %v880
        %v897 = vmul.f32 %v880, %v896
        %v898 = vsub.f32 1.0, %v897
        %v899 = vmul.f32 %v896, %v898
        %v900 = vadd.f32 %v896, %v899
        %vm901 = vweird.f32 %v880
        %vm902 = vweird.f32 %v896
        %vm903 = vmor %vm901, %vm902
        %v904 = vsel %vm903, %v896, %v900
        %v905 = vand.u32 2147483647, %v880
        %vm906 = vcmp.eq.f32.partialorder %v905, 8.507059e+37
        %v907 = vand.u32 %v880, 2147483648
        %v908 = vor.u32 1.1754944e-38, %v907
        %v909 = vsel %vm906, %v908, %v904
        %v910 = vmul.f32 1.0, %v909
        %v911 = vmul.f32 %v895, 1.0614054
        %v912 = vmul.f32 %v910, 1.0614054
        %v913 = vadd.f32 %v911, -1.4531521
        %v914 = vadd.f32 %v912, -1.4531521
        %v915 = vmul.f32 %v913, %v895
        %v916 = vmul.f32 %v914, %v910
        %v917 = vadd.f32 %v915, 1.4214138
        %v918 = vadd.f32 %v916, 1.4214138
        %v919 = vmul.f32 %v917, %v895
        %v920 = vmul.f32 %v918, %v910
        %v921 = vadd.f32 %v919, -0.28449672
        %v922 = vadd.f32 %v920, -0.28449672
        %v923 = vmul.f32 %v921, %v895
        %v924 = vmul.f32 %v922, %v910
        %v925 = vadd.f32 %v923, 0.2548296
        %v926 = vadd.f32 %v924, 0.2548296
        %v927 = vmul.f32 %v925, %v895
        %v928 = vmul.f32 %v926, %v910
        %v929 = vsub.f32 0.0, %v875
        %v930 = vsub.f32 0.0, %v876
        %v931 = vmul.f32 %v929, %v875
        %v932 = vmul.f32 %v930, %v876
        %v933 = vmul.f32 %v931, 1.442695
        %v934 = vpow.pop %v933
        %v935 = vmul.f32 %v932, 1.442695
        %v936 = vpow.pop %v935
        %v937 = vmul.f32 %v927, %v934
        %v938 = vmul.f32 %v928, %v936
        %v939 = vsub.f32 1.0, %v937
        %v940 = vsub.f32 1.0, %v938
        %vm941 = vcmp.ge.f32.partialorder %v873, 0.0
        %vm942 = vcmp.ge.f32.partialorder %v874, 0.0
        %v943 = vsub.f32 0.0, %v939
        %v944 = vsub.f32 0.0, %v940
        %v945 = vsel %vm941, %v939, %v943
        %v946 = vsel %vm942, %v940, %v944
        %v947 = vadd.f32 %v945, 1.0
        %v948 = vadd.f32 %v946, 1.0
        %v949 = vmul.f32 %v871, %v947
        %v950 = vmul.f32 %v872, %v948
        %v951 = vld [vmem:[%s8] sm:$0xff]
        %v952 = vld [vmem:[%s8 + $0x8] sm:$0xff]
        %v953 = vld [vmem:[%s8 + $0x10] sm:$0xff]
        %v954 = vld [vmem:[%s8 + $0x18] sm:$0xff]
        %v955 = vld [vmem:[%s9] sm:$0x1]
        %v957 = vperm.slane %v955, 0
        %v960 = vsel %vm768, %v949, 0
        %v963 = vsel %vm768, %v950, 0
        %965 = vmatpush.msra.mxu0 0.0
        %966 = vmatpush.msra.mxu0 0.0
        %967 = vmatpush.msra.mxu0 0.0
        %968 = vmatpush.msra.mxu0 0.0
        %969 = vmatpush.msra.mxu0 0.0
        %970 = vmatpush.msra.mxu0 0.0
        %971 = vmatpush.msra.mxu0 0.0
        %972 = vmatpush.msra.mxu0 0.0
        %973 = vmatpush.msra.mxu0 0.0
        %974 = vmatpush.msra.mxu0 0.0
        %975 = vmatpush.msra.mxu0 0.0
        %976 = vmatpush.msra.mxu0 0.0
        %977 = vmatpush.msra.mxu0 %v954
        %978 = vmatpush.msra.mxu0 %v953
        %979 = vmatpush.msra.mxu0 %v952
        %980 = vmatpush.msra.mxu0 %v951
        %981 = vmatmul.f32.gmra.mxu0 %v960
        %v982 = vpop.f32.mrf.mxu0
        %v983 = vadd.f32 %v957, %v982
        %984 = vmatmul.f32.gmra.mxu0 %v963
        %v985 = vpop.f32.mrf.mxu0
        %v986 = vadd.f32 %v957, %v985
        %987 = vdwg.mxu0
        %v988 = vmul.f32 %v983, %v758
        %v989 = vmul.f32 %v986, %v759
        %v990 = vld [vmem:[%s10] sm:$0xff]
        %v991 = vld [vmem:[%s10 + $0x8] sm:$0xff]
        %v992 = vld [vmem:[%s10 + $0x10] sm:$0xff]
        %v993 = vld [vmem:[%s10 + $0x18] sm:$0xff]
        %v994 = vld [vmem:[%s11] sm:$0x1]
        %v996 = vperm.slane %v994, 0
        %998 = vmatpush.msra.mxu0 0.0
        %999 = vmatpush.msra.mxu0 0.0
        %1000 = vmatpush.msra.mxu0 0.0
        %1001 = vmatpush.msra.mxu0 0.0
        %1002 = vmatpush.msra.mxu0 0.0
        %1003 = vmatpush.msra.mxu0 0.0
        %1004 = vmatpush.msra.mxu0 0.0
        %1005 = vmatpush.msra.mxu0 0.0
        %1006 = vmatpush.msra.mxu0 0.0
        %1007 = vmatpush.msra.mxu0 0.0
        %1008 = vmatpush.msra.mxu0 0.0
        %1009 = vmatpush.msra.mxu0 0.0
        %1010 = vmatpush.msra.mxu0 %v993
        %1011 = vmatpush.msra.mxu0 %v992
        %1012 = vmatpush.msra.mxu0 %v991
        %1013 = vmatpush.msra.mxu0 %v990
        %1014 = vmatmul.f32.gmra.mxu0 %v843
        %v1015 = vpop.f32.mrf.mxu0
        %v1016 = vadd.f32 %v996, %v1015
        %1017 = vmatmul.f32.gmra.mxu0 %v846
        %v1018 = vpop.f32.mrf.mxu0
        %v1019 = vadd.f32 %v996, %v1018
        %1020 = vdwg.mxu0
        %v1021 = vmul.f32 %v1016, 0.5
        %v1022 = vmul.f32 %v1019, 0.5
        %v1023 = vmul.f32 %v1016, 0.70710677
        %v1024 = vmul.f32 %v1019, 0.70710677
        %v1025 = vand.u32 2147483647, %v1023
        %v1026 = vand.u32 2147483647, %v1024
        %v1027 = vmul.f32 %v1025, 0.3275911
        %v1028 = vmul.f32 %v1026, 0.3275911
        %v1029 = vadd.f32 %v1027, 1.0
        %v1030 = vadd.f32 %v1028, 1.0
        %v1031 = vrcp.pop %v1029
        %v1032 = vmul.f32 %v1029, %v1031
        %v1033 = vsub.f32 1.0, %v1032
        %v1034 = vmul.f32 %v1031, %v1033
        %v1035 = vadd.f32 %v1031, %v1034
        %vm1036 = vweird.f32 %v1029
        %vm1037 = vweird.f32 %v1031
        %vm1038 = vmor %vm1036, %vm1037
        %v1039 = vsel %vm1038, %v1031, %v1035
        %v1040 = vand.u32 2147483647, %v1029
        %vm1041 = vcmp.eq.f32.partialorder %v1040, 8.507059e+37
        %v1042 = vand.u32 %v1029, 2147483648
        %v1043 = vor.u32 1.1754944e-38, %v1042
        %v1044 = vsel %vm1041, %v1043, %v1039
        %v1045 = vmul.f32 1.0, %v1044
        %v1046 = vrcp.pop %v1030
        %v1047 = vmul.f32 %v1030, %v1046
        %v1048 = vsub.f32 1.0, %v1047
        %v1049 = vmul.f32 %v1046, %v1048
        %v1050 = vadd.f32 %v1046, %v1049
        %vm1051 = vweird.f32 %v1030
        %vm1052 = vweird.f32 %v1046
        %vm1053 = vmor %vm1051, %vm1052
        %v1054 = vsel %vm1053, %v1046, %v1050
        %v1055 = vand.u32 2147483647, %v1030
        %vm1056 = vcmp.eq.f32.partialorder %v1055, 8.507059e+37
        %v1057 = vand.u32 %v1030, 2147483648
        %v1058 = vor.u32 1.1754944e-38, %v1057
        %v1059 = vsel %vm1056, %v1058, %v1054
        %v1060 = vmul.f32 1.0, %v1059
        %v1061 = vmul.f32 %v1045, 1.0614054
        %v1062 = vmul.f32 %v1060, 1.0614054
        %v1063 = vadd.f32 %v1061, -1.4531521
        %v1064 = vadd.f32 %v1062, -1.4531521
        %v1065 = vmul.f32 %v1063, %v1045
        %v1066 = vmul.f32 %v1064, %v1060
        %v1067 = vadd.f32 %v1065, 1.4214138
        %v1068 = vadd.f32 %v1066, 1.4214138
        %v1069 = vmul.f32 %v1067, %v1045
        %v1070 = vmul.f32 %v1068, %v1060
        %v1071 = vadd.f32 %v1069, -0.28449672
        %v1072 = vadd.f32 %v1070, -0.28449672
        %v1073 = vmul.f32 %v1071, %v1045
        %v1074 = vmul.f32 %v1072, %v1060
        %v1075 = vadd.f32 %v1073, 0.2548296
        %v1076 = vadd.f32 %v1074, 0.2548296
        %v1077 = vmul.f32 %v1075, %v1045
        %v1078 = vmul.f32 %v1076, %v1060
        %v1079 = vsub.f32 0.0, %v1025
        %v1080 = vsub.f32 0.0, %v1026
        %v1081 = vmul.f32 %v1079, %v1025
        %v1082 = vmul.f32 %v1080, %v1026
        %v1083 = vmul.f32 %v1081, 1.442695
        %v1084 = vpow.pop %v1083
        %v1085 = vmul.f32 %v1082, 1.442695
        %v1086 = vpow.pop %v1085
        %v1087 = vmul.f32 %v1077, %v1084
        %v1088 = vmul.f32 %v1078, %v1086
        %v1089 = vsub.f32 1.0, %v1087
        %v1090 = vsub.f32 1.0, %v1088
        %vm1091 = vcmp.ge.f32.partialorder %v1023, 0.0
        %vm1092 = vcmp.ge.f32.partialorder %v1024, 0.0
        %v1093 = vsub.f32 0.0, %v1089
        %v1094 = vsub.f32 0.0, %v1090
        %v1095 = vsel %vm1091, %v1089, %v1093
        %v1096 = vsel %vm1092, %v1090, %v1094
        %v1097 = vadd.f32 %v1095, 1.0
        %v1098 = vadd.f32 %v1096, 1.0
        %v1099 = vmul.f32 %v1021, %v1097
        %v1100 = vmul.f32 %v1022, %v1098
        %v1101 = vld [vmem:[%s12] sm:$0xff]
        %v1102 = vld [vmem:[%s12 + $0x8] sm:$0xff]
        %v1103 = vld [vmem:[%s12 + $0x10] sm:$0xff]
        %v1104 = vld [vmem:[%s12 + $0x18] sm:$0xff]
        %v1105 = vld [vmem:[%s13] sm:$0x1]
        %v1107 = vperm.slane %v1105, 0
        %v1110 = vsel %vm768, %v1099, 0
        %v1113 = vsel %vm768, %v1100, 0
        %1115 = vmatpush.msra.mxu0 0.0
        %1116 = vmatpush.msra.mxu0 0.0
        %1117 = vmatpush.msra.mxu0 0.0
        %1118 = vmatpush.msra.mxu0 0.0
        %1119 = vmatpush.msra.mxu0 0.0
        %1120 = vmatpush.msra.mxu0 0.0
        %1121 = vmatpush.msra.mxu0 0.0
        %1122 = vmatpush.msra.mxu0 0.0
        %1123 = vmatpush.msra.mxu0 0.0
        %1124 = vmatpush.msra.mxu0 0.0
        %1125 = vmatpush.msra.mxu0 0.0
        %1126 = vmatpush.msra.mxu0 0.0
        %1127 = vmatpush.msra.mxu0 %v1104
        %1128 = vmatpush.msra.mxu0 %v1103
        %1129 = vmatpush.msra.mxu0 %v1102
        %1130 = vmatpush.msra.mxu0 %v1101
        %1131 = vmatmul.f32.gmra.mxu0 %v1110
        %v1132 = vpop.f32.mrf.mxu0
        %v1133 = vadd.f32 %v1107, %v1132
        %1134 = vmatmul.f32.gmra.mxu0 %v1113
        %v1135 = vpop.f32.mrf.mxu0
        %v1136 = vadd.f32 %v1107, %v1135
        %1137 = vdwg.mxu0
        %v1138 = vmul.f32 %v1133, %v758
        %v1139 = vmul.f32 %v1136, %v759
        %1140 = vxpose.xlu0.b32.start [1/16] %v988, 128
        %1141 = vxpose.xlu0.b32.cont [2/16] %v989, 128
        %1142 = vxpose.xlu0.b32.cont [3/16] 0.0, 128
        %1143 = vxpose.xlu0.b32.cont [4/16] 0.0, 128
        %1144 = vxpose.xlu0.b32.cont [5/16] 0.0, 128
        %1145 = vxpose.xlu0.b32.cont [6/16] 0.0, 128
        %1146 = vxpose.xlu0.b32.cont [7/16] 0.0, 128
        %1147 = vxpose.xlu0.b32.cont [8/16] 0.0, 128
        %1148 = vxpose.xlu0.b32.cont [9/16] 0.0, 128
        %1149 = vxpose.xlu0.b32.cont [10/16] 0.0, 128
        %1150 = vxpose.xlu0.b32.cont [11/16] 0.0, 128
        %1151 = vxpose.xlu0.b32.cont [12/16] 0.0, 128
        %1152 = vxpose.xlu0.b32.cont [13/16] 0.0, 128
        %1153 = vxpose.xlu0.b32.cont [14/16] 0.0, 128
        %1154 = vxpose.xlu0.b32.cont [15/16] 0.0, 128
        %1155 = vxpose.xlu0.b32.end [16/16] 0.0, 128
        %v1156 = vpop.trf.xlu0
        %v1157 = vpop.trf.xlu0
        %v1158 = vpop.trf.xlu0
        %v1159 = vpop.trf.xlu0
        %v1160 = vpop.trf.xlu0
        %v1161 = vpop.trf.xlu0
        %v1162 = vpop.trf.xlu0
        %v1163 = vpop.trf.xlu0
        %v1164 = vpop.trf.xlu0
        %v1165 = vpop.trf.xlu0
        %v1166 = vpop.trf.xlu0
        %v1167 = vpop.trf.xlu0
        %v1168 = vpop.trf.xlu0
        %v1169 = vpop.trf.xlu0
        %v1170 = vpop.trf.xlu0
        %v1171 = vpop.trf.xlu0
        %vm1172 = vcmask 130048
        %v1174 = vsel %vm1172, %v1156, 0
        %v1177 = vsel %vm1172, %v1157, 0
        %v1180 = vsel %vm1172, %v1158, 0
        %v1183 = vsel %vm1172, %v1159, 0
        %1185 = vmatpush.msra.mxu0 0.0
        %1186 = vmatpush.msra.mxu0 0.0
        %1187 = vmatpush.msra.mxu0 0.0
        %1188 = vmatpush.msra.mxu0 0.0
        %1189 = vmatpush.msra.mxu0 0.0
        %1190 = vmatpush.msra.mxu0 0.0
        %1191 = vmatpush.msra.mxu0 0.0
        %1192 = vmatpush.msra.mxu0 0.0
        %1193 = vmatpush.msra.mxu0 0.0
        %1194 = vmatpush.msra.mxu0 0.0
        %1195 = vmatpush.msra.mxu0 0.0
        %1196 = vmatpush.msra.mxu0 0.0
        %1197 = vmatpush.msra.mxu0 0.0
        %1198 = vmatpush.msra.mxu0 0.0
        %1199 = vmatpush.msra.mxu0 %v831
        %1200 = vmatpush.msra.mxu0 %v830
        %1201 = vmatmul.f32.gmra.mxu0 %v1174
        %v1202 = vpop.f32.mrf.mxu0
        %v1203 = vadd.f32 0.0, %v1202
        %1204 = vmatmul.f32.gmra.mxu0 %v1177
        %v1205 = vpop.f32.mrf.mxu0
        %v1206 = vadd.f32 0.0, %v1205
        %1207 = vmatmul.f32.gmra.mxu0 %v1180
        %v1208 = vpop.f32.mrf.mxu0
        %v1209 = vadd.f32 0.0, %v1208
        %1210 = vmatmul.f32.gmra.mxu0 %v1183
        %v1211 = vpop.f32.mrf.mxu0
        %v1212 = vadd.f32 0.0, %v1211
        %1213 = vdwg.mxu0
        %v1214 = vmul.f32 %v1203, 0.5
        %v1215 = vmul.f32 %v1206, 0.5
        %v1216 = vmul.f32 %v1209, 0.5
        %v1217 = vmul.f32 %v1212, 0.5
        %v1218 = vmul.f32 %v1203, 0.70710677
        %v1219 = vmul.f32 %v1206, 0.70710677
        %v1220 = vmul.f32 %v1209, 0.70710677
        %v1221 = vmul.f32 %v1212, 0.70710677
        %v1222 = vand.u32 2147483647, %v1218
        %v1223 = vand.u32 2147483647, %v1219
        %v1224 = vand.u32 2147483647, %v1220
        %v1225 = vand.u32 2147483647, %v1221
        %v1226 = vmul.f32 %v1222, 0.3275911
        %v1227 = vmul.f32 %v1223, 0.3275911
        %v1228 = vmul.f32 %v1224, 0.3275911
        %v1229 = vmul.f32 %v1225, 0.3275911
        %v1230 = vadd.f32 %v1226, 1.0
        %v1231 = vadd.f32 %v1227, 1.0
        %v1232 = vadd.f32 %v1228, 1.0
        %v1233 = vadd.f32 %v1229, 1.0
        %v1234 = vrcp.pop %v1230
        %v1235 = vmul.f32 %v1230, %v1234
        %v1236 = vsub.f32 1.0, %v1235
        %v1237 = vmul.f32 %v1234, %v1236
        %v1238 = vadd.f32 %v1234, %v1237
        %vm1239 = vweird.f32 %v1230
        %vm1240 = vweird.f32 %v1234
        %vm1241 = vmor %vm1239, %vm1240
        %v1242 = vsel %vm1241, %v1234, %v1238
        %v1243 = vand.u32 2147483647, %v1230
        %vm1244 = vcmp.eq.f32.partialorder %v1243, 8.507059e+37
        %v1245 = vand.u32 %v1230, 2147483648
        %v1246 = vor.u32 1.1754944e-38, %v1245
        %v1247 = vsel %vm1244, %v1246, %v1242
        %v1248 = vmul.f32 1.0, %v1247
        %v1249 = vrcp.pop %v1231
        %v1250 = vmul.f32 %v1231, %v1249
        %v1251 = vsub.f32 1.0, %v1250
        %v1252 = vmul.f32 %v1249, %v1251
        %v1253 = vadd.f32 %v1249, %v1252
        %vm1254 = vweird.f32 %v1231
        %vm1255 = vweird.f32 %v1249
        %vm1256 = vmor %vm1254, %vm1255
        %v1257 = vsel %vm1256, %v1249, %v1253
        %v1258 = vand.u32 2147483647, %v1231
        %vm1259 = vcmp.eq.f32.partialorder %v1258, 8.507059e+37
        %v1260 = vand.u32 %v1231, 2147483648
        %v1261 = vor.u32 1.1754944e-38, %v1260
        %v1262 = vsel %vm1259, %v1261, %v1257
        %v1263 = vmul.f32 1.0, %v1262
        %v1264 = vrcp.pop %v1232
        %v1265 = vmul.f32 %v1232, %v1264
        %v1266 = vsub.f32 1.0, %v1265
        %v1267 = vmul.f32 %v1264, %v1266
        %v1268 = vadd.f32 %v1264, %v1267
        %vm1269 = vweird.f32 %v1232
        %vm1270 = vweird.f32 %v1264
        %vm1271 = vmor %vm1269, %vm1270
        %v1272 = vsel %vm1271, %v1264, %v1268
        %v1273 = vand.u32 2147483647, %v1232
        %vm1274 = vcmp.eq.f32.partialorder %v1273, 8.507059e+37
        %v1275 = vand.u32 %v1232, 2147483648
        %v1276 = vor.u32 1.1754944e-38, %v1275
        %v1277 = vsel %vm1274, %v1276, %v1272
        %v1278 = vmul.f32 1.0, %v1277
        %v1279 = vrcp.pop %v1233
        %v1280 = vmul.f32 %v1233, %v1279
        %v1281 = vsub.f32 1.0, %v1280
        %v1282 = vmul.f32 %v1279, %v1281
        %v1283 = vadd.f32 %v1279, %v1282
        %vm1284 = vweird.f32 %v1233
        %vm1285 = vweird.f32 %v1279
        %vm1286 = vmor %vm1284, %vm1285
        %v1287 = vsel %vm1286, %v1279, %v1283
        %v1288 = vand.u32 2147483647, %v1233
        %vm1289 = vcmp.eq.f32.partialorder %v1288, 8.507059e+37
        %v1290 = vand.u32 %v1233, 2147483648
        %v1291 = vor.u32 1.1754944e-38, %v1290
        %v1292 = vsel %vm1289, %v1291, %v1287
        %v1293 = vmul.f32 1.0, %v1292
        %v1294 = vmul.f32 %v1248, 1.0614054
        %v1295 = vmul.f32 %v1263, 1.0614054
        %v1296 = vmul.f32 %v1278, 1.0614054
        %v1297 = vmul.f32 %v1293, 1.0614054
        %v1298 = vadd.f32 %v1294, -1.4531521
        %v1299 = vadd.f32 %v1295, -1.4531521
        %v1300 = vadd.f32 %v1296, -1.4531521
        %v1301 = vadd.f32 %v1297, -1.4531521
        %v1302 = vmul.f32 %v1298, %v1248
        %v1303 = vmul.f32 %v1299, %v1263
        %v1304 = vmul.f32 %v1300, %v1278
        %v1305 = vmul.f32 %v1301, %v1293
        %v1306 = vadd.f32 %v1302, 1.4214138
        %v1307 = vadd.f32 %v1303, 1.4214138
        %v1308 = vadd.f32 %v1304, 1.4214138
        %v1309 = vadd.f32 %v1305, 1.4214138
        %v1310 = vmul.f32 %v1306, %v1248
        %v1311 = vmul.f32 %v1307, %v1263
        %v1312 = vmul.f32 %v1308, %v1278
        %v1313 = vmul.f32 %v1309, %v1293
        %v1314 = vadd.f32 %v1310, -0.28449672
        %v1315 = vadd.f32 %v1311, -0.28449672
        %v1316 = vadd.f32 %v1312, -0.28449672
        %v1317 = vadd.f32 %v1313, -0.28449672
        %v1318 = vmul.f32 %v1314, %v1248
        %v1319 = vmul.f32 %v1315, %v1263
        %v1320 = vmul.f32 %v1316, %v1278
        %v1321 = vmul.f32 %v1317, %v1293
        %v1322 = vadd.f32 %v1318, 0.2548296
        %v1323 = vadd.f32 %v1319, 0.2548296
        %v1324 = vadd.f32 %v1320, 0.2548296
        %v1325 = vadd.f32 %v1321, 0.2548296
        %v1326 = vmul.f32 %v1322, %v1248
        %v1327 = vmul.f32 %v1323, %v1263
        %v1328 = vmul.f32 %v1324, %v1278
        %v1329 = vmul.f32 %v1325, %v1293
        %v1330 = vsub.f32 0.0, %v1222
        %v1331 = vsub.f32 0.0, %v1223
        %v1332 = vsub.f32 0.0, %v1224
        %v1333 = vsub.f32 0.0, %v1225
        %v1334 = vmul.f32 %v1330, %v1222
        %v1335 = vmul.f32 %v1331, %v1223
        %v1336 = vmul.f32 %v1332, %v1224
        %v1337 = vmul.f32 %v1333, %v1225
        %v1338 = vmul.f32 %v1334, 1.442695
        %v1339 = vpow.pop %v1338
        %v1340 = vmul.f32 %v1335, 1.442695
        %v1341 = vpow.pop %v1340
        %v1342 = vmul.f32 %v1336, 1.442695
        %v1343 = vpow.pop %v1342
        %v1344 = vmul.f32 %v1337, 1.442695
        %v1345 = vpow.pop %v1344
        %v1346 = vmul.f32 %v1326, %v1339
        %v1347 = vmul.f32 %v1327, %v1341
        %v1348 = vmul.f32 %v1328, %v1343
        %v1349 = vmul.f32 %v1329, %v1345
        %v1350 = vsub.f32 1.0, %v1346
        %v1351 = vsub.f32 1.0, %v1347
        %v1352 = vsub.f32 1.0, %v1348
        %v1353 = vsub.f32 1.0, %v1349
        %vm1354 = vcmp.ge.f32.partialorder %v1218, 0.0
        %vm1355 = vcmp.ge.f32.partialorder %v1219, 0.0
        %vm1356 = vcmp.ge.f32.partialorder %v1220, 0.0
        %vm1357 = vcmp.ge.f32.partialorder %v1221, 0.0
        %v1358 = vsub.f32 0.0, %v1350
        %v1359 = vsub.f32 0.0, %v1351
        %v1360 = vsub.f32 0.0, %v1352
        %v1361 = vsub.f32 0.0, %v1353
        %v1362 = vsel %vm1354, %v1350, %v1358
        %v1363 = vsel %vm1355, %v1351, %v1359
        %v1364 = vsel %vm1356, %v1352, %v1360
        %v1365 = vsel %vm1357, %v1353, %v1361
        %v1366 = vadd.f32 %v1362, 1.0
        %v1367 = vadd.f32 %v1363, 1.0
        %v1368 = vadd.f32 %v1364, 1.0
        %v1369 = vadd.f32 %v1365, 1.0
        %v1370 = vmul.f32 %v1214, %v1366
        %v1371 = vmul.f32 %v1215, %v1367
        %v1372 = vmul.f32 %v1216, %v1368
        %v1373 = vmul.f32 %v1217, %v1369
        %v1374 = vmul.f32 %v1370, %v762
        %v1375 = vmul.f32 %v1371, %v763
        %v1376 = vmul.f32 %v1372, %v764
        %v1377 = vmul.f32 %v1373, %v765
        %v1379 = vsel %vm768, %v1138, 0
        %v1382 = vsel %vm768, %v1139, 0
        %1384 = vmatpush.msra.mxu0 0.0
        %1385 = vmatpush.msra.mxu0 0.0
        %1386 = vmatpush.msra.mxu0 0.0
        %1387 = vmatpush.msra.mxu0 0.0
        %1388 = vmatpush.msra.mxu0 0.0
        %1389 = vmatpush.msra.mxu0 0.0
        %1390 = vmatpush.msra.mxu0 0.0
        %1391 = vmatpush.msra.mxu0 0.0
        %1392 = vmatpush.msra.mxu0 0.0
        %1393 = vmatpush.msra.mxu0 0.0
        %1394 = vmatpush.msra.mxu0 0.0
        %1395 = vmatpush.msra.mxu0 0.0
        %1396 = vmatpush.msra.mxu0 %v1377
        %1397 = vmatpush.msra.mxu0 %v1376
        %1398 = vmatpush.msra.mxu0 %v1375
        %1399 = vmatpush.msra.mxu0 %v1374
        %1400 = vmatmul.f32.gmra.mxu0 %v1379
        %v1401 = vpop.f32.mrf.mxu0
        %v1402 = vadd.f32 0.0, %v1401
        %1403 = vmatmul.f32.gmra.mxu0 %v1382
        %v1404 = vpop.f32.mrf.mxu0
        %v1405 = vadd.f32 0.0, %v1404
        %1406 = vdwg.mxu0
        %v1407 = vld [vmem:[%s14] sm:$0x1]
        %v1408 = vld [vmem:[%s15] sm:$0x1]
        %v1409 = vsel %vm768, %v1402, 0.0
        %1410 = vadd.xlane.f32.xlu0 %v1409
        %v1411 = vpop.xlane.xlu0 %1410
        %v1412 = vsel %vm768, %v1405, 0.0
        %1413 = vadd.xlane.f32.xlu0 %v1412
        %v1414 = vpop.xlane.xlu0 %1413
        %v1415 = vmul.f32 %v1411, %v781
        %v1416 = vmul.f32 %v1414, %v781
        %v1417 = vsub.f32 %v1402, %v1415
        %v1418 = vsub.f32 %v1405, %v1416
        %v1419 = vmul.f32 %v1417, %v1417
        %v1420 = vmul.f32 %v1418, %v1418
        %v1421 = vsel %vm768, %v1419, 0.0
        %1422 = vadd.xlane.f32.xlu0 %v1421
        %v1423 = vpop.xlane.xlu0 %1422
        %v1424 = vsel %vm768, %v1420, 0.0
        %1425 = vadd.xlane.f32.xlu0 %v1424
        %v1426 = vpop.xlane.xlu0 %1425
        %v1427 = vmul.f32 %v1423, %v781
        %v1428 = vmul.f32 %v1426, %v781
        %v1429 = vadd.f32 %v1427, 1e-05
        %v1430 = vadd.f32 %v1428, 1e-05
        %v1431 = vrsqrt.pop %v1429
        %v1432 = vmul.f32 %v1431, %v1429
        %v1433 = vmul.f32 %v1432, %v1431
        %v1434 = vmul.f32 0.5, %v1433
        %v1435 = vsub.f32 1.5, %v1434
        %v1436 = vmul.f32 %v1431, %v1435
        %vm1437 = vweird.f32 %v1429
        %vm1438 = vweird.f32 %v1431
        %vm1439 = vmor %vm1437, %vm1438
        %v1440 = vsel %vm1439, %v1431, %v1436
        %v1441 = vrsqrt.pop %v1430
        %v1442 = vmul.f32 %v1441, %v1430
        %v1443 = vmul.f32 %v1442, %v1441
        %v1444 = vmul.f32 0.5, %v1443
        %v1445 = vsub.f32 1.5, %v1444
        %v1446 = vmul.f32 %v1441, %v1445
        %vm1447 = vweird.f32 %v1430
        %vm1448 = vweird.f32 %v1441
        %vm1449 = vmor %vm1447, %vm1448
        %v1450 = vsel %vm1449, %v1441, %v1446
        %v1451 = vmul.f32 %v1417, %v1440
        %v1452 = vmul.f32 %v1418, %v1450
        %v1454 = vperm.slane %v1407, 0
        %v1456 = vmul.f32 %v1451, %v1454
        %v1457 = vmul.f32 %v1452, %v1454
        %v1459 = vperm.slane %v1408, 0
        %v1461 = vadd.f32 %v1456, %v1459
        %v1462 = vadd.f32 %v1457, %v1459
        %v1463 = vadd.f32 %v756, %v1461
        %v1464 = vadd.f32 %v757, %v1462
        %v1465 = vld [vmem:[%s16] sm:$0x1]
        %v1466 = vld [vmem:[%s17] sm:$0x1]
        %v1467 = vsel %vm768, %v1463, 0.0
        %1468 = vadd.xlane.f32.xlu0 %v1467
        %v1469 = vpop.xlane.xlu0 %1468
        %v1470 = vsel %vm768, %v1464, 0.0
        %1471 = vadd.xlane.f32.xlu0 %v1470
        %v1472 = vpop.xlane.xlu0 %1471
        %v1473 = vmul.f32 %v1469, %v781
        %v1474 = vmul.f32 %v1472, %v781
        %v1475 = vsub.f32 %v1463, %v1473
        %v1476 = vsub.f32 %v1464, %v1474
        %v1477 = vmul.f32 %v1475, %v1475
        %v1478 = vmul.f32 %v1476, %v1476
        %v1479 = vsel %vm768, %v1477, 0.0
        %1480 = vadd.xlane.f32.xlu0 %v1479
        %v1481 = vpop.xlane.xlu0 %1480
        %v1482 = vsel %vm768, %v1478, 0.0
        %1483 = vadd.xlane.f32.xlu0 %v1482
        %v1484 = vpop.xlane.xlu0 %1483
        %v1485 = vmul.f32 %v1481, %v781
        %v1486 = vmul.f32 %v1484, %v781
        %v1487 = vadd.f32 %v1485, 1e-05
        %v1488 = vadd.f32 %v1486, 1e-05
        %v1489 = vrsqrt.pop %v1487
        %v1490 = vmul.f32 %v1489, %v1487
        %v1491 = vmul.f32 %v1490, %v1489
        %v1492 = vmul.f32 0.5, %v1491
        %v1493 = vsub.f32 1.5, %v1492
        %v1494 = vmul.f32 %v1489, %v1493
        %vm1495 = vweird.f32 %v1487
        %vm1496 = vweird.f32 %v1489
        %vm1497 = vmor %vm1495, %vm1496
        %v1498 = vsel %vm1497, %v1489, %v1494
        %v1499 = vrsqrt.pop %v1488
        %v1500 = vmul.f32 %v1499, %v1488
        %v1501 = vmul.f32 %v1500, %v1499
        %v1502 = vmul.f32 0.5, %v1501
        %v1503 = vsub.f32 1.5, %v1502
        %v1504 = vmul.f32 %v1499, %v1503
        %vm1505 = vweird.f32 %v1488
        %vm1506 = vweird.f32 %v1499
        %vm1507 = vmor %vm1505, %vm1506
        %v1508 = vsel %vm1507, %v1499, %v1504
        %v1509 = vmul.f32 %v1475, %v1498
        %v1510 = vmul.f32 %v1476, %v1508
        %v1512 = vperm.slane %v1465, 0
        %v1514 = vmul.f32 %v1509, %v1512
        %v1515 = vmul.f32 %v1510, %v1512
        %v1517 = vperm.slane %v1466, 0
        %v1519 = vadd.f32 %v1514, %v1517
        %v1520 = vadd.f32 %v1515, %v1517
        %v1521 = vld [vmem:[%s18] sm:$0xff]
        %v1522 = vld [vmem:[%s18 + $0x8] sm:$0xff]
        %v1523 = vld [vmem:[%s18 + $0x10] sm:$0xff]
        %v1524 = vld [vmem:[%s18 + $0x18] sm:$0xff]
        %v1525 = vld [vmem:[%s19] sm:$0x1]
        %v1527 = vperm.slane %v1525, 0
        %v1530 = vsel %vm768, %v1519, 0
        %v1533 = vsel %vm768, %v1520, 0
        %1535 = vmatpush.msra.mxu0 0.0
        %1536 = vmatpush.msra.mxu0 0.0
        %1537 = vmatpush.msra.mxu0 0.0
        %1538 = vmatpush.msra.mxu0 0.0
        %1539 = vmatpush.msra.mxu0 0.0
        %1540 = vmatpush.msra.mxu0 0.0
        %1541 = vmatpush.msra.mxu0 0.0
        %1542 = vmatpush.msra.mxu0 0.0
        %1543 = vmatpush.msra.mxu0 0.0
        %1544 = vmatpush.msra.mxu0 0.0
        %1545 = vmatpush.msra.mxu0 0.0
        %1546 = vmatpush.msra.mxu0 0.0
        %1547 = vmatpush.msra.mxu0 %v1524
        %1548 = vmatpush.msra.mxu0 %v1523
        %1549 = vmatpush.msra.mxu0 %v1522
        %1550 = vmatpush.msra.mxu0 %v1521
        %1551 = vmatmul.f32.gmra.mxu0 %v1530
        %v1552 = vpop.f32.mrf.mxu0
        %v1553 = vadd.f32 %v1527, %v1552
        %1554 = vmatmul.f32.gmra.mxu0 %v1533
        %v1555 = vpop.f32.mrf.mxu0
        %v1556 = vadd.f32 %v1527, %v1555
        %1557 = vdwg.mxu0
        %v1558 = vmul.f32 %v1553, 0.5
        %v1559 = vmul.f32 %v1556, 0.5
        %v1560 = vmul.f32 %v1553, 0.70710677
        %v1561 = vmul.f32 %v1556, 0.70710677
        %v1562 = vand.u32 2147483647, %v1560
        %v1563 = vand.u32 2147483647, %v1561
        %v1564 = vmul.f32 %v1562, 0.3275911
        %v1565 = vmul.f32 %v1563, 0.3275911
        %v1566 = vadd.f32 %v1564, 1.0
        %v1567 = vadd.f32 %v1565, 1.0
        %v1568 = vrcp.pop %v1566
        %v1569 = vmul.f32 %v1566, %v1568
        %v1570 = vsub.f32 1.0, %v1569
        %v1571 = vmul.f32 %v1568, %v1570
        %v1572 = vadd.f32 %v1568, %v1571
        %vm1573 = vweird.f32 %v1566
        %vm1574 = vweird.f32 %v1568
        %vm1575 = vmor %vm1573, %vm1574
        %v1576 = vsel %vm1575, %v1568, %v1572
        %v1577 = vand.u32 2147483647, %v1566
        %vm1578 = vcmp.eq.f32.partialorder %v1577, 8.507059e+37
        %v1579 = vand.u32 %v1566, 2147483648
        %v1580 = vor.u32 1.1754944e-38, %v1579
        %v1581 = vsel %vm1578, %v1580, %v1576
        %v1582 = vmul.f32 1.0, %v1581
        %v1583 = vrcp.pop %v1567
        %v1584 = vmul.f32 %v1567, %v1583
        %v1585 = vsub.f32 1.0, %v1584
        %v1586 = vmul.f32 %v1583, %v1585
        %v1587 = vadd.f32 %v1583, %v1586
        %vm1588 = vweird.f32 %v1567
        %vm1589 = vweird.f32 %v1583
        %vm1590 = vmor %vm1588, %vm1589
        %v1591 = vsel %vm1590, %v1583, %v1587
        %v1592 = vand.u32 2147483647, %v1567
        %vm1593 = vcmp.eq.f32.partialorder %v1592, 8.507059e+37
        %v1594 = vand.u32 %v1567, 2147483648
        %v1595 = vor.u32 1.1754944e-38, %v1594
        %v1596 = vsel %vm1593, %v1595, %v1591
        %v1597 = vmul.f32 1.0, %v1596
        %v1598 = vmul.f32 %v1582, 1.0614054
        %v1599 = vmul.f32 %v1597, 1.0614054
        %v1600 = vadd.f32 %v1598, -1.4531521
        %v1601 = vadd.f32 %v1599, -1.4531521
        %v1602 = vmul.f32 %v1600, %v1582
        %v1603 = vmul.f32 %v1601, %v1597
        %v1604 = vadd.f32 %v1602, 1.4214138
        %v1605 = vadd.f32 %v1603, 1.4214138
        %v1606 = vmul.f32 %v1604, %v1582
        %v1607 = vmul.f32 %v1605, %v1597
        %v1608 = vadd.f32 %v1606, -0.28449672
        %v1609 = vadd.f32 %v1607, -0.28449672
        %v1610 = vmul.f32 %v1608, %v1582
        %v1611 = vmul.f32 %v1609, %v1597
        %v1612 = vadd.f32 %v1610, 0.2548296
        %v1613 = vadd.f32 %v1611, 0.2548296
        %v1614 = vmul.f32 %v1612, %v1582
        %v1615 = vmul.f32 %v1613, %v1597
        %v1616 = vsub.f32 0.0, %v1562
        %v1617 = vsub.f32 0.0, %v1563
        %v1618 = vmul.f32 %v1616, %v1562
        %v1619 = vmul.f32 %v1617, %v1563
        %v1620 = vmul.f32 %v1618, 1.442695
        %v1621 = vpow.pop %v1620
        %v1622 = vmul.f32 %v1619, 1.442695
        %v1623 = vpow.pop %v1622
        %v1624 = vmul.f32 %v1614, %v1621
        %v1625 = vmul.f32 %v1615, %v1623
        %v1626 = vsub.f32 1.0, %v1624
        %v1627 = vsub.f32 1.0, %v1625
        %vm1628 = vcmp.ge.f32.partialorder %v1560, 0.0
        %vm1629 = vcmp.ge.f32.partialorder %v1561, 0.0
        %v1630 = vsub.f32 0.0, %v1626
        %v1631 = vsub.f32 0.0, %v1627
        %v1632 = vsel %vm1628, %v1626, %v1630
        %v1633 = vsel %vm1629, %v1627, %v1631
        %v1634 = vadd.f32 %v1632, 1.0
        %v1635 = vadd.f32 %v1633, 1.0
        %v1636 = vmul.f32 %v1558, %v1634
        %v1637 = vmul.f32 %v1559, %v1635
        %v1638 = vld [vmem:[%s20] sm:$0xff]
        %v1639 = vld [vmem:[%s20 + $0x8] sm:$0xff]
        %v1640 = vld [vmem:[%s20 + $0x10] sm:$0xff]
        %v1641 = vld [vmem:[%s20 + $0x18] sm:$0xff]
        %v1642 = vld [vmem:[%s20 + $0x20] sm:$0xff]
        %v1643 = vld [vmem:[%s20 + $0x28] sm:$0xff]
        %v1644 = vld [vmem:[%s20 + $0x30] sm:$0xff]
        %v1645 = vld [vmem:[%s20 + $0x38] sm:$0xff]
        %vm1646 = vcmask 523264
        %v1648 = vsel %vm1646, %v1636, 0
        %v1651 = vsel %vm1646, %v1637, 0
        %1653 = vmatpush.msra.mxu0 0.0
        %1654 = vmatpush.msra.mxu0 0.0
        %1655 = vmatpush.msra.mxu0 0.0
        %1656 = vmatpush.msra.mxu0 0.0
        %1657 = vmatpush.msra.mxu0 0.0
        %1658 = vmatpush.msra.mxu0 0.0
        %1659 = vmatpush.msra.mxu0 0.0
        %1660 = vmatpush.msra.mxu0 0.0
        %1661 = vmatpush.msra.mxu0 %v1645
        %1662 = vmatpush.msra.mxu0 %v1644
        %1663 = vmatpush.msra.mxu0 %v1643
        %1664 = vmatpush.msra.mxu0 %v1642
        %1665 = vmatpush.msra.mxu0 %v1641
        %1666 = vmatpush.msra.mxu0 %v1640
        %1667 = vmatpush.msra.mxu0 %v1639
        %1668 = vmatpush.msra.mxu0 %v1638
        %1669 = vmatmul.f32.gmra.mxu0 %v1648
        %v1670 = vpop.f32.mrf.mxu0
        %v1671 = vadd.f32 0.0, %v1670
        %1672 = vmatmul.f32.gmra.mxu0 %v1651
        %v1673 = vpop.f32.mrf.mxu0
        %v1674 = vadd.f32 0.0, %v1673
        %1675 = vdwg.mxu0
        %v1676 = vadd.f32 %v1463, %v1671
        %v1677 = vadd.f32 %v1464, %v1674
        %v1678 = vld [vmem:[%s21] sm:$0x1]
        %v1680 = vperm.slane %v1678, 0
        %v1682 = vadd.f32 %v1676, %v1680
        %v1683 = vadd.f32 %v1677, %v1680
        %s1684 = scalar_lea.vmem %s4, 1
        %v1685 = vld [vmem:[%s1684] sm:$0x1]
        %s1686 = scalar_lea.vmem %s5, 1
        %v1687 = vld [vmem:[%s1686] sm:$0x1]
        %v1688 = vsel %vm768, %v1682, 0.0
        %1689 = vadd.xlane.f32.xlu0 %v1688
        %v1690 = vpop.xlane.xlu0 %1689
        %v1691 = vsel %vm768, %v1683, 0.0
        %1692 = vadd.xlane.f32.xlu0 %v1691
        %v1693 = vpop.xlane.xlu0 %1692
        %v1694 = vmul.f32 %v1690, %v781
        %v1695 = vmul.f32 %v1693, %v781
        %v1696 = vsub.f32 %v1682, %v1694
        %v1697 = vsub.f32 %v1683, %v1695
        %v1698 = vmul.f32 %v1696, %v1696
        %v1699 = vmul.f32 %v1697, %v1697
        %v1700 = vsel %vm768, %v1698, 0.0
        %1701 = vadd.xlane.f32.xlu0 %v1700
        %v1702 = vpop.xlane.xlu0 %1701
        %v1703 = vsel %vm768, %v1699, 0.0
        %1704 = vadd.xlane.f32.xlu0 %v1703
        %v1705 = vpop.xlane.xlu0 %1704
        %v1706 = vmul.f32 %v1702, %v781
        %v1707 = vmul.f32 %v1705, %v781
        %v1708 = vadd.f32 %v1706, 1e-05
        %v1709 = vadd.f32 %v1707, 1e-05
        %v1710 = vrsqrt.pop %v1708
        %v1711 = vmul.f32 %v1710, %v1708
        %v1712 = vmul.f32 %v1711, %v1710
        %v1713 = vmul.f32 0.5, %v1712
        %v1714 = vsub.f32 1.5, %v1713
        %v1715 = vmul.f32 %v1710, %v1714
        %vm1716 = vweird.f32 %v1708
        %vm1717 = vweird.f32 %v1710
        %vm1718 = vmor %vm1716, %vm1717
        %v1719 = vsel %vm1718, %v1710, %v1715
        %v1720 = vrsqrt.pop %v1709
        %v1721 = vmul.f32 %v1720, %v1709
        %v1722 = vmul.f32 %v1721, %v1720
        %v1723 = vmul.f32 0.5, %v1722
        %v1724 = vsub.f32 1.5, %v1723
        %v1725 = vmul.f32 %v1720, %v1724
        %vm1726 = vweird.f32 %v1709
        %vm1727 = vweird.f32 %v1720
        %vm1728 = vmor %vm1726, %vm1727
        %v1729 = vsel %vm1728, %v1720, %v1725
        %v1730 = vmul.f32 %v1696, %v1719
        %v1731 = vmul.f32 %v1697, %v1729
        %v1733 = vperm.slane %v1685, 0
        %v1735 = vmul.f32 %v1730, %v1733
        %v1736 = vmul.f32 %v1731, %v1733
        %v1738 = vperm.slane %v1687, 0
        %v1740 = vadd.f32 %v1735, %v1738
        %v1741 = vadd.f32 %v1736, %v1738
        %v1742 = vmul.f32 %v1740, %v758
        %v1743 = vmul.f32 %v1741, %v759
        %v1744 = vadd.f32 %v1742, %v760
        %v1745 = vadd.f32 %v1743, %v761
        %s1746 = scalar_lea.vmem %s6, 32
        %v1747 = vld [vmem:[%s1746] sm:$0xff]
        %v1748 = vld [vmem:[%s1746 + $0x8] sm:$0xff]
        %v1749 = vld [vmem:[%s1746 + $0x10] sm:$0xff]
        %v1750 = vld [vmem:[%s1746 + $0x18] sm:$0xff]
        %s1751 = scalar_lea.vmem %s7, 1
        %v1752 = vld [vmem:[%s1751] sm:$0x1]
        %v1754 = vperm.slane %v1752, 0
        %v1757 = vsel %vm768, %v1744, 0
        %v1760 = vsel %vm768, %v1745, 0
        %1762 = vmatpush.msra.mxu0 0.0
        %1763 = vmatpush.msra.mxu0 0.0
        %1764 = vmatpush.msra.mxu0 0.0
        %1765 = vmatpush.msra.mxu0 0.0
        %1766 = vmatpush.msra.mxu0 0.0
        %1767 = vmatpush.msra.mxu0 0.0
        %1768 = vmatpush.msra.mxu0 0.0
        %1769 = vmatpush.msra.mxu0 0.0
        %1770 = vmatpush.msra.mxu0 0.0
        %1771 = vmatpush.msra.mxu0 0.0
        %1772 = vmatpush.msra.mxu0 0.0
        %1773 = vmatpush.msra.mxu0 0.0
        %1774 = vmatpush.msra.mxu0 %v1750
        %1775 = vmatpush.msra.mxu0 %v1749
        %1776 = vmatpush.msra.mxu0 %v1748
        %1777 = vmatpush.msra.mxu0 %v1747
        %1778 = vmatmul.f32.gmra.mxu0 %v1757
        %v1779 = vpop.f32.mrf.mxu0
        %v1780 = vadd.f32 %v1754, %v1779
        %1781 = vmatmul.f32.gmra.mxu0 %v1760
        %v1782 = vpop.f32.mrf.mxu0
        %v1783 = vadd.f32 %v1754, %v1782
        %1784 = vdwg.mxu0
        %v1785 = vmul.f32 %v1780, 0.5
        %v1786 = vmul.f32 %v1783, 0.5
        %v1787 = vmul.f32 %v1780, 0.70710677
        %v1788 = vmul.f32 %v1783, 0.70710677
        %v1789 = vand.u32 2147483647, %v1787
        %v1790 = vand.u32 2147483647, %v1788
        %v1791 = vmul.f32 %v1789, 0.3275911
        %v1792 = vmul.f32 %v1790, 0.3275911
        %v1793 = vadd.f32 %v1791, 1.0
        %v1794 = vadd.f32 %v1792, 1.0
        %v1795 = vrcp.pop %v1793
        %v1796 = vmul.f32 %v1793, %v1795
        %v1797 = vsub.f32 1.0, %v1796
        %v1798 = vmul.f32 %v1795, %v1797
        %v1799 = vadd.f32 %v1795, %v1798
        %vm1800 = vweird.f32 %v1793
        %vm1801 = vweird.f32 %v1795
        %vm1802 = vmor %vm1800, %vm1801
        %v1803 = vsel %vm1802, %v1795, %v1799
        %v1804 = vand.u32 2147483647, %v1793
        %vm1805 = vcmp.eq.f32.partialorder %v1804, 8.507059e+37
        %v1806 = vand.u32 %v1793, 2147483648
        %v1807 = vor.u32 1.1754944e-38, %v1806
        %v1808 = vsel %vm1805, %v1807, %v1803
        %v1809 = vmul.f32 1.0, %v1808
        %v1810 = vrcp.pop %v1794
        %v1811 = vmul.f32 %v1794, %v1810
        %v1812 = vsub.f32 1.0, %v1811
        %v1813 = vmul.f32 %v1810, %v1812
        %v1814 = vadd.f32 %v1810, %v1813
        %vm1815 = vweird.f32 %v1794
        %vm1816 = vweird.f32 %v1810
        %vm1817 = vmor %vm1815, %vm1816
        %v1818 = vsel %vm1817, %v1810, %v1814
        %v1819 = vand.u32 2147483647, %v1794
        %vm1820 = vcmp.eq.f32.partialorder %v1819, 8.507059e+37
        %v1821 = vand.u32 %v1794, 2147483648
        %v1822 = vor.u32 1.1754944e-38, %v1821
        %v1823 = vsel %vm1820, %v1822, %v1818
        %v1824 = vmul.f32 1.0, %v1823
        %v1825 = vmul.f32 %v1809, 1.0614054
        %v1826 = vmul.f32 %v1824, 1.0614054
        %v1827 = vadd.f32 %v1825, -1.4531521
        %v1828 = vadd.f32 %v1826, -1.4531521
        %v1829 = vmul.f32 %v1827, %v1809
        %v1830 = vmul.f32 %v1828, %v1824
        %v1831 = vadd.f32 %v1829, 1.4214138
        %v1832 = vadd.f32 %v1830, 1.4214138
        %v1833 = vmul.f32 %v1831, %v1809
        %v1834 = vmul.f32 %v1832, %v1824
        %v1835 = vadd.f32 %v1833, -0.28449672
        %v1836 = vadd.f32 %v1834, -0.28449672
        %v1837 = vmul.f32 %v1835, %v1809
        %v1838 = vmul.f32 %v1836, %v1824
        %v1839 = vadd.f32 %v1837, 0.2548296
        %v1840 = vadd.f32 %v1838, 0.2548296
        %v1841 = vmul.f32 %v1839, %v1809
        %v1842 = vmul.f32 %v1840, %v1824
        %v1843 = vsub.f32 0.0, %v1789
        %v1844 = vsub.f32 0.0, %v1790
        %v1845 = vmul.f32 %v1843, %v1789
        %v1846 = vmul.f32 %v1844, %v1790
        %v1847 = vmul.f32 %v1845, 1.442695
        %v1848 = vpow.pop %v1847
        %v1849 = vmul.f32 %v1846, 1.442695
        %v1850 = vpow.pop %v1849
        %v1851 = vmul.f32 %v1841, %v1848
        %v1852 = vmul.f32 %v1842, %v1850
        %v1853 = vsub.f32 1.0, %v1851
        %v1854 = vsub.f32 1.0, %v1852
        %vm1855 = vcmp.ge.f32.partialorder %v1787, 0.0
        %vm1856 = vcmp.ge.f32.partialorder %v1788, 0.0
        %v1857 = vsub.f32 0.0, %v1853
        %v1858 = vsub.f32 0.0, %v1854
        %v1859 = vsel %vm1855, %v1853, %v1857
        %v1860 = vsel %vm1856, %v1854, %v1858
        %v1861 = vadd.f32 %v1859, 1.0
        %v1862 = vadd.f32 %v1860, 1.0
        %v1863 = vmul.f32 %v1785, %v1861
        %v1864 = vmul.f32 %v1786, %v1862
        %s1865 = scalar_lea.vmem %s8, 32
        %v1866 = vld [vmem:[%s1865] sm:$0xff]
        %v1867 = vld [vmem:[%s1865 + $0x8] sm:$0xff]
        %v1868 = vld [vmem:[%s1865 + $0x10] sm:$0xff]
        %v1869 = vld [vmem:[%s1865 + $0x18] sm:$0xff]
        %s1870 = scalar_lea.vmem %s9, 1
        %v1871 = vld [vmem:[%s1870] sm:$0x1]
        %v1873 = vperm.slane %v1871, 0
        %v1876 = vsel %vm768, %v1863, 0
        %v1879 = vsel %vm768, %v1864, 0
        %1881 = vmatpush.msra.mxu0 0.0
        %1882 = vmatpush.msra.mxu0 0.0
        %1883 = vmatpush.msra.mxu0 0.0
        %1884 = vmatpush.msra.mxu0 0.0
        %1885 = vmatpush.msra.mxu0 0.0
        %1886 = vmatpush.msra.mxu0 0.0
        %1887 = vmatpush.msra.mxu0 0.0
        %1888 = vmatpush.msra.mxu0 0.0
        %1889 = vmatpush.msra.mxu0 0.0
        %1890 = vmatpush.msra.mxu0 0.0
        %1891 = vmatpush.msra.mxu0 0.0
        %1892 = vmatpush.msra.mxu0 0.0
        %1893 = vmatpush.msra.mxu0 %v1869
        %1894 = vmatpush.msra.mxu0 %v1868
        %1895 = vmatpush.msra.mxu0 %v1867
        %1896 = vmatpush.msra.mxu0 %v1866
        %1897 = vmatmul.f32.gmra.mxu0 %v1876
        %v1898 = vpop.f32.mrf.mxu0
        %v1899 = vadd.f32 %v1873, %v1898
        %1900 = vmatmul.f32.gmra.mxu0 %v1879
        %v1901 = vpop.f32.mrf.mxu0
        %v1902 = vadd.f32 %v1873, %v1901
        %1903 = vdwg.mxu0
        %v1904 = vmul.f32 %v1899, %v758
        %v1905 = vmul.f32 %v1902, %v759
        %s1906 = scalar_lea.vmem %s10, 32
        %v1907 = vld [vmem:[%s1906] sm:$0xff]
        %v1908 = vld [vmem:[%s1906 + $0x8] sm:$0xff]
        %v1909 = vld [vmem:[%s1906 + $0x10] sm:$0xff]
        %v1910 = vld [vmem:[%s1906 + $0x18] sm:$0xff]
        %s1911 = scalar_lea.vmem %s11, 1
        %v1912 = vld [vmem:[%s1911] sm:$0x1]
        %v1914 = vperm.slane %v1912, 0
        %1916 = vmatpush.msra.mxu0 0.0
        %1917 = vmatpush.msra.mxu0 0.0
        %1918 = vmatpush.msra.mxu0 0.0
        %1919 = vmatpush.msra.mxu0 0.0
        %1920 = vmatpush.msra.mxu0 0.0
        %1921 = vmatpush.msra.mxu0 0.0
        %1922 = vmatpush.msra.mxu0 0.0
        %1923 = vmatpush.msra.mxu0 0.0
        %1924 = vmatpush.msra.mxu0 0.0
        %1925 = vmatpush.msra.mxu0 0.0
        %1926 = vmatpush.msra.mxu0 0.0
        %1927 = vmatpush.msra.mxu0 0.0
        %1928 = vmatpush.msra.mxu0 %v1910
        %1929 = vmatpush.msra.mxu0 %v1909
        %1930 = vmatpush.msra.mxu0 %v1908
        %1931 = vmatpush.msra.mxu0 %v1907
        %1932 = vmatmul.f32.gmra.mxu0 %v1757
        %v1933 = vpop.f32.mrf.mxu0
        %v1934 = vadd.f32 %v1914, %v1933
        %1935 = vmatmul.f32.gmra.mxu0 %v1760
        %v1936 = vpop.f32.mrf.mxu0
        %v1937 = vadd.f32 %v1914, %v1936
        %1938 = vdwg.mxu0
        %v1939 = vmul.f32 %v1934, 0.5
        %v1940 = vmul.f32 %v1937, 0.5
        %v1941 = vmul.f32 %v1934, 0.70710677
        %v1942 = vmul.f32 %v1937, 0.70710677
        %v1943 = vand.u32 2147483647, %v1941
        %v1944 = vand.u32 2147483647, %v1942
        %v1945 = vmul.f32 %v1943, 0.3275911
        %v1946 = vmul.f32 %v1944, 0.3275911
        %v1947 = vadd.f32 %v1945, 1.0
        %v1948 = vadd.f32 %v1946, 1.0
        %v1949 = vrcp.pop %v1947
        %v1950 = vmul.f32 %v1947, %v1949
        %v1951 = vsub.f32 1.0, %v1950
        %v1952 = vmul.f32 %v1949, %v1951
        %v1953 = vadd.f32 %v1949, %v1952
        %vm1954 = vweird.f32 %v1947
        %vm1955 = vweird.f32 %v1949
        %vm1956 = vmor %vm1954, %vm1955
        %v1957 = vsel %vm1956, %v1949, %v1953
        %v1958 = vand.u32 2147483647, %v1947
        %vm1959 = vcmp.eq.f32.partialorder %v1958, 8.507059e+37
        %v1960 = vand.u32 %v1947, 2147483648
        %v1961 = vor.u32 1.1754944e-38, %v1960
        %v1962 = vsel %vm1959, %v1961, %v1957
        %v1963 = vmul.f32 1.0, %v1962
        %v1964 = vrcp.pop %v1948
        %v1965 = vmul.f32 %v1948, %v1964
        %v1966 = vsub.f32 1.0, %v1965
        %v1967 = vmul.f32 %v1964, %v1966
        %v1968 = vadd.f32 %v1964, %v1967
        %vm1969 = vweird.f32 %v1948
        %vm1970 = vweird.f32 %v1964
        %vm1971 = vmor %vm1969, %vm1970
        %v1972 = vsel %vm1971, %v1964, %v1968
        %v1973 = vand.u32 2147483647, %v1948
        %vm1974 = vcmp.eq.f32.partialorder %v1973, 8.507059e+37
        %v1975 = vand.u32 %v1948, 2147483648
        %v1976 = vor.u32 1.1754944e-38, %v1975
        %v1977 = vsel %vm1974, %v1976, %v1972
        %v1978 = vmul.f32 1.0, %v1977
        %v1979 = vmul.f32 %v1963, 1.0614054
        %v1980 = vmul.f32 %v1978, 1.0614054
        %v1981 = vadd.f32 %v1979, -1.4531521
        %v1982 = vadd.f32 %v1980, -1.4531521
        %v1983 = vmul.f32 %v1981, %v1963
        %v1984 = vmul.f32 %v1982, %v1978
        %v1985 = vadd.f32 %v1983, 1.4214138
        %v1986 = vadd.f32 %v1984, 1.4214138
        %v1987 = vmul.f32 %v1985, %v1963
        %v1988 = vmul.f32 %v1986, %v1978
        %v1989 = vadd.f32 %v1987, -0.28449672
        %v1990 = vadd.f32 %v1988, -0.28449672
        %v1991 = vmul.f32 %v1989, %v1963
        %v1992 = vmul.f32 %v1990, %v1978
        %v1993 = vadd.f32 %v1991, 0.2548296
        %v1994 = vadd.f32 %v1992, 0.2548296
        %v1995 = vmul.f32 %v1993, %v1963
        %v1996 = vmul.f32 %v1994, %v1978
        %v1997 = vsub.f32 0.0, %v1943
        %v1998 = vsub.f32 0.0, %v1944
        %v1999 = vmul.f32 %v1997, %v1943
        %v2000 = vmul.f32 %v1998, %v1944
        %v2001 = vmul.f32 %v1999, 1.442695
        %v2002 = vpow.pop %v2001
        %v2003 = vmul.f32 %v2000, 1.442695
        %v2004 = vpow.pop %v2003
        %v2005 = vmul.f32 %v1995, %v2002
        %v2006 = vmul.f32 %v1996, %v2004
        %v2007 = vsub.f32 1.0, %v2005
        %v2008 = vsub.f32 1.0, %v2006
        %vm2009 = vcmp.ge.f32.partialorder %v1941, 0.0
        %vm2010 = vcmp.ge.f32.partialorder %v1942, 0.0
        %v2011 = vsub.f32 0.0, %v2007
        %v2012 = vsub.f32 0.0, %v2008
        %v2013 = vsel %vm2009, %v2007, %v2011
        %v2014 = vsel %vm2010, %v2008, %v2012
        %v2015 = vadd.f32 %v2013, 1.0
        %v2016 = vadd.f32 %v2014, 1.0
        %v2017 = vmul.f32 %v1939, %v2015
        %v2018 = vmul.f32 %v1940, %v2016
        %s2019 = scalar_lea.vmem %s12, 32
        %v2020 = vld [vmem:[%s2019] sm:$0xff]
        %v2021 = vld [vmem:[%s2019 + $0x8] sm:$0xff]
        %v2022 = vld [vmem:[%s2019 + $0x10] sm:$0xff]
        %v2023 = vld [vmem:[%s2019 + $0x18] sm:$0xff]
        %s2024 = scalar_lea.vmem %s13, 1
        %v2025 = vld [vmem:[%s2024] sm:$0x1]
        %v2027 = vperm.slane %v2025, 0
        %v2030 = vsel %vm768, %v2017, 0
        %v2033 = vsel %vm768, %v2018, 0
        %2035 = vmatpush.msra.mxu0 0.0
        %2036 = vmatpush.msra.mxu0 0.0
        %2037 = vmatpush.msra.mxu0 0.0
        %2038 = vmatpush.msra.mxu0 0.0
        %2039 = vmatpush.msra.mxu0 0.0
        %2040 = vmatpush.msra.mxu0 0.0
        %2041 = vmatpush.msra.mxu0 0.0
        %2042 = vmatpush.msra.mxu0 0.0
        %2043 = vmatpush.msra.mxu0 0.0
        %2044 = vmatpush.msra.mxu0 0.0
        %2045 = vmatpush.msra.mxu0 0.0
        %2046 = vmatpush.msra.mxu0 0.0
        %2047 = vmatpush.msra.mxu0 %v2023
        %2048 = vmatpush.msra.mxu0 %v2022
        %2049 = vmatpush.msra.mxu0 %v2021
        %2050 = vmatpush.msra.mxu0 %v2020
        %2051 = vmatmul.f32.gmra.mxu0 %v2030
        %v2052 = vpop.f32.mrf.mxu0
        %v2053 = vadd.f32 %v2027, %v2052
        %2054 = vmatmul.f32.gmra.mxu0 %v2033
        %v2055 = vpop.f32.mrf.mxu0
        %v2056 = vadd.f32 %v2027, %v2055
        %2057 = vdwg.mxu0
        %v2058 = vmul.f32 %v2053, %v758
        %v2059 = vmul.f32 %v2056, %v759
        %2060 = vxpose.xlu0.b32.start [1/16] %v1904, 128
        %2061 = vxpose.xlu0.b32.cont [2/16] %v1905, 128
        %2062 = vxpose.xlu0.b32.cont [3/16] 0.0, 128
        %2063 = vxpose.xlu0.b32.cont [4/16] 0.0, 128
        %2064 = vxpose.xlu0.b32.cont [5/16] 0.0, 128
        %2065 = vxpose.xlu0.b32.cont [6/16] 0.0, 128
        %2066 = vxpose.xlu0.b32.cont [7/16] 0.0, 128
        %2067 = vxpose.xlu0.b32.cont [8/16] 0.0, 128
        %2068 = vxpose.xlu0.b32.cont [9/16] 0.0, 128
        %2069 = vxpose.xlu0.b32.cont [10/16] 0.0, 128
        %2070 = vxpose.xlu0.b32.cont [11/16] 0.0, 128
        %2071 = vxpose.xlu0.b32.cont [12/16] 0.0, 128
        %2072 = vxpose.xlu0.b32.cont [13/16] 0.0, 128
        %2073 = vxpose.xlu0.b32.cont [14/16] 0.0, 128
        %2074 = vxpose.xlu0.b32.cont [15/16] 0.0, 128
        %2075 = vxpose.xlu0.b32.end [16/16] 0.0, 128
        %v2076 = vpop.trf.xlu0
        %v2077 = vpop.trf.xlu0
        %v2078 = vpop.trf.xlu0
        %v2079 = vpop.trf.xlu0
        %v2080 = vpop.trf.xlu0
        %v2081 = vpop.trf.xlu0
        %v2082 = vpop.trf.xlu0
        %v2083 = vpop.trf.xlu0
        %v2084 = vpop.trf.xlu0
        %v2085 = vpop.trf.xlu0
        %v2086 = vpop.trf.xlu0
        %v2087 = vpop.trf.xlu0
        %v2088 = vpop.trf.xlu0
        %v2089 = vpop.trf.xlu0
        %v2090 = vpop.trf.xlu0
        %v2091 = vpop.trf.xlu0
        %v2093 = vsel %vm1172, %v2076, 0
        %v2096 = vsel %vm1172, %v2077, 0
        %v2099 = vsel %vm1172, %v2078, 0
        %v2102 = vsel %vm1172, %v2079, 0
        %2104 = vmatpush.msra.mxu0 0.0
        %2105 = vmatpush.msra.mxu0 0.0
        %2106 = vmatpush.msra.mxu0 0.0
        %2107 = vmatpush.msra.mxu0 0.0
        %2108 = vmatpush.msra.mxu0 0.0
        %2109 = vmatpush.msra.mxu0 0.0
        %2110 = vmatpush.msra.mxu0 0.0
        %2111 = vmatpush.msra.mxu0 0.0
        %2112 = vmatpush.msra.mxu0 0.0
        %2113 = vmatpush.msra.mxu0 0.0
        %2114 = vmatpush.msra.mxu0 0.0
        %2115 = vmatpush.msra.mxu0 0.0
        %2116 = vmatpush.msra.mxu0 0.0
        %2117 = vmatpush.msra.mxu0 0.0
        %2118 = vmatpush.msra.mxu0 %v1743
        %2119 = vmatpush.msra.mxu0 %v1742
        %2120 = vmatmul.f32.gmra.mxu0 %v2093
        %v2121 = vpop.f32.mrf.mxu0
        %v2122 = vadd.f32 0.0, %v2121
        %2123 = vmatmul.f32.gmra.mxu0 %v2096
        %v2124 = vpop.f32.mrf.mxu0
        %v2125 = vadd.f32 0.0, %v2124
        %2126 = vmatmul.f32.gmra.mxu0 %v2099
        %v2127 = vpop.f32.mrf.mxu0
        %v2128 = vadd.f32 0.0, %v2127
        %2129 = vmatmul.f32.gmra.mxu0 %v2102
        %v2130 = vpop.f32.mrf.mxu0
        %v2131 = vadd.f32 0.0, %v2130
        %2132 = vdwg.mxu0
        %v2133 = vmul.f32 %v2122, 0.5
        %v2134 = vmul.f32 %v2125, 0.5
        %v2135 = vmul.f32 %v2128, 0.5
        %v2136 = vmul.f32 %v2131, 0.5
        %v2137 = vmul.f32 %v2122, 0.70710677
        %v2138 = vmul.f32 %v2125, 0.70710677
        %v2139 = vmul.f32 %v2128, 0.70710677
        %v2140 = vmul.f32 %v2131, 0.70710677
        %v2141 = vand.u32 2147483647, %v2137
        %v2142 = vand.u32 2147483647, %v2138
        %v2143 = vand.u32 2147483647, %v2139
        %v2144 = vand.u32 2147483647, %v2140
        %v2145 = vmul.f32 %v2141, 0.3275911
        %v2146 = vmul.f32 %v2142, 0.3275911
        %v2147 = vmul.f32 %v2143, 0.3275911
        %v2148 = vmul.f32 %v2144, 0.3275911
        %v2149 = vadd.f32 %v2145, 1.0
        %v2150 = vadd.f32 %v2146, 1.0
        %v2151 = vadd.f32 %v2147, 1.0
        %v2152 = vadd.f32 %v2148, 1.0
        %v2153 = vrcp.pop %v2149
        %v2154 = vmul.f32 %v2149, %v2153
        %v2155 = vsub.f32 1.0, %v2154
        %v2156 = vmul.f32 %v2153, %v2155
        %v2157 = vadd.f32 %v2153, %v2156
        %vm2158 = vweird.f32 %v2149
        %vm2159 = vweird.f32 %v2153
        %vm2160 = vmor %vm2158, %vm2159
        %v2161 = vsel %vm2160, %v2153, %v2157
        %v2162 = vand.u32 2147483647, %v2149
        %vm2163 = vcmp.eq.f32.partialorder %v2162, 8.507059e+37
        %v2164 = vand.u32 %v2149, 2147483648
        %v2165 = vor.u32 1.1754944e-38, %v2164
        %v2166 = vsel %vm2163, %v2165, %v2161
        %v2167 = vmul.f32 1.0, %v2166
        %v2168 = vrcp.pop %v2150
        %v2169 = vmul.f32 %v2150, %v2168
        %v2170 = vsub.f32 1.0, %v2169
        %v2171 = vmul.f32 %v2168, %v2170
        %v2172 = vadd.f32 %v2168, %v2171
        %vm2173 = vweird.f32 %v2150
        %vm2174 = vweird.f32 %v2168
        %vm2175 = vmor %vm2173, %vm2174
        %v2176 = vsel %vm2175, %v2168, %v2172
        %v2177 = vand.u32 2147483647, %v2150
        %vm2178 = vcmp.eq.f32.partialorder %v2177, 8.507059e+37
        %v2179 = vand.u32 %v2150, 2147483648
        %v2180 = vor.u32 1.1754944e-38, %v2179
        %v2181 = vsel %vm2178, %v2180, %v2176
        %v2182 = vmul.f32 1.0, %v2181
        %v2183 = vrcp.pop %v2151
        %v2184 = vmul.f32 %v2151, %v2183
        %v2185 = vsub.f32 1.0, %v2184
        %v2186 = vmul.f32 %v2183, %v2185
        %v2187 = vadd.f32 %v2183, %v2186
        %vm2188 = vweird.f32 %v2151
        %vm2189 = vweird.f32 %v2183
        %vm2190 = vmor %vm2188, %vm2189
        %v2191 = vsel %vm2190, %v2183, %v2187
        %v2192 = vand.u32 2147483647, %v2151
        %vm2193 = vcmp.eq.f32.partialorder %v2192, 8.507059e+37
        %v2194 = vand.u32 %v2151, 2147483648
        %v2195 = vor.u32 1.1754944e-38, %v2194
        %v2196 = vsel %vm2193, %v2195, %v2191
        %v2197 = vmul.f32 1.0, %v2196
        %v2198 = vrcp.pop %v2152
        %v2199 = vmul.f32 %v2152, %v2198
        %v2200 = vsub.f32 1.0, %v2199
        %v2201 = vmul.f32 %v2198, %v2200
        %v2202 = vadd.f32 %v2198, %v2201
        %vm2203 = vweird.f32 %v2152
        %vm2204 = vweird.f32 %v2198
        %vm2205 = vmor %vm2203, %vm2204
        %v2206 = vsel %vm2205, %v2198, %v2202
        %v2207 = vand.u32 2147483647, %v2152
        %vm2208 = vcmp.eq.f32.partialorder %v2207, 8.507059e+37
        %v2209 = vand.u32 %v2152, 2147483648
        %v2210 = vor.u32 1.1754944e-38, %v2209
        %v2211 = vsel %vm2208, %v2210, %v2206
        %v2212 = vmul.f32 1.0, %v2211
        %v2213 = vmul.f32 %v2167, 1.0614054
        %v2214 = vmul.f32 %v2182, 1.0614054
        %v2215 = vmul.f32 %v2197, 1.0614054
        %v2216 = vmul.f32 %v2212, 1.0614054
        %v2217 = vadd.f32 %v2213, -1.4531521
        %v2218 = vadd.f32 %v2214, -1.4531521
        %v2219 = vadd.f32 %v2215, -1.4531521
        %v2220 = vadd.f32 %v2216, -1.4531521
        %v2221 = vmul.f32 %v2217, %v2167
        %v2222 = vmul.f32 %v2218, %v2182
        %v2223 = vmul.f32 %v2219, %v2197
        %v2224 = vmul.f32 %v2220, %v2212
        %v2225 = vadd.f32 %v2221, 1.4214138
        %v2226 = vadd.f32 %v2222, 1.4214138
        %v2227 = vadd.f32 %v2223, 1.4214138
        %v2228 = vadd.f32 %v2224, 1.4214138
        %v2229 = vmul.f32 %v2225, %v2167
        %v2230 = vmul.f32 %v2226, %v2182
        %v2231 = vmul.f32 %v2227, %v2197
        %v2232 = vmul.f32 %v2228, %v2212
        %v2233 = vadd.f32 %v2229, -0.28449672
        %v2234 = vadd.f32 %v2230, -0.28449672
        %v2235 = vadd.f32 %v2231, -0.28449672
        %v2236 = vadd.f32 %v2232, -0.28449672
        %v2237 = vmul.f32 %v2233, %v2167
        %v2238 = vmul.f32 %v2234, %v2182
        %v2239 = vmul.f32 %v2235, %v2197
        %v2240 = vmul.f32 %v2236, %v2212
        %v2241 = vadd.f32 %v2237, 0.2548296
        %v2242 = vadd.f32 %v2238, 0.2548296
        %v2243 = vadd.f32 %v2239, 0.2548296
        %v2244 = vadd.f32 %v2240, 0.2548296
        %v2245 = vmul.f32 %v2241, %v2167
        %v2246 = vmul.f32 %v2242, %v2182
        %v2247 = vmul.f32 %v2243, %v2197
        %v2248 = vmul.f32 %v2244, %v2212
        %v2249 = vsub.f32 0.0, %v2141
        %v2250 = vsub.f32 0.0, %v2142
        %v2251 = vsub.f32 0.0, %v2143
        %v2252 = vsub.f32 0.0, %v2144
        %v2253 = vmul.f32 %v2249, %v2141
        %v2254 = vmul.f32 %v2250, %v2142
        %v2255 = vmul.f32 %v2251, %v2143
        %v2256 = vmul.f32 %v2252, %v2144
        %v2257 = vmul.f32 %v2253, 1.442695
        %v2258 = vpow.pop %v2257
        %v2259 = vmul.f32 %v2254, 1.442695
        %v2260 = vpow.pop %v2259
        %v2261 = vmul.f32 %v2255, 1.442695
        %v2262 = vpow.pop %v2261
        %v2263 = vmul.f32 %v2256, 1.442695
        %v2264 = vpow.pop %v2263
        %v2265 = vmul.f32 %v2245, %v2258
        %v2266 = vmul.f32 %v2246, %v2260
        %v2267 = vmul.f32 %v2247, %v2262
        %v2268 = vmul.f32 %v2248, %v2264
        %v2269 = vsub.f32 1.0, %v2265
        %v2270 = vsub.f32 1.0, %v2266
        %v2271 = vsub.f32 1.0, %v2267
        %v2272 = vsub.f32 1.0, %v2268
        %vm2273 = vcmp.ge.f32.partialorder %v2137, 0.0
        %vm2274 = vcmp.ge.f32.partialorder %v2138, 0.0
        %vm2275 = vcmp.ge.f32.partialorder %v2139, 0.0
        %vm2276 = vcmp.ge.f32.partialorder %v2140, 0.0
        %v2277 = vsub.f32 0.0, %v2269
        %v2278 = vsub.f32 0.0, %v2270
        %v2279 = vsub.f32 0.0, %v2271
        %v2280 = vsub.f32 0.0, %v2272
        %v2281 = vsel %vm2273, %v2269, %v2277
        %v2282 = vsel %vm2274, %v2270, %v2278
        %v2283 = vsel %vm2275, %v2271, %v2279
        %v2284 = vsel %vm2276, %v2272, %v2280
        %v2285 = vadd.f32 %v2281, 1.0
        %v2286 = vadd.f32 %v2282, 1.0
        %v2287 = vadd.f32 %v2283, 1.0
        %v2288 = vadd.f32 %v2284, 1.0
        %v2289 = vmul.f32 %v2133, %v2285
        %v2290 = vmul.f32 %v2134, %v2286
        %v2291 = vmul.f32 %v2135, %v2287
        %v2292 = vmul.f32 %v2136, %v2288
        %v2293 = vmul.f32 %v2289, %v762
        %v2294 = vmul.f32 %v2290, %v763
        %v2295 = vmul.f32 %v2291, %v764
        %v2296 = vmul.f32 %v2292, %v765
        %v2298 = vsel %vm768, %v2058, 0
        %v2301 = vsel %vm768, %v2059, 0
        %2303 = vmatpush.msra.mxu0 0.0
        %2304 = vmatpush.msra.mxu0 0.0
        %2305 = vmatpush.msra.mxu0 0.0
        %2306 = vmatpush.msra.mxu0 0.0
        %2307 = vmatpush.msra.mxu0 0.0
        %2308 = vmatpush.msra.mxu0 0.0
        %2309 = vmatpush.msra.mxu0 0.0
        %2310 = vmatpush.msra.mxu0 0.0
        %2311 = vmatpush.msra.mxu0 0.0
        %2312 = vmatpush.msra.mxu0 0.0
        %2313 = vmatpush.msra.mxu0 0.0
        %2314 = vmatpush.msra.mxu0 0.0
        %2315 = vmatpush.msra.mxu0 %v2296
        %2316 = vmatpush.msra.mxu0 %v2295
        %2317 = vmatpush.msra.mxu0 %v2294
        %2318 = vmatpush.msra.mxu0 %v2293
        %2319 = vmatmul.f32.gmra.mxu0 %v2298
        %v2320 = vpop.f32.mrf.mxu0
        %v2321 = vadd.f32 0.0, %v2320
        %2322 = vmatmul.f32.gmra.mxu0 %v2301
        %v2323 = vpop.f32.mrf.mxu0
        %v2324 = vadd.f32 0.0, %v2323
        %2325 = vdwg.mxu0
        %s2326 = scalar_lea.vmem %s14, 1
        %v2327 = vld [vmem:[%s2326] sm:$0x1]
        %s2328 = scalar_lea.vmem %s15, 1
        %v2329 = vld [vmem:[%s2328] sm:$0x1]
        %v2330 = vsel %vm768, %v2321, 0.0
        %2331 = vadd.xlane.f32.xlu0 %v2330
        %v2332 = vpop.xlane.xlu0 %2331
        %v2333 = vsel %vm768, %v2324, 0.0
        %2334 = vadd.xlane.f32.xlu0 %v2333
        %v2335 = vpop.xlane.xlu0 %2334
        %v2336 = vmul.f32 %v2332, %v781
        %v2337 = vmul.f32 %v2335, %v781
        %v2338 = vsub.f32 %v2321, %v2336
        %v2339 = vsub.f32 %v2324, %v2337
        %v2340 = vmul.f32 %v2338, %v2338
        %v2341 = vmul.f32 %v2339, %v2339
        %v2342 = vsel %vm768, %v2340, 0.0
        %2343 = vadd.xlane.f32.xlu0 %v2342
        %v2344 = vpop.xlane.xlu0 %2343
        %v2345 = vsel %vm768, %v2341, 0.0
        %2346 = vadd.xlane.f32.xlu0 %v2345
        %v2347 = vpop.xlane.xlu0 %2346
        %v2348 = vmul.f32 %v2344, %v781
        %v2349 = vmul.f32 %v2347, %v781
        %v2350 = vadd.f32 %v2348, 1e-05
        %v2351 = vadd.f32 %v2349, 1e-05
        %v2352 = vrsqrt.pop %v2350
        %v2353 = vmul.f32 %v2352, %v2350
        %v2354 = vmul.f32 %v2353, %v2352
        %v2355 = vmul.f32 0.5, %v2354
        %v2356 = vsub.f32 1.5, %v2355
        %v2357 = vmul.f32 %v2352, %v2356
        %vm2358 = vweird.f32 %v2350
        %vm2359 = vweird.f32 %v2352
        %vm2360 = vmor %vm2358, %vm2359
        %v2361 = vsel %vm2360, %v2352, %v2357
        %v2362 = vrsqrt.pop %v2351
        %v2363 = vmul.f32 %v2362, %v2351
        %v2364 = vmul.f32 %v2363, %v2362
        %v2365 = vmul.f32 0.5, %v2364
        %v2366 = vsub.f32 1.5, %v2365
        %v2367 = vmul.f32 %v2362, %v2366
        %vm2368 = vweird.f32 %v2351
        %vm2369 = vweird.f32 %v2362
        %vm2370 = vmor %vm2368, %vm2369
        %v2371 = vsel %vm2370, %v2362, %v2367
        %v2372 = vmul.f32 %v2338, %v2361
        %v2373 = vmul.f32 %v2339, %v2371
        %v2375 = vperm.slane %v2327, 0
        %v2377 = vmul.f32 %v2372, %v2375
        %v2378 = vmul.f32 %v2373, %v2375
        %v2380 = vperm.slane %v2329, 0
        %v2382 = vadd.f32 %v2377, %v2380
        %v2383 = vadd.f32 %v2378, %v2380
        %v2384 = vadd.f32 %v1682, %v2382
        %v2385 = vadd.f32 %v1683, %v2383
        %s2386 = scalar_lea.vmem %s16, 1
        %v2387 = vld [vmem:[%s2386] sm:$0x1]
        %s2388 = scalar_lea.vmem %s17, 1
        %v2389 = vld [vmem:[%s2388] sm:$0x1]
        %v2390 = vsel %vm768, %v2384, 0.0
        %2391 = vadd.xlane.f32.xlu0 %v2390
        %v2392 = vpop.xlane.xlu0 %2391
        %v2393 = vsel %vm768, %v2385, 0.0
        %2394 = vadd.xlane.f32.xlu0 %v2393
        %v2395 = vpop.xlane.xlu0 %2394
        %v2396 = vmul.f32 %v2392, %v781
        %v2397 = vmul.f32 %v2395, %v781
        %v2398 = vsub.f32 %v2384, %v2396
        %v2399 = vsub.f32 %v2385, %v2397
        %v2400 = vmul.f32 %v2398, %v2398
        %v2401 = vmul.f32 %v2399, %v2399
        %v2402 = vsel %vm768, %v2400, 0.0
        %2403 = vadd.xlane.f32.xlu0 %v2402
        %v2404 = vpop.xlane.xlu0 %2403
        %v2405 = vsel %vm768, %v2401, 0.0
        %2406 = vadd.xlane.f32.xlu0 %v2405
        %v2407 = vpop.xlane.xlu0 %2406
        %v2408 = vmul.f32 %v2404, %v781
        %v2409 = vmul.f32 %v2407, %v781
        %v2410 = vadd.f32 %v2408, 1e-05
        %v2411 = vadd.f32 %v2409, 1e-05
        %v2412 = vrsqrt.pop %v2410
        %v2413 = vmul.f32 %v2412, %v2410
        %v2414 = vmul.f32 %v2413, %v2412
        %v2415 = vmul.f32 0.5, %v2414
        %v2416 = vsub.f32 1.5, %v2415
        %v2417 = vmul.f32 %v2412, %v2416
        %vm2418 = vweird.f32 %v2410
        %vm2419 = vweird.f32 %v2412
        %vm2420 = vmor %vm2418, %vm2419
        %v2421 = vsel %vm2420, %v2412, %v2417
        %v2422 = vrsqrt.pop %v2411
        %v2423 = vmul.f32 %v2422, %v2411
        %v2424 = vmul.f32 %v2423, %v2422
        %v2425 = vmul.f32 0.5, %v2424
        %v2426 = vsub.f32 1.5, %v2425
        %v2427 = vmul.f32 %v2422, %v2426
        %vm2428 = vweird.f32 %v2411
        %vm2429 = vweird.f32 %v2422
        %vm2430 = vmor %vm2428, %vm2429
        %v2431 = vsel %vm2430, %v2422, %v2427
        %v2432 = vmul.f32 %v2398, %v2421
        %v2433 = vmul.f32 %v2399, %v2431
        %v2435 = vperm.slane %v2387, 0
        %v2437 = vmul.f32 %v2432, %v2435
        %v2438 = vmul.f32 %v2433, %v2435
        %v2440 = vperm.slane %v2389, 0
        %v2442 = vadd.f32 %v2437, %v2440
        %v2443 = vadd.f32 %v2438, %v2440
        %s2444 = scalar_lea.vmem %s18, 32
        %v2445 = vld [vmem:[%s2444] sm:$0xff]
        %v2446 = vld [vmem:[%s2444 + $0x8] sm:$0xff]
        %v2447 = vld [vmem:[%s2444 + $0x10] sm:$0xff]
        %v2448 = vld [vmem:[%s2444 + $0x18] sm:$0xff]
        %s2449 = scalar_lea.vmem %s19, 1
        %v2450 = vld [vmem:[%s2449] sm:$0x1]
        %v2452 = vperm.slane %v2450, 0
        %v2455 = vsel %vm768, %v2442, 0
        %v2458 = vsel %vm768, %v2443, 0
        %2460 = vmatpush.msra.mxu0 0.0
        %2461 = vmatpush.msra.mxu0 0.0
        %2462 = vmatpush.msra.mxu0 0.0
        %2463 = vmatpush.msra.mxu0 0.0
        %2464 = vmatpush.msra.mxu0 0.0
        %2465 = vmatpush.msra.mxu0 0.0
        %2466 = vmatpush.msra.mxu0 0.0
        %2467 = vmatpush.msra.mxu0 0.0
        %2468 = vmatpush.msra.mxu0 0.0
        %2469 = vmatpush.msra.mxu0 0.0
        %2470 = vmatpush.msra.mxu0 0.0
        %2471 = vmatpush.msra.mxu0 0.0
        %2472 = vmatpush.msra.mxu0 %v2448
        %2473 = vmatpush.msra.mxu0 %v2447
        %2474 = vmatpush.msra.mxu0 %v2446
        %2475 = vmatpush.msra.mxu0 %v2445
        %2476 = vmatmul.f32.gmra.mxu0 %v2455
        %v2477 = vpop.f32.mrf.mxu0
        %v2478 = vadd.f32 %v2452, %v2477
        %2479 = vmatmul.f32.gmra.mxu0 %v2458
        %v2480 = vpop.f32.mrf.mxu0
        %v2481 = vadd.f32 %v2452, %v2480
        %2482 = vdwg.mxu0
        %v2483 = vmul.f32 %v2478, 0.5
        %v2484 = vmul.f32 %v2481, 0.5
        %v2485 = vmul.f32 %v2478, 0.70710677
        %v2486 = vmul.f32 %v2481, 0.70710677
        %v2487 = vand.u32 2147483647, %v2485
        %v2488 = vand.u32 2147483647, %v2486
        %v2489 = vmul.f32 %v2487, 0.3275911
        %v2490 = vmul.f32 %v2488, 0.3275911
        %v2491 = vadd.f32 %v2489, 1.0
        %v2492 = vadd.f32 %v2490, 1.0
        %v2493 = vrcp.pop %v2491
        %v2494 = vmul.f32 %v2491, %v2493
        %v2495 = vsub.f32 1.0, %v2494
        %v2496 = vmul.f32 %v2493, %v2495
        %v2497 = vadd.f32 %v2493, %v2496
        %vm2498 = vweird.f32 %v2491
        %vm2499 = vweird.f32 %v2493
        %vm2500 = vmor %vm2498, %vm2499
        %v2501 = vsel %vm2500, %v2493, %v2497
        %v2502 = vand.u32 2147483647, %v2491
        %vm2503 = vcmp.eq.f32.partialorder %v2502, 8.507059e+37
        %v2504 = vand.u32 %v2491, 2147483648
        %v2505 = vor.u32 1.1754944e-38, %v2504
        %v2506 = vsel %vm2503, %v2505, %v2501
        %v2507 = vmul.f32 1.0, %v2506
        %v2508 = vrcp.pop %v2492
        %v2509 = vmul.f32 %v2492, %v2508
        %v2510 = vsub.f32 1.0, %v2509
        %v2511 = vmul.f32 %v2508, %v2510
        %v2512 = vadd.f32 %v2508, %v2511
        %vm2513 = vweird.f32 %v2492
        %vm2514 = vweird.f32 %v2508
        %vm2515 = vmor %vm2513, %vm2514
        %v2516 = vsel %vm2515, %v2508, %v2512
        %v2517 = vand.u32 2147483647, %v2492
        %vm2518 = vcmp.eq.f32.partialorder %v2517, 8.507059e+37
        %v2519 = vand.u32 %v2492, 2147483648
        %v2520 = vor.u32 1.1754944e-38, %v2519
        %v2521 = vsel %vm2518, %v2520, %v2516
        %v2522 = vmul.f32 1.0, %v2521
        %v2523 = vmul.f32 %v2507, 1.0614054
        %v2524 = vmul.f32 %v2522, 1.0614054
        %v2525 = vadd.f32 %v2523, -1.4531521
        %v2526 = vadd.f32 %v2524, -1.4531521
        %v2527 = vmul.f32 %v2525, %v2507
        %v2528 = vmul.f32 %v2526, %v2522
        %v2529 = vadd.f32 %v2527, 1.4214138
        %v2530 = vadd.f32 %v2528, 1.4214138
        %v2531 = vmul.f32 %v2529, %v2507
        %v2532 = vmul.f32 %v2530, %v2522
        %v2533 = vadd.f32 %v2531, -0.28449672
        %v2534 = vadd.f32 %v2532, -0.28449672
        %v2535 = vmul.f32 %v2533, %v2507
        %v2536 = vmul.f32 %v2534, %v2522
        %v2537 = vadd.f32 %v2535, 0.2548296
        %v2538 = vadd.f32 %v2536, 0.2548296
        %v2539 = vmul.f32 %v2537, %v2507
        %v2540 = vmul.f32 %v2538, %v2522
        %v2541 = vsub.f32 0.0, %v2487
        %v2542 = vsub.f32 0.0, %v2488
        %v2543 = vmul.f32 %v2541, %v2487
        %v2544 = vmul.f32 %v2542, %v2488
        %v2545 = vmul.f32 %v2543, 1.442695
        %v2546 = vpow.pop %v2545
        %v2547 = vmul.f32 %v2544, 1.442695
        %v2548 = vpow.pop %v2547
        %v2549 = vmul.f32 %v2539, %v2546
        %v2550 = vmul.f32 %v2540, %v2548
        %v2551 = vsub.f32 1.0, %v2549
        %v2552 = vsub.f32 1.0, %v2550
        %vm2553 = vcmp.ge.f32.partialorder %v2485, 0.0
        %vm2554 = vcmp.ge.f32.partialorder %v2486, 0.0
        %v2555 = vsub.f32 0.0, %v2551
        %v2556 = vsub.f32 0.0, %v2552
        %v2557 = vsel %vm2553, %v2551, %v2555
        %v2558 = vsel %vm2554, %v2552, %v2556
        %v2559 = vadd.f32 %v2557, 1.0
        %v2560 = vadd.f32 %v2558, 1.0
        %v2561 = vmul.f32 %v2483, %v2559
        %v2562 = vmul.f32 %v2484, %v2560
        %s2563 = scalar_lea.vmem %s20, 64
        %v2564 = vld [vmem:[%s2563] sm:$0xff]
        %v2565 = vld [vmem:[%s2563 + $0x8] sm:$0xff]
        %v2566 = vld [vmem:[%s2563 + $0x10] sm:$0xff]
        %v2567 = vld [vmem:[%s2563 + $0x18] sm:$0xff]
        %v2568 = vld [vmem:[%s2563 + $0x20] sm:$0xff]
        %v2569 = vld [vmem:[%s2563 + $0x28] sm:$0xff]
        %v2570 = vld [vmem:[%s2563 + $0x30] sm:$0xff]
        %v2571 = vld [vmem:[%s2563 + $0x38] sm:$0xff]
        %v2573 = vsel %vm1646, %v2561, 0
        %v2576 = vsel %vm1646, %v2562, 0
        %2578 = vmatpush.msra.mxu0 0.0
        %2579 = vmatpush.msra.mxu0 0.0
        %2580 = vmatpush.msra.mxu0 0.0
        %2581 = vmatpush.msra.mxu0 0.0
        %2582 = vmatpush.msra.mxu0 0.0
        %2583 = vmatpush.msra.mxu0 0.0
        %2584 = vmatpush.msra.mxu0 0.0
        %2585 = vmatpush.msra.mxu0 0.0
        %2586 = vmatpush.msra.mxu0 %v2571
        %2587 = vmatpush.msra.mxu0 %v2570
        %2588 = vmatpush.msra.mxu0 %v2569
        %2589 = vmatpush.msra.mxu0 %v2568
        %2590 = vmatpush.msra.mxu0 %v2567
        %2591 = vmatpush.msra.mxu0 %v2566
        %2592 = vmatpush.msra.mxu0 %v2565
        %2593 = vmatpush.msra.mxu0 %v2564
        %2594 = vmatmul.f32.gmra.mxu0 %v2573
        %v2595 = vpop.f32.mrf.mxu0
        %v2596 = vadd.f32 0.0, %v2595
        %2597 = vmatmul.f32.gmra.mxu0 %v2576
        %v2598 = vpop.f32.mrf.mxu0
        %v2599 = vadd.f32 0.0, %v2598
        %2600 = vdwg.mxu0
        %v2601 = vadd.f32 %v2384, %v2596
        %v2602 = vadd.f32 %v2385, %v2599
        %s2603 = scalar_lea.vmem %s21, 1
        %v2604 = vld [vmem:[%s2603] sm:$0x1]
        %v2606 = vperm.slane %v2604, 0
        %v2608 = vadd.f32 %v2601, %v2606
        %v2609 = vadd.f32 %v2602, %v2606
        %v2610 = vld [vmem:[%s22] sm:$0x1]
        %v2611 = vld [vmem:[%s23] sm:$0x1]
        %v2612 = vsel %vm768, %v2608, 0.0
        %2613 = vadd.xlane.f32.xlu0 %v2612
        %v2614 = vpop.xlane.xlu0 %2613
        %v2615 = vsel %vm768, %v2609, 0.0
        %2616 = vadd.xlane.f32.xlu0 %v2615
        %v2617 = vpop.xlane.xlu0 %2616
        %v2618 = vmul.f32 %v2614, %v781
        %v2619 = vmul.f32 %v2617, %v781
        %v2620 = vsub.f32 %v2608, %v2618
        %v2621 = vsub.f32 %v2609, %v2619
        %v2622 = vmul.f32 %v2620, %v2620
        %v2623 = vmul.f32 %v2621, %v2621
        %v2624 = vsel %vm768, %v2622, 0.0
        %2625 = vadd.xlane.f32.xlu0 %v2624
        %v2626 = vpop.xlane.xlu0 %2625
        %v2627 = vsel %vm768, %v2623, 0.0
        %2628 = vadd.xlane.f32.xlu0 %v2627
        %v2629 = vpop.xlane.xlu0 %2628
        %v2630 = vmul.f32 %v2626, %v781
        %v2631 = vmul.f32 %v2629, %v781
        %v2632 = vadd.f32 %v2630, 1e-05
        %v2633 = vadd.f32 %v2631, 1e-05
        %v2634 = vrsqrt.pop %v2632
        %v2635 = vmul.f32 %v2634, %v2632
        %v2636 = vmul.f32 %v2635, %v2634
        %v2637 = vmul.f32 0.5, %v2636
        %v2638 = vsub.f32 1.5, %v2637
        %v2639 = vmul.f32 %v2634, %v2638
        %vm2640 = vweird.f32 %v2632
        %vm2641 = vweird.f32 %v2634
        %vm2642 = vmor %vm2640, %vm2641
        %v2643 = vsel %vm2642, %v2634, %v2639
        %v2644 = vrsqrt.pop %v2633
        %v2645 = vmul.f32 %v2644, %v2633
        %v2646 = vmul.f32 %v2645, %v2644
        %v2647 = vmul.f32 0.5, %v2646
        %v2648 = vsub.f32 1.5, %v2647
        %v2649 = vmul.f32 %v2644, %v2648
        %vm2650 = vweird.f32 %v2633
        %vm2651 = vweird.f32 %v2644
        %vm2652 = vmor %vm2650, %vm2651
        %v2653 = vsel %vm2652, %v2644, %v2649
        %v2654 = vmul.f32 %v2620, %v2643
        %v2655 = vmul.f32 %v2621, %v2653
        %v2657 = vperm.slane %v2610, 0
        %v2659 = vmul.f32 %v2654, %v2657
        %v2660 = vmul.f32 %v2655, %v2657
        %v2662 = vperm.slane %v2611, 0
        %v2664 = vadd.f32 %v2659, %v2662
        %v2665 = vadd.f32 %v2660, %v2662
        %2666 = vst.msk [vmem:[%s745] sm:$0xff] %vm768, %v2664
        %2667 = vst.msk [vmem:[%s745 + $0x8] sm:$0xff] %vm768, %v2665
        %s2668 = sand.u32 %s560, 1
        %s2669 = scalar_lea.sflag [#allocation3], %s2668
        %s2670 = sand.u32 %s560, 1
        %s2671 = smul.addr %s2670, 16
        %s2672 = scalar_lea.vmem [#allocation2], %s2671
        // Predicated region
        $region117: #{mixer_each_chr_forward.1} parent=115 // pred_check
          %p2673 = pneg %p570
        $region118: #{mixer_each_chr_forward.1} parent=115 // pred_check_branch
          %2675 = sbr.rel (%p2673) target = $region120
        $region119: #{mixer_each_chr_forward.1} parent=115 // pred_region
          %2677 = vsyncadd %s2669, 0
          %s2678 = smul.addr %s38, 2
          %s2679 = smul.addr %s2678, 8
          %s2680 = scalar_lea.hbm %s24, %s2679
          %s2681 = sshll.u32 %s2672, 4
          %s2682 = int_to_ptr.vmem [resolvable:$true] %s2681
          %s2683 = sshll.u32 %s2680, 4
          %s2684 = int_to_ptr.hbm [resolvable:$true] %s2683
          %2689 = dma.vmem_to_hbm [thread:$0]  %s2682, 256, %s2684, %s2669, 128, 128, 8
        $region120: #{mixer_each_chr_forward.1} parent=115 // pred_fallthru
          _
      $region116: #{mixer_each_chr_forward.1} parent=5 // pred_fallthru
        _
      %p2690 = scmp.le.s32.totalorder 2, %s33
      // Predicated region
      $region121: #{mixer_each_chr_forward.1} parent=5 // pred_check
        %p2691 = pneg %p2690
      $region122: #{mixer_each_chr_forward.1} parent=5 // pred_check_branch
        %2693 = sbr.rel (%p2691) target = $region124
      $region123: #{mixer_each_chr_forward.1} parent=5 // pred_region
        %s2694 = ssub.s32 %s33, 2
        // Predicated region
        $region125: #{mixer_each_chr_forward.1} parent=123 // pred_check
          %p2695 = pneg %p576
        $region126: #{mixer_each_chr_forward.1} parent=123 // pred_check_branch
          %2697 = sbr.rel (%p2695) target = $region128
        $region127: #{mixer_each_chr_forward.1} parent=123 // pred_region
          %s2698 = sand.u32 %s561, 1
          %s2699 = scalar_lea.sflag [#allocation3], %s2698
          %s2700 = sand.u32 %s561, 1
          %s2701 = smul.addr %s2700, 16
          %s2702 = scalar_lea.vmem [#allocation2], %s2701
          %2704 = dma.done %s2699, 256
        $region128: #{mixer_each_chr_forward.1} parent=123 // pred_fallthru
          _
      $region124: #{mixer_each_chr_forward.1} parent=5 // pred_fallthru
        _
    $region6: #{mixer_each_chr_forward.1} parent=1 // loop_footer
      %s37 = sadd.s32 1, %s33
    $region7: #{mixer_each_chr_forward.1} parent=1 // loop_footer_branch
      %32 = sbr.rel target = $region3
    $region8: #{mixer_each_chr_forward.1} parent=1 // loop_exit
      _
    %2705 = vsyncpa [#allocation3], 1
    %s2706 = scalar_lea.sflag [#allocation3], 1
    %2707 = vsyncpa %s2706, 1

</llo_original>
